<compile_context>
chip_gen: v7x
topology: tpu7x:2x2x1
jax: 0.10.0
libtpu: 0.0.40
codegen_flags: <defaults>
</compile_context>

<pallas_src>
import functools

import jax
import jax.numpy as jnp
import numpy as np
from jax.experimental import pallas as pl
from jax.experimental.pallas import tpu as pltpu


# --------------------------------------------------------------------------
# Pallas kernels
# --------------------------------------------------------------------------
def _mca_gate_kernel(x_ref, bha_ref, bhs_ref, bwa_t_ref, bws_t_ref, g_ref):
    """MCA gate statistics for one batch element (single pass over x).

    x_ref block: (1, C, H, W) f32.  Emits the combined per-pixel gate
    0.5 * (g_h[h] + g_w[w]) of shape (1, H, W).  bha/bhs are (H, H) banded conv
    matrices already scaled by (0.5 + sigmoid(weight)); bwa_t/bws_t are the
    transposed (W, W) versions.  std uses ddof=1 (torch .std default).
    """
    xb = x_ref[0]                                   # (C, H, W) f32
    C, H, W = xb.shape
    n_h = float(C * W)                              # pooled elements for h-gate
    n_w = float(C * H)                              # pooled elements for w-gate

    # One pass over the block: channel-reduced sum and sum-of-squares.
    s1 = jnp.sum(xb, axis=0)                        # (H, W)
    s2 = jnp.sum(xb * xb, axis=0)                   # (H, W)

    sum_h = jnp.sum(s1, axis=1, keepdims=True)      # (H, 1)
    sq_h = jnp.sum(s2, axis=1, keepdims=True)
    mean_h = sum_h / n_h
    var_h = jnp.maximum(sq_h - n_h * mean_h * mean_h, 0.0) / (n_h - 1.0)
    std_h = jnp.sqrt(var_h)                         # (H, 1)

    sum_w = jnp.sum(s1, axis=0, keepdims=True)      # (1, W)
    sq_w = jnp.sum(s2, axis=0, keepdims=True)
    mean_w = sum_w / n_w
    var_w = jnp.maximum(sq_w - n_w * mean_w * mean_w, 0.0) / (n_w - 1.0)
    std_w = jnp.sqrt(var_w)                         # (1, W)

    g_h = jax.nn.sigmoid(
        jnp.dot(bha_ref[...], mean_h, preferred_element_type=jnp.float32)
        + jnp.dot(bhs_ref[...], std_h, preferred_element_type=jnp.float32))   # (H, 1)
    g_w = jax.nn.sigmoid(
        jnp.dot(mean_w, bwa_t_ref[...], preferred_element_type=jnp.float32)
        + jnp.dot(std_w, bws_t_ref[...], preferred_element_type=jnp.float32))  # (1, W)

    g_ref[0] = 0.5 * (g_h + g_w)                    # (H, W)


def _cv1_gate_kernel(x_ref, g_ref, w_ref, b_ref, y0_ref, y1_ref):
    """cv1: 1x1 Conv + folded BN + SiLU with the MCA gate applied post-matmul.

    The per-pixel gate commutes with the 1x1 conv: W @ (g*x) == g * (W @ x).
    x_ref: (1, Cin, TN) f32, g_ref: (1, 1, TN) f32, w_ref: (Cout, Cin) bf16,
    b_ref: (Cout, 1) f32.  Outputs the two channel halves y0/y1 as bf16.
    """
    acc = jnp.dot(w_ref[...], x_ref[0].astype(jnp.bfloat16),
                  preferred_element_type=jnp.float32)          # (Cout, TN)
    acc = acc * g_ref[0] + b_ref[...]
    y = acc * jax.nn.sigmoid(acc)
    c = y0_ref.shape[1]
    y0_ref[0] = y[:c].astype(y0_ref.dtype)
    y1_ref[0] = y[c:].astype(y1_ref.dtype)


def _bottleneck_cv2_kernel(y0_ref, y1_ref, w1_ref, b1_ref, w2_ref, b2_ref,
                           mask_ref, wy0_ref, wy1_ref, wz_ref, bc_ref, o_ref,
                           pad_ref, taps_ref, *, W):
    """Bottleneck (two 3x3 Conv+BN+SiLU, no shortcut) fused with cv2.

    y0/y1: (1, c, HW) bf16 halves of the cv1 output.  Each 3x3 conv is done as a
    single im2col matmul: the input is written once into a spatially padded f32
    scratch (only the W+1 margin lanes are zeroed), the 9 shifted taps are copied
    into a (9*c, HW) scratch (2 column masks handle dx=+/-1 wrap-around; the zero
    margin covers dy=+/-1), then one MXU matmul with K=9*c produces the output.
    cv2 is applied directly to [y0, y1, z] without materializing the concat or
    writing z to HBM.  Final output (1, c2, HW) f32.
    """
    hw = y1_ref.shape[2]
    cin = y1_ref.shape[1]
    margin = W + 1

    # Zero only the margin lanes; the interior is fully overwritten below.
    zeros_m = jnp.zeros((cin, margin), jnp.float32)
    pad_ref[:, 0:margin] = zeros_m
    pad_ref[:, margin + hw:margin + hw + margin] = zeros_m

    def conv3x3(src_f32, w_flat_ref, b_ref_):
        pad_ref[:, margin:margin + hw] = src_f32
        for k in range(9):                       # static unroll, taps -> im2col
            dy = k // 3 - 1
            dx = k % 3 - 1
            start = margin + dy * W + dx
            tap = pad_ref[:, start:start + hw]   # (cin, hw) static lane slice
            if dx != 0:                          # only dx=+/-1 need a column mask
                tap = tap * mask_ref[0 if dx < 0 else 1][None, :]
            taps_ref[k * cin:(k + 1) * cin, :] = tap
        acc = jnp.dot(w_flat_ref[...], taps_ref[...].astype(jnp.bfloat16),
                      preferred_element_type=jnp.float32) + b_ref_[...]
        return acc * jax.nn.sigmoid(acc)         # (cin, hw) f32

    z = conv3x3(y1_ref[0].astype(jnp.float32), w1_ref, b1_ref)
    z = conv3x3(z, w2_ref, b2_ref)

    # cv2 on the virtual concat [y0, y1, z]
    acc = jnp.dot(wy0_ref[...], y0_ref[0], preferred_element_type=jnp.float32)
    acc = acc + jnp.dot(wy1_ref[...], y1_ref[0], preferred_element_type=jnp.float32)
    acc = acc + jnp.dot(wz_ref[...], z.astype(jnp.bfloat16),
                        preferred_element_type=jnp.float32)
    acc = acc + bc_ref[...]
    o_ref[0] = (acc * jax.nn.sigmoid(acc)).astype(o_ref.dtype)


# --------------------------------------------------------------------------
# Pallas wrappers
# --------------------------------------------------------------------------
def mca_gate(x, bha, bhs, bwa_t, bws_t):
    B, C, H, W = x.shape
    return pl.pallas_call(
        _mca_gate_kernel,
        out_shape=jax.ShapeDtypeStruct((B, H, W), jnp.float32),
        grid=(B,),
        in_specs=[
            pl.BlockSpec((1, C, H, W), lambda b: (b, 0, 0, 0)),
            pl.BlockSpec((H, H), lambda b: (0, 0)),
            pl.BlockSpec((H, H), lambda b: (0, 0)),
            pl.BlockSpec((W, W), lambda b: (0, 0)),
            pl.BlockSpec((W, W), lambda b: (0, 0)),
        ],
        out_specs=pl.BlockSpec((1, H, W), lambda b: (b, 0, 0)),
        compiler_params=pltpu.CompilerParams(dimension_semantics=("parallel",)),
    )(x, bha, bhs, bwa_t, bws_t)


def cv1_gate(x3, gate3, w, bias, tn):
    B, Cin, HW = x3.shape
    Cout = w.shape[0]
    c = Cout // 2
    nj = pl.cdiv(HW, tn)
    ce = pl.CostEstimate(
        flops=2 * B * HW * Cin * Cout,
        transcendentals=B * Cout * HW,
        bytes_accessed=4 * (x3.size + gate3.size) + 2 * (B * Cout * HW + w.size))
    return pl.pallas_call(
        _cv1_gate_kernel,
        out_shape=(jax.ShapeDtypeStruct((B, c, HW), jnp.bfloat16),
                   jax.ShapeDtypeStruct((B, c, HW), jnp.bfloat16)),
        grid=(B, nj),
        in_specs=[
            pl.BlockSpec((1, Cin, tn), lambda b, j: (b, 0, j)),
            pl.BlockSpec((1, 1, tn), lambda b, j: (b, 0, j)),
            pl.BlockSpec((Cout, Cin), lambda b, j: (0, 0)),   # resident weights
            pl.BlockSpec((Cout, 1), lambda b, j: (0, 0)),
        ],
        out_specs=(pl.BlockSpec((1, c, tn), lambda b, j: (b, 0, j)),
                   pl.BlockSpec((1, c, tn), lambda b, j: (b, 0, j))),
        compiler_params=pltpu.CompilerParams(
            dimension_semantics=("parallel", "parallel")),
        cost_estimate=ce,
    )(x3, gate3, w, bias)


def bottleneck_cv2(y0, y1, w1, b1, w2, b2, masks, wy0, wy1, wz, bc, W):
    B, c, HW = y1.shape
    c2 = wy0.shape[0]
    kern = functools.partial(_bottleneck_cv2_kernel, W=W)
    ce = pl.CostEstimate(
        flops=2 * B * HW * (2 * 9 * c * c + 3 * c * c2),
        transcendentals=B * HW * (2 * c + c2),
        bytes_accessed=(2 * B * 2 * c * HW
                        + 2 * (w1.size + w2.size + wy0.size + wy1.size + wz.size)
                        + 4 * (B * c2 * HW + masks.size)))
    return pl.pallas_call(
        kern,
        out_shape=jax.ShapeDtypeStruct((B, c2, HW), jnp.float32),
        grid=(B,),
        in_specs=[
            pl.BlockSpec((1, c, HW), lambda b: (b, 0, 0)),    # y0
            pl.BlockSpec((1, c, HW), lambda b: (b, 0, 0)),    # y1 (conv input)
            pl.BlockSpec((c, 9 * c), lambda b: (0, 0)),       # conv1 weight (flat)
            pl.BlockSpec((c, 1), lambda b: (0, 0)),
            pl.BlockSpec((c, 9 * c), lambda b: (0, 0)),       # conv2 weight (flat)
            pl.BlockSpec((c, 1), lambda b: (0, 0)),
            pl.BlockSpec((2, HW), lambda b: (0, 0)),          # dx=-1 / dx=+1 masks
            pl.BlockSpec((c2, c), lambda b: (0, 0)),          # cv2 weight on y0
            pl.BlockSpec((c2, c), lambda b: (0, 0)),          # cv2 weight on y1
            pl.BlockSpec((c2, c), lambda b: (0, 0)),          # cv2 weight on z
            pl.BlockSpec((c2, 1), lambda b: (0, 0)),
        ],
        out_specs=pl.BlockSpec((1, c2, HW), lambda b: (b, 0, 0)),
        scratch_shapes=[
            pltpu.VMEM((c, HW + 2 * (W + 1)), jnp.float32),   # padded image scratch
            pltpu.VMEM((9 * c, HW), jnp.float32),             # im2col taps scratch
        ],
        compiler_params=pltpu.CompilerParams(dimension_semantics=("parallel",)),
        cost_estimate=ce,
    )(y0, y1, w1, b1, w2, b2, masks, wy0, wy1, wz, bc)


# --------------------------------------------------------------------------
# Full forward (3 pallas_calls + free reshapes only)
# --------------------------------------------------------------------------
def c2f_with_mca_forward(x_nchw, p):
    B, C1, H, W = x_nchw.shape
    HW = H * W
    tn = HW if HW <= 2048 else 2048        # spatial column tile for cv1

    # MCA gate (per-pixel scalar gate only; it is applied inside cv1)
    gate3 = mca_gate(x_nchw, p["bha"], p["bhs"], p["bwa_t"], p["bws_t"])
    gate3 = gate3.reshape(B, 1, HW)        # contiguous -> free reshape
    x3 = x_nchw.reshape(B, C1, HW)         # channels-first flat view, no copy

    # cv1 (1x1 conv + BN + SiLU, gate fused), emits the two halves y0/y1 (bf16)
    y0, y1 = cv1_gate(x3, gate3, p["cv1_w"], p["cv1_b"], tn)

    # Bottleneck(c, c, shortcut=False) + cv2, fully fused (z never hits HBM)
    out3 = bottleneck_cv2(y0, y1, p["m0_w1"], p["m0_b1"], p["m0_w2"], p["m0_b2"],
                          p["col_masks"], p["cv2_wy0"], p["cv2_wy1"],
                          p["cv2_wz"], p["cv2_b"], W)
    return out3.reshape(B, out3.shape[1], H, W)


# --------------------------------------------------------------------------
# Deterministic parameter construction (synthetic init, BN folded, bf16 weights)
# --------------------------------------------------------------------------
def _conv_weight(key, cout, cin, kh, kw):
    fan_in = cin * kh * kw
    bound = 1.0 / np.sqrt(fan_in)
    return jax.random.uniform(key, (cout, cin, kh, kw), jnp.float32, -bound, bound)


def _bn(key, cout, eps=1e-5):
    k1, k2 = jax.random.split(key)
    gamma = jax.random.uniform(k1, (cout,), jnp.float32, 0.8, 1.2)
    beta = 0.1 * jax.random.normal(k2, (cout,), jnp.float32)
    mean = jnp.zeros((cout,), jnp.float32)
    var = jnp.ones((cout,), jnp.float32)
    scale = gamma / jnp.sqrt(var + eps)
    bias = beta - mean * scale
    return scale, bias


def _fuse_pw(wkey, bnkey, cout, cin):
    """1x1 conv + BN folded; channels-first weight (Cout, Cin), bf16."""
    w = _conv_weight(wkey, cout, cin, 1, 1)
    scale, bias = _bn(bnkey, cout)
    w2d = w[:, :, 0, 0] * scale[:, None]
    return w2d.astype(jnp.bfloat16), bias[:, None].astype(jnp.float32)


def _fuse_3x3(wkey, bnkey, cout, cin):
    """3x3 conv + BN folded; im2col-flat weight (Cout, 9*Cin), column k*Cin+i
    holds tap k=(dy+1)*3+(dx+1), channel i."""
    w = _conv_weight(wkey, cout, cin, 3, 3)
    scale, bias = _bn(bnkey, cout)
    w = w * scale[:, None, None, None]
    w_flat = jnp.transpose(w, (0, 2, 3, 1)).reshape(cout, 9 * cin)
    return w_flat.astype(jnp.bfloat16), bias[:, None].astype(jnp.float32)


def _band_matrix(k3, size):
    # (band @ v)[i] = k0*v[i-1] + k1*v[i] + k2*v[i+1] with zero padding.
    m = jnp.zeros((size, size), jnp.float32)
    i = jnp.arange(size)
    m = m.at[i, i].set(k3[1])
    m = m.at[i[1:], i[1:] - 1].set(k3[0])
    m = m.at[i[:-1], i[:-1] + 1].set(k3[2])
    return m


def _mca_gate_params(key, size):
    k1, k2 = jax.random.split(key)
    kconv = _conv_weight(k1, 1, 1, 1, 3).reshape(3)          # Conv2d(1,1,(1,3))
    wgt = jax.random.uniform(k2, (2,), jnp.float32)          # torch.rand(2)
    ca = 0.5 + jax.nn.sigmoid(wgt[0])                        # coef for avg pool
    cs = 0.5 + jax.nn.sigmoid(wgt[1])                        # coef for std pool
    band = _band_matrix(kconv, size)
    return ca * band, cs * band


def _col_masks(H, W):
    """(2, H*W) 0/1 masks: row 0 -> dx=-1 valid (w>=1), row 1 -> dx=+1 valid."""
    w_idx = np.tile(np.arange(W), H)
    left = (w_idx >= 1).astype(np.float32)
    right = (w_idx <= W - 2).astype(np.float32)
    return jnp.asarray(np.stack([left, right]))


def init_params(key, c1, c2, H, W, n=1, e=0.5):
    c = int(c2 * e)
    ks = jax.random.split(key, 10)
    bha, bhs = _mca_gate_params(ks[0], H)                    # h_cw gate (MCAGate(3))
    bwa, bws = _mca_gate_params(ks[1], W)                    # w_hc gate (MCAGate(3))
    cv1_w, cv1_b = _fuse_pw(ks[2], ks[3], 2 * c, c1)
    m0_w1, m0_b1 = _fuse_3x3(ks[4], ks[5], c, c)
    m0_w2, m0_b2 = _fuse_3x3(ks[6], ks[7], c, c)
    cv2_w, cv2_b = _fuse_pw(ks[8], ks[9], c2, (2 + n) * c)
    return dict(bha=bha, bhs=bhs, bwa_t=bwa.T, bws_t=bws.T,
                cv1_w=cv1_w, cv1_b=cv1_b,
                m0_w1=m0_w1, m0_b1=m0_b1, m0_w2=m0_w2, m0_b2=m0_b2,
                cv2_wy0=cv2_w[:, :c], cv2_wy1=cv2_w[:, c:2 * c],
                cv2_wz=cv2_w[:, 2 * c:], cv2_b=cv2_b,
                col_masks=_col_masks(H, W))


# --------------------------------------------------------------------------
# Pure-JAX reference (for sanity checking the Pallas kernels)
# --------------------------------------------------------------------------
def _silu(x):
    return x * jax.nn.sigmoid(x)


def _ref_forward(x, p):
    B, C1, H, W = x.shape
    # MCA gate
    xh = jnp.transpose(x, (0, 2, 1, 3)).reshape(B, H, -1)
    g_h = jax.nn.sigmoid(xh.mean(-1) @ p["bha"].T
                         + jnp.std(xh, axis=-1, ddof=1) @ p["bhs"].T)      # (B, H)
    xw = jnp.transpose(x, (0, 3, 2, 1)).reshape(B, W, -1)
    g_w = jax.nn.sigmoid(xw.mean(-1) @ p["bwa_t"]
                         + jnp.std(xw, axis=-1, ddof=1) @ p["bws_t"])      # (B, W)
    xg = 0.5 * x * (g_h[:, None, :, None] + g_w[:, None, None, :])

    # cv1
    w1 = p["cv1_w"].astype(jnp.float32)
    y = _silu(jnp.einsum("oc,bchw->bohw", w1, xg)
              + p["cv1_b"][:, 0][None, :, None, None])
    c = y.shape[1] // 2
    y0, y1 = y[:, :c], y[:, c:]

    # bottleneck 3x3 convs (reconstruct OIHW from the im2col-flat weight)
    def conv3(z, wflat, b):
        co = wflat.shape[0]
        ci = wflat.shape[1] // 9
        w = jnp.transpose(wflat.astype(jnp.float32).reshape(co, 3, 3, ci),
                          (0, 3, 1, 2))
        o = jax.lax.conv_general_dilated(
            z, w, (1, 1), "SAME", dimension_numbers=("NCHW", "OIHW", "NCHW"))
        return _silu(o + b[:, 0][None, :, None, None])

    z = conv3(y1, p["m0_w1"], p["m0_b1"])
    z = conv3(z, p["m0_w2"], p["m0_b2"])

    # cv2 (== cv2 applied to concat([y0, y1, z], axis=1))
    o = (jnp.einsum("oc,bchw->bohw", p["cv2_wy0"].astype(jnp.float32), y0)
         + jnp.einsum("oc,bchw->bohw", p["cv2_wy1"].astype(jnp.float32), y1)
         + jnp.einsum("oc,bchw->bohw", p["cv2_wz"].astype(jnp.float32), z)
         + p["cv2_b"][:, 0][None, :, None, None])
    return _silu(o)


# --------------------------------------------------------------------------
if __name__ == "__main__":
    B, C1, C2, H, W = 2, 16, 16, 16, 16
    key = jax.random.PRNGKey(0)
    kx, kp = jax.random.split(key)

    params = init_params(kp, C1, C2, H, W, n=1, e=0.5)
    x = jax.random.normal(kx, (B, C1, H, W), jnp.float32)

    out = jax.jit(c2f_with_mca_forward)(x, params)
    out = jax.block_until_ready(out)
    assert out.shape == (B, C2, H, W)

    ref = _ref_forward(x, params)
    np.testing.assert_allclose(np.asarray(out), np.asarray(ref), rtol=2e-2, atol=2e-2)

    print("KERNEL_OK")
</pallas_src>

<mosaic_0001>
module attributes {stable_mosaic.version = 11 : i64} {
  func.func @_mca_gate_kernel(%arg0: i32, %arg1: memref<1x16x16x16xf32, #tpu.memory_space<vmem>>, %arg2: memref<16x16xf32, #tpu.memory_space<vmem>>, %arg3: memref<16x16xf32, #tpu.memory_space<vmem>>, %arg4: memref<16x16xf32, #tpu.memory_space<vmem>>, %arg5: memref<16x16xf32, #tpu.memory_space<vmem>>, %arg6: memref<1x16x16xf32, #tpu.memory_space<vmem>>) attributes {dimension_semantics = [#tpu.dimension_semantics<parallel>], iteration_bounds = array<i64: 2>, scalar_prefetch = 0 : i64, scratch_operands = 0 : i64, tpu.core_type = #tpu.core_type<tc>, window_params = [{transform_indices = @transform_0, window_bounds = array<i64: 1, 16, 16, 16>}, {pipeline_mode = #tpu.pipeline_mode<synchronous>, transform_indices = @transform_1, window_bounds = array<i64: 16, 16>}, {pipeline_mode = #tpu.pipeline_mode<synchronous>, transform_indices = @transform_2, window_bounds = array<i64: 16, 16>}, {pipeline_mode = #tpu.pipeline_mode<synchronous>, transform_indices = @transform_3, window_bounds = array<i64: 16, 16>}, {pipeline_mode = #tpu.pipeline_mode<synchronous>, transform_indices = @transform_4, window_bounds = array<i64: 16, 16>}, {transform_indices = @transform_5, window_bounds = array<i64: 1, 16, 16>}]} {
    %c0 = arith.constant 0 : index
    %c0_0 = arith.constant 0 : index
    %c0_1 = arith.constant 0 : index
    %c0_2 = arith.constant 0 : index
    %0 = vector.load %arg1[%c0, %c0_0, %c0_1, %c0_2] : memref<1x16x16x16xf32, #tpu.memory_space<vmem>>, vector<1x16x16x16xf32>
    %1 = vector.shape_cast %0 : vector<1x16x16x16xf32> to vector<16x16x16xf32>
    %cst = arith.constant dense<0.000000e+00> : vector<16x16xf32>
    %2 = vector.multi_reduction <add>, %1, %cst [0] : vector<16x16x16xf32> to vector<16x16xf32>
    %3 = arith.mulf %1, %1 : vector<16x16x16xf32>
    %cst_3 = arith.constant dense<0.000000e+00> : vector<16x16xf32>
    %4 = vector.multi_reduction <add>, %3, %cst_3 [0] : vector<16x16x16xf32> to vector<16x16xf32>
    %cst_4 = arith.constant dense<0.000000e+00> : vector<16xf32>
    %5 = vector.multi_reduction <add>, %2, %cst_4 [1] : vector<16x16xf32> to vector<16xf32>
    %6 = vector.shape_cast %5 : vector<16xf32> to vector<16x1xf32>
    %cst_5 = arith.constant dense<0.000000e+00> : vector<16xf32>
    %7 = vector.multi_reduction <add>, %4, %cst_5 [1] : vector<16x16xf32> to vector<16xf32>
    %8 = vector.shape_cast %7 : vector<16xf32> to vector<16x1xf32>
    %cst_6 = arith.constant 2.560000e+02 : f32
    %9 = vector.broadcast %cst_6 : f32 to vector<16x1xf32>
    %10 = arith.divf %6, %9 : vector<16x1xf32>
    %cst_7 = arith.constant 2.560000e+02 : f32
    %11 = vector.broadcast %cst_7 : f32 to vector<16x1xf32>
    %12 = arith.mulf %11, %10 : vector<16x1xf32>
    %13 = arith.mulf %12, %10 : vector<16x1xf32>
    %14 = arith.subf %8, %13 : vector<16x1xf32>
    %cst_8 = arith.constant 0.000000e+00 : f32
    %15 = vector.broadcast %cst_8 : f32 to vector<16x1xf32>
    %16 = arith.maximumf %14, %15 : vector<16x1xf32>
    %cst_9 = arith.constant 2.550000e+02 : f32
    %17 = vector.broadcast %cst_9 : f32 to vector<16x1xf32>
    %18 = arith.divf %16, %17 : vector<16x1xf32>
    %19 = math.sqrt %18 : vector<16x1xf32>
    %cst_10 = arith.constant dense<0.000000e+00> : vector<16xf32>
    %20 = vector.multi_reduction <add>, %2, %cst_10 [0] : vector<16x16xf32> to vector<16xf32>
    %21 = vector.shape_cast %20 : vector<16xf32> to vector<1x16xf32>
    %cst_11 = arith.constant dense<0.000000e+00> : vector<16xf32>
    %22 = vector.multi_reduction <add>, %4, %cst_11 [0] : vector<16x16xf32> to vector<16xf32>
    %23 = vector.shape_cast %22 : vector<16xf32> to vector<1x16xf32>
    %cst_12 = arith.constant 2.560000e+02 : f32
    %24 = vector.broadcast %cst_12 : f32 to vector<1x16xf32>
    %25 = arith.divf %21, %24 : vector<1x16xf32>
    %cst_13 = arith.constant 2.560000e+02 : f32
    %26 = vector.broadcast %cst_13 : f32 to vector<1x16xf32>
    %27 = arith.mulf %26, %25 : vector<1x16xf32>
    %28 = arith.mulf %27, %25 : vector<1x16xf32>
    %29 = arith.subf %23, %28 : vector<1x16xf32>
    %cst_14 = arith.constant 0.000000e+00 : f32
    %30 = vector.broadcast %cst_14 : f32 to vector<1x16xf32>
    %31 = arith.maximumf %29, %30 : vector<1x16xf32>
    %cst_15 = arith.constant 2.550000e+02 : f32
    %32 = vector.broadcast %cst_15 : f32 to vector<1x16xf32>
    %33 = arith.divf %31, %32 : vector<1x16xf32>
    %34 = math.sqrt %33 : vector<1x16xf32>
    %c0_16 = arith.constant 0 : index
    %c0_17 = arith.constant 0 : index
    %35 = vector.load %arg2[%c0_16, %c0_17] : memref<16x16xf32, #tpu.memory_space<vmem>>, vector<16x16xf32>
    %cst_18 = arith.constant dense<0.000000e+00> : vector<16x1xf32>
    %36 = tpu.matmul %35, %10, %cst_18 {dimension_numbers = #tpu.dot_dimension_numbers<[1], [0], [0], [1], [0, 0, 1, 1], [], []>} : vector<16x16xf32>, vector<16x1xf32>, vector<16x1xf32> -> vector<16x1xf32>
    %c0_19 = arith.constant 0 : index
    %c0_20 = arith.constant 0 : index
    %37 = vector.load %arg3[%c0_19, %c0_20] : memref<16x16xf32, #tpu.memory_space<vmem>>, vector<16x16xf32>
    %cst_21 = arith.constant dense<0.000000e+00> : vector<16x1xf32>
    %38 = tpu.matmul %37, %19, %cst_21 {dimension_numbers = #tpu.dot_dimension_numbers<[1], [0], [0], [1], [0, 0, 1, 1], [], []>} : vector<16x16xf32>, vector<16x1xf32>, vector<16x1xf32> -> vector<16x1xf32>
    %39 = arith.addf %36, %38 : vector<16x1xf32>
    %40 = arith.negf %39 : vector<16x1xf32>
    %41 = math.exp %40 : vector<16x1xf32>
    %cst_22 = arith.constant 1.000000e+00 : f32
    %42 = vector.broadcast %cst_22 : f32 to vector<16x1xf32>
    %43 = arith.addf %42, %41 : vector<16x1xf32>
    %44 = arith.divf %42, %43 : vector<16x1xf32>
    %c0_23 = arith.constant 0 : index
    %c0_24 = arith.constant 0 : index
    %45 = vector.load %arg4[%c0_23, %c0_24] : memref<16x16xf32, #tpu.memory_space<vmem>>, vector<16x16xf32>
    %cst_25 = arith.constant dense<0.000000e+00> : vector<1x16xf32>
    %46 = tpu.matmul %25, %45, %cst_25 {dimension_numbers = #tpu.dot_dimension_numbers<[1], [0], [0], [1], [0, 0, 1, 1], [], []>} : vector<1x16xf32>, vector<16x16xf32>, vector<1x16xf32> -> vector<1x16xf32>
    %c0_26 = arith.constant 0 : index
    %c0_27 = arith.constant 0 : index
    %47 = vector.load %arg5[%c0_26, %c0_27] : memref<16x16xf32, #tpu.memory_space<vmem>>, vector<16x16xf32>
    %cst_28 = arith.constant dense<0.000000e+00> : vector<1x16xf32>
    %48 = tpu.matmul %34, %47, %cst_28 {dimension_numbers = #tpu.dot_dimension_numbers<[1], [0], [0], [1], [0, 0, 1, 1], [], []>} : vector<1x16xf32>, vector<16x16xf32>, vector<1x16xf32> -> vector<1x16xf32>
    %49 = arith.addf %46, %48 : vector<1x16xf32>
    %50 = arith.negf %49 : vector<1x16xf32>
    %51 = math.exp %50 : vector<1x16xf32>
    %cst_29 = arith.constant 1.000000e+00 : f32
    %52 = vector.broadcast %cst_29 : f32 to vector<1x16xf32>
    %53 = arith.addf %52, %51 : vector<1x16xf32>
    %54 = arith.divf %52, %53 : vector<1x16xf32>
    %55 = vector.broadcast %44 : vector<16x1xf32> to vector<16x16xf32>
    %56 = vector.broadcast %54 : vector<1x16xf32> to vector<16x16xf32>
    %57 = arith.addf %55, %56 : vector<16x16xf32>
    %cst_30 = arith.constant 5.000000e-01 : f32
    %58 = vector.broadcast %cst_30 : f32 to vector<16x16xf32>
    %59 = arith.mulf %58, %57 : vector<16x16xf32>
    %c0_31 = arith.constant 0 : index
    %c0_32 = arith.constant 0 : index
    %c0_33 = arith.constant 0 : index
    %60 = vector.load %arg6[%c0_31, %c0_32, %c0_33] : memref<1x16x16xf32, #tpu.memory_space<vmem>>, vector<1x16x16xf32>
    %61 = vector.shape_cast %60 : vector<1x16x16xf32> to vector<16x16xf32>
    %62 = vector.shape_cast %59 : vector<16x16xf32> to vector<1x16x16xf32>
    tpu.vector_store %arg6[%c0_31, %c0_32, %c0_33], %62 {strides = array<i32>} : memref<1x16x16xf32, #tpu.memory_space<vmem>>, vector<1x16x16xf32>,
    return
  }
  func.func @transform_0(%arg0: i32) -> (i32, i32, i32, i32) {
    %c0_i32 = arith.constant 0 : i32
    %c0_i32_0 = arith.constant 0 : i32
    %c0_i32_1 = arith.constant 0 : i32
    %c0_i32_2 = arith.constant 0 : i32
    return %arg0, %c0_i32, %c0_i32_0, %c0_i32_1 : i32, i32, i32, i32
  }
  func.func @transform_1(%arg0: i32) -> (i32, i32) {
    %c0_i32 = arith.constant 0 : i32
    %c0_i32_0 = arith.constant 0 : i32
    %c0_i32_1 = arith.constant 0 : i32
    return %c0_i32, %c0_i32_0 : i32, i32
  }
  func.func @transform_2(%arg0: i32) -> (i32, i32) {
    %c0_i32 = arith.constant 0 : i32
    %c0_i32_0 = arith.constant 0 : i32
    %c0_i32_1 = arith.constant 0 : i32
    return %c0_i32, %c0_i32_0 : i32, i32
  }
  func.func @transform_3(%arg0: i32) -> (i32, i32) {
    %c0_i32 = arith.constant 0 : i32
    %c0_i32_0 = arith.constant 0 : i32
    %c0_i32_1 = arith.constant 0 : i32
    return %c0_i32, %c0_i32_0 : i32, i32
  }
  func.func @transform_4(%arg0: i32) -> (i32, i32) {
    %c0_i32 = arith.constant 0 : i32
    %c0_i32_0 = arith.constant 0 : i32
    %c0_i32_1 = arith.constant 0 : i32
    return %c0_i32, %c0_i32_0 : i32, i32
  }
  func.func @transform_5(%arg0: i32) -> (i32, i32, i32) {
    %c0_i32 = arith.constant 0 : i32
    %c0_i32_0 = arith.constant 0 : i32
    %c0_i32_1 = arith.constant 0 : i32
    return %arg0, %c0_i32, %c0_i32_0 : i32, i32, i32
  }
}

module attributes {stable_mosaic.version = 11 : i64} {
  func.func @_cv1_gate_kernel(%arg0: i32, %arg1: i32, %arg2: memref<1x16x256xf32, #tpu.memory_space<vmem>>, %arg3: memref<1x1x256xf32, #tpu.memory_space<vmem>>, %arg4: memref<16x16xbf16, #tpu.memory_space<vmem>>, %arg5: memref<16x1xf32, #tpu.memory_space<vmem>>, %arg6: memref<1x8x256xbf16, #tpu.memory_space<vmem>>, %arg7: memref<1x8x256xbf16, #tpu.memory_space<vmem>>) attributes {dimension_semantics = [#tpu.dimension_semantics<parallel>, #tpu.dimension_semantics<parallel>], iteration_bounds = array<i64: 2, 1>, scalar_prefetch = 0 : i64, scratch_operands = 0 : i64, tpu.core_type = #tpu.core_type<tc>, window_params = [{transform_indices = @transform_0, window_bounds = array<i64: 1, 16, 256>}, {transform_indices = @transform_1, window_bounds = array<i64: 1, 1, 256>}, {pipeline_mode = #tpu.pipeline_mode<synchronous>, transform_indices = @transform_2, window_bounds = array<i64: 16, 16>}, {pipeline_mode = #tpu.pipeline_mode<synchronous>, transform_indices = @transform_3, window_bounds = array<i64: 16, 1>}, {transform_indices = @transform_4, window_bounds = array<i64: 1, 8, 256>}, {transform_indices = @transform_5, window_bounds = array<i64: 1, 8, 256>}]} {
    %c0 = arith.constant 0 : index
    %c0_0 = arith.constant 0 : index
    %0 = vector.load %arg4[%c0, %c0_0] : memref<16x16xbf16, #tpu.memory_space<vmem>>, vector<16x16xbf16>
    %c0_1 = arith.constant 0 : index
    %c0_2 = arith.constant 0 : index
    %c0_3 = arith.constant 0 : index
    %1 = vector.load %arg2[%c0_1, %c0_2, %c0_3] : memref<1x16x256xf32, #tpu.memory_space<vmem>>, vector<1x16x256xf32>
    %2 = vector.shape_cast %1 : vector<1x16x256xf32> to vector<16x256xf32>
    %3 = arith.truncf %2 : vector<16x256xf32> to vector<16x256xbf16>
    %cst = arith.constant dense<0.000000e+00> : vector<16x256xf32>
    %4 = tpu.matmul %0, %3, %cst {dimension_numbers = #tpu.dot_dimension_numbers<[1], [0], [0], [1], [0, 0, 1, 1], [], []>} : vector<16x16xbf16>, vector<16x256xbf16>, vector<16x256xf32> -> vector<16x256xf32>
    %c0_4 = arith.constant 0 : index
    %c0_5 = arith.constant 0 : index
    %c0_6 = arith.constant 0 : index
    %5 = vector.load %arg3[%c0_4, %c0_5, %c0_6] : memref<1x1x256xf32, #tpu.memory_space<vmem>>, vector<1x1x256xf32>
    %6 = vector.shape_cast %5 : vector<1x1x256xf32> to vector<1x256xf32>
    %7 = vector.broadcast %6 : vector<1x256xf32> to vector<16x256xf32>
    %8 = arith.mulf %4, %7 : vector<16x256xf32>
    %c0_7 = arith.constant 0 : index
    %c0_8 = arith.constant 0 : index
    %9 = vector.load %arg5[%c0_7, %c0_8] : memref<16x1xf32, #tpu.memory_space<vmem>>, vector<16x1xf32>
    %10 = vector.broadcast %9 : vector<16x1xf32> to vector<16x256xf32>
    %11 = arith.addf %8, %10 : vector<16x256xf32>
    %12 = arith.negf %11 : vector<16x256xf32>
    %13 = math.exp %12 : vector<16x256xf32>
    %cst_9 = arith.constant 1.000000e+00 : f32
    %14 = vector.broadcast %cst_9 : f32 to vector<16x256xf32>
    %15 = arith.addf %14, %13 : vector<16x256xf32>
    %16 = arith.divf %14, %15 : vector<16x256xf32>
    %17 = arith.mulf %11, %16 : vector<16x256xf32>
    %18 = vector.extract_strided_slice %17 {offsets = [0, 0], sizes = [8, 256], strides = [1, 1]} : vector<16x256xf32> to vector<8x256xf32>
    %19 = arith.truncf %18 : vector<8x256xf32> to vector<8x256xbf16>
    %c0_10 = arith.constant 0 : index
    %c0_11 = arith.constant 0 : index
    %c0_12 = arith.constant 0 : index
    %20 = vector.load %arg6[%c0_10, %c0_11, %c0_12] : memref<1x8x256xbf16, #tpu.memory_space<vmem>>, vector<1x8x256xbf16>
    %21 = vector.shape_cast %20 : vector<1x8x256xbf16> to vector<8x256xbf16>
    %22 = vector.shape_cast %19 : vector<8x256xbf16> to vector<1x8x256xbf16>
    tpu.vector_store %arg6[%c0_10, %c0_11, %c0_12], %22 {strides = array<i32>} : memref<1x8x256xbf16, #tpu.memory_space<vmem>>, vector<1x8x256xbf16>,
    %23 = vector.extract_strided_slice %17 {offsets = [8, 0], sizes = [8, 256], strides = [1, 1]} : vector<16x256xf32> to vector<8x256xf32>
    %24 = arith.truncf %23 : vector<8x256xf32> to vector<8x256xbf16>
    %c0_13 = arith.constant 0 : index
    %c0_14 = arith.constant 0 : index
    %c0_15 = arith.constant 0 : index
    %25 = vector.load %arg7[%c0_13, %c0_14, %c0_15] : memref<1x8x256xbf16, #tpu.memory_space<vmem>>, vector<1x8x256xbf16>
    %26 = vector.shape_cast %25 : vector<1x8x256xbf16> to vector<8x256xbf16>
    %27 = vector.shape_cast %24 : vector<8x256xbf16> to vector<1x8x256xbf16>
    tpu.vector_store %arg7[%c0_13, %c0_14, %c0_15], %27 {strides = array<i32>} : memref<1x8x256xbf16, #tpu.memory_space<vmem>>, vector<1x8x256xbf16>,
    return
  }
  func.func @transform_0(%arg0: i32, %arg1: i32) -> (i32, i32, i32) {
    %c0_i32 = arith.constant 0 : i32
    %c0_i32_0 = arith.constant 0 : i32
    return %arg0, %c0_i32, %arg1 : i32, i32, i32
  }
  func.func @transform_1(%arg0: i32, %arg1: i32) -> (i32, i32, i32) {
    %c0_i32 = arith.constant 0 : i32
    %c0_i32_0 = arith.constant 0 : i32
    return %arg0, %c0_i32, %arg1 : i32, i32, i32
  }
  func.func @transform_2(%arg0: i32, %arg1: i32) -> (i32, i32) {
    %c0_i32 = arith.constant 0 : i32
    %c0_i32_0 = arith.constant 0 : i32
    %c0_i32_1 = arith.constant 0 : i32
    return %c0_i32, %c0_i32_0 : i32, i32
  }
  func.func @transform_3(%arg0: i32, %arg1: i32) -> (i32, i32) {
    %c0_i32 = arith.constant 0 : i32
    %c0_i32_0 = arith.constant 0 : i32
    %c0_i32_1 = arith.constant 0 : i32
    return %c0_i32, %c0_i32_0 : i32, i32
  }
  func.func @transform_4(%arg0: i32, %arg1: i32) -> (i32, i32, i32) {
    %c0_i32 = arith.constant 0 : i32
    %c0_i32_0 = arith.constant 0 : i32
    return %arg0, %c0_i32, %arg1 : i32, i32, i32
  }
  func.func @transform_5(%arg0: i32, %arg1: i32) -> (i32, i32, i32) {
    %c0_i32 = arith.constant 0 : i32
    %c0_i32_0 = arith.constant 0 : i32
    return %arg0, %c0_i32, %arg1 : i32, i32, i32
  }
}

module attributes {stable_mosaic.version = 11 : i64} {
  func.func @_bottleneck_cv2_kernel(%arg0: i32, %arg1: memref<1x8x256xbf16, #tpu.memory_space<vmem>>, %arg2: memref<1x8x256xbf16, #tpu.memory_space<vmem>>, %arg3: memref<8x72xbf16, #tpu.memory_space<vmem>>, %arg4: memref<8x1xf32, #tpu.memory_space<vmem>>, %arg5: memref<8x72xbf16, #tpu.memory_space<vmem>>, %arg6: memref<8x1xf32, #tpu.memory_space<vmem>>, %arg7: memref<2x256xf32, #tpu.memory_space<vmem>>, %arg8: memref<16x8xbf16, #tpu.memory_space<vmem>>, %arg9: memref<16x8xbf16, #tpu.memory_space<vmem>>, %arg10: memref<16x8xbf16, #tpu.memory_space<vmem>>, %arg11: memref<16x1xf32, #tpu.memory_space<vmem>>, %arg12: memref<1x16x256xf32, #tpu.memory_space<vmem>>, %arg13: memref<8x290xf32, #tpu.memory_space<vmem>>, %arg14: memref<72x256xf32, #tpu.memory_space<vmem>>) attributes {dimension_semantics = [#tpu.dimension_semantics<parallel>], iteration_bounds = array<i64: 2>, scalar_prefetch = 0 : i64, scratch_operands = 2 : i64, tpu.core_type = #tpu.core_type<tc>, window_params = [{transform_indices = @transform_0, window_bounds = array<i64: 1, 8, 256>}, {transform_indices = @transform_1, window_bounds = array<i64: 1, 8, 256>}, {pipeline_mode = #tpu.pipeline_mode<synchronous>, transform_indices = @transform_2, window_bounds = array<i64: 8, 72>}, {pipeline_mode = #tpu.pipeline_mode<synchronous>, transform_indices = @transform_3, window_bounds = array<i64: 8, 1>}, {pipeline_mode = #tpu.pipeline_mode<synchronous>, transform_indices = @transform_4, window_bounds = array<i64: 8, 72>}, {pipeline_mode = #tpu.pipeline_mode<synchronous>, transform_indices = @transform_5, window_bounds = array<i64: 8, 1>}, {pipeline_mode = #tpu.pipeline_mode<synchronous>, transform_indices = @transform_6, window_bounds = array<i64: 2, 256>}, {pipeline_mode = #tpu.pipeline_mode<synchronous>, transform_indices = @transform_7, window_bounds = array<i64: 16, 8>}, {pipeline_mode = #tpu.pipeline_mode<synchronous>, transform_indices = @transform_8, window_bounds = array<i64: 16, 8>}, {pipeline_mode = #tpu.pipeline_mode<synchronous>, transform_indices = @transform_9, window_bounds = array<i64: 16, 8>}, {pipeline_mode = #tpu.pipeline_mode<synchronous>, transform_indices = @transform_10, window_bounds = array<i64: 16, 1>}, {transform_indices = @transform_11, window_bounds = array<i64: 1, 16, 256>}]} {
    %cst = arith.constant 0.000000e+00 : f32
    %0 = vector.broadcast %cst : f32 to vector<8x17xf32>
    %c0 = arith.constant 0 : index
    %c0_0 = arith.constant 0 : index
    %1 = vector.load %arg13[%c0, %c0_0] : memref<8x290xf32, #tpu.memory_space<vmem>>, vector<8x17xf32>
    tpu.vector_store %arg13[%c0, %c0_0], %0 {strides = array<i32>} : memref<8x290xf32, #tpu.memory_space<vmem>>, vector<8x17xf32>,
    %c0_1 = arith.constant 0 : index
    %c273 = arith.constant 273 : index
    %2 = vector.load %arg13[%c0_1, %c273] : memref<8x290xf32, #tpu.memory_space<vmem>>, vector<8x17xf32>
    tpu.vector_store %arg13[%c0_1, %c273], %0 {strides = array<i32>} : memref<8x290xf32, #tpu.memory_space<vmem>>, vector<8x17xf32>,
    %c0_2 = arith.constant 0 : index
    %c0_3 = arith.constant 0 : index
    %c0_4 = arith.constant 0 : index
    %3 = vector.load %arg2[%c0_2, %c0_3, %c0_4] : memref<1x8x256xbf16, #tpu.memory_space<vmem>>, vector<1x8x256xbf16>
    %4 = vector.shape_cast %3 : vector<1x8x256xbf16> to vector<8x256xbf16>
    %5 = arith.extf %4 : vector<8x256xbf16> to vector<8x256xf32>
    %c0_5 = arith.constant 0 : index
    %c17 = arith.constant 17 : index
    %6 = vector.load %arg13[%c0_5, %c17] : memref<8x290xf32, #tpu.memory_space<vmem>>, vector<8x256xf32>
    tpu.vector_store %arg13[%c0_5, %c17], %5 {strides = array<i32>} : memref<8x290xf32, #tpu.memory_space<vmem>>, vector<8x256xf32>,
    %c0_6 = arith.constant 0 : index
    %c0_7 = arith.constant 0 : index
    %7 = vector.load %arg13[%c0_6, %c0_7] : memref<8x290xf32, #tpu.memory_space<vmem>>, vector<8x256xf32>
    %c0_8 = arith.constant 0 : index
    %c0_9 = arith.constant 0 : index
    %8 = vector.load %arg7[%c0_8, %c0_9] : memref<2x256xf32, #tpu.memory_space<vmem>>, vector<1x256xf32>
    %9 = vector.shape_cast %8 : vector<1x256xf32> to vector<256xf32>
    %10 = vector.shape_cast %9 : vector<256xf32> to vector<1x256xf32>
    %11 = vector.broadcast %10 : vector<1x256xf32> to vector<8x256xf32>
    %12 = arith.mulf %7, %11 : vector<8x256xf32>
    %c0_10 = arith.constant 0 : index
    %c0_11 = arith.constant 0 : index
    %13 = vector.load %arg14[%c0_10, %c0_11] : memref<72x256xf32, #tpu.memory_space<vmem>>, vector<8x256xf32>
    tpu.vector_store %arg14[%c0_10, %c0_11], %12 {strides = array<i32>} : memref<72x256xf32, #tpu.memory_space<vmem>>, vector<8x256xf32>,
    %c0_12 = arith.constant 0 : index
    %c1 = arith.constant 1 : index
    %14 = vector.load %arg13[%c0_12, %c1] : memref<8x290xf32, #tpu.memory_space<vmem>>, vector<8x256xf32>
    %c8 = arith.constant 8 : index
    %c0_13 = arith.constant 0 : index
    %15 = vector.load %arg14[%c8, %c0_13] : memref<72x256xf32, #tpu.memory_space<vmem>>, vector<8x256xf32>
    tpu.vector_store %arg14[%c8, %c0_13], %14 {strides = array<i32>} : memref<72x256xf32, #tpu.memory_space<vmem>>, vector<8x256xf32>,
    %c0_14 = arith.constant 0 : index
    %c2 = arith.constant 2 : index
    %16 = vector.load %arg13[%c0_14, %c2] : memref<8x290xf32, #tpu.memory_space<vmem>>, vector<8x256xf32>
    %c1_15 = arith.constant 1 : index
    %c0_16 = arith.constant 0 : index
    %17 = vector.load %arg7[%c1_15, %c0_16] : memref<2x256xf32, #tpu.memory_space<vmem>>, vector<1x256xf32>
    %18 = vector.shape_cast %17 : vector<1x256xf32> to vector<256xf32>
    %19 = vector.shape_cast %18 : vector<256xf32> to vector<1x256xf32>
    %20 = vector.broadcast %19 : vector<1x256xf32> to vector<8x256xf32>
    %21 = arith.mulf %16, %20 : vector<8x256xf32>
    %c16 = arith.constant 16 : index
    %c0_17 = arith.constant 0 : index
    %22 = vector.load %arg14[%c16, %c0_17] : memref<72x256xf32, #tpu.memory_space<vmem>>, vector<8x256xf32>
    tpu.vector_store %arg14[%c16, %c0_17], %21 {strides = array<i32>} : memref<72x256xf32, #tpu.memory_space<vmem>>, vector<8x256xf32>,
    %c0_18 = arith.constant 0 : index
    %c16_19 = arith.constant 16 : index
    %23 = vector.load %arg13[%c0_18, %c16_19] : memref<8x290xf32, #tpu.memory_space<vmem>>, vector<8x256xf32>
    %c0_20 = arith.constant 0 : index
    %c0_21 = arith.constant 0 : index
    %24 = vector.load %arg7[%c0_20, %c0_21] : memref<2x256xf32, #tpu.memory_space<vmem>>, vector<1x256xf32>
    %25 = vector.shape_cast %24 : vector<1x256xf32> to vector<256xf32>
    %26 = vector.shape_cast %25 : vector<256xf32> to vector<1x256xf32>
    %27 = vector.broadcast %26 : vector<1x256xf32> to vector<8x256xf32>
    %28 = arith.mulf %23, %27 : vector<8x256xf32>
    %c24 = arith.constant 24 : index
    %c0_22 = arith.constant 0 : index
    %29 = vector.load %arg14[%c24, %c0_22] : memref<72x256xf32, #tpu.memory_space<vmem>>, vector<8x256xf32>
    tpu.vector_store %arg14[%c24, %c0_22], %28 {strides = array<i32>} : memref<72x256xf32, #tpu.memory_space<vmem>>, vector<8x256xf32>,
    %c0_23 = arith.constant 0 : index
    %c17_24 = arith.constant 17 : index
    %30 = vector.load %arg13[%c0_23, %c17_24] : memref<8x290xf32, #tpu.memory_space<vmem>>, vector<8x256xf32>
    %c32 = arith.constant 32 : index
    %c0_25 = arith.constant 0 : index
    %31 = vector.load %arg14[%c32, %c0_25] : memref<72x256xf32, #tpu.memory_space<vmem>>, vector<8x256xf32>
    tpu.vector_store %arg14[%c32, %c0_25], %30 {strides = array<i32>} : memref<72x256xf32, #tpu.memory_space<vmem>>, vector<8x256xf32>,
    %c0_26 = arith.constant 0 : index
    %c18 = arith.constant 18 : index
    %32 = vector.load %arg13[%c0_26, %c18] : memref<8x290xf32, #tpu.memory_space<vmem>>, vector<8x256xf32>
    %c1_27 = arith.constant 1 : index
    %c0_28 = arith.constant 0 : index
    %33 = vector.load %arg7[%c1_27, %c0_28] : memref<2x256xf32, #tpu.memory_space<vmem>>, vector<1x256xf32>
    %34 = vector.shape_cast %33 : vector<1x256xf32> to vector<256xf32>
    %35 = vector.shape_cast %34 : vector<256xf32> to vector<1x256xf32>
    %36 = vector.broadcast %35 : vector<1x256xf32> to vector<8x256xf32>
    %37 = arith.mulf %32, %36 : vector<8x256xf32>
    %c40 = arith.constant 40 : index
    %c0_29 = arith.constant 0 : index
    %38 = vector.load %arg14[%c40, %c0_29] : memref<72x256xf32, #tpu.memory_space<vmem>>, vector<8x256xf32>
    tpu.vector_store %arg14[%c40, %c0_29], %37 {strides = array<i32>} : memref<72x256xf32, #tpu.memory_space<vmem>>, vector<8x256xf32>,
    %c0_30 = arith.constant 0 : index
    %c32_31 = arith.constant 32 : index
    %39 = vector.load %arg13[%c0_30, %c32_31] : memref<8x290xf32, #tpu.memory_space<vmem>>, vector<8x256xf32>
    %c0_32 = arith.constant 0 : index
    %c0_33 = arith.constant 0 : index
    %40 = vector.load %arg7[%c0_32, %c0_33] : memref<2x256xf32, #tpu.memory_space<vmem>>, vector<1x256xf32>
    %41 = vector.shape_cast %40 : vector<1x256xf32> to vector<256xf32>
    %42 = vector.shape_cast %41 : vector<256xf32> to vector<1x256xf32>
    %43 = vector.broadcast %42 : vector<1x256xf32> to vector<8x256xf32>
    %44 = arith.mulf %39, %43 : vector<8x256xf32>
    %c48 = arith.constant 48 : index
    %c0_34 = arith.constant 0 : index
    %45 = vector.load %arg14[%c48, %c0_34] : memref<72x256xf32, #tpu.memory_space<vmem>>, vector<8x256xf32>
    tpu.vector_store %arg14[%c48, %c0_34], %44 {strides = array<i32>} : memref<72x256xf32, #tpu.memory_space<vmem>>, vector<8x256xf32>,
    %c0_35 = arith.constant 0 : index
    %c33 = arith.constant 33 : index
    %46 = vector.load %arg13[%c0_35, %c33] : memref<8x290xf32, #tpu.memory_space<vmem>>, vector<8x256xf32>
    %c56 = arith.constant 56 : index
    %c0_36 = arith.constant 0 : index
    %47 = vector.load %arg14[%c56, %c0_36] : memref<72x256xf32, #tpu.memory_space<vmem>>, vector<8x256xf32>
    tpu.vector_store %arg14[%c56, %c0_36], %46 {strides = array<i32>} : memref<72x256xf32, #tpu.memory_space<vmem>>, vector<8x256xf32>,
    %c0_37 = arith.constant 0 : index
    %c34 = arith.constant 34 : index
    %48 = vector.load %arg13[%c0_37, %c34] : memref<8x290xf32, #tpu.memory_space<vmem>>, vector<8x256xf32>
    %c1_38 = arith.constant 1 : index
    %c0_39 = arith.constant 0 : index
    %49 = vector.load %arg7[%c1_38, %c0_39] : memref<2x256xf32, #tpu.memory_space<vmem>>, vector<1x256xf32>
    %50 = vector.shape_cast %49 : vector<1x256xf32> to vector<256xf32>
    %51 = vector.shape_cast %50 : vector<256xf32> to vector<1x256xf32>
    %52 = vector.broadcast %51 : vector<1x256xf32> to vector<8x256xf32>
    %53 = arith.mulf %48, %52 : vector<8x256xf32>
    %c64 = arith.constant 64 : index
    %c0_40 = arith.constant 0 : index
    %54 = vector.load %arg14[%c64, %c0_40] : memref<72x256xf32, #tpu.memory_space<vmem>>, vector<8x256xf32>
    tpu.vector_store %arg14[%c64, %c0_40], %53 {strides = array<i32>} : memref<72x256xf32, #tpu.memory_space<vmem>>, vector<8x256xf32>,
    %c0_41 = arith.constant 0 : index
    %c0_42 = arith.constant 0 : index
    %55 = vector.load %arg3[%c0_41, %c0_42] : memref<8x72xbf16, #tpu.memory_space<vmem>>, vector<8x72xbf16>
    %c0_43 = arith.constant 0 : index
    %c0_44 = arith.constant 0 : index
    %56 = vector.load %arg14[%c0_43, %c0_44] : memref<72x256xf32, #tpu.memory_space<vmem>>, vector<72x256xf32>
    %57 = arith.truncf %56 : vector<72x256xf32> to vector<72x256xbf16>
    %cst_45 = arith.constant dense<0.000000e+00> : vector<8x256xf32>
    %58 = tpu.matmul %55, %57, %cst_45 {dimension_numbers = #tpu.dot_dimension_numbers<[1], [0], [0], [1], [0, 0, 1, 1], [], []>} : vector<8x72xbf16>, vector<72x256xbf16>, vector<8x256xf32> -> vector<8x256xf32>
    %c0_46 = arith.constant 0 : index
    %c0_47 = arith.constant 0 : index
    %59 = vector.load %arg4[%c0_46, %c0_47] : memref<8x1xf32, #tpu.memory_space<vmem>>, vector<8x1xf32>
    %60 = vector.broadcast %59 : vector<8x1xf32> to vector<8x256xf32>
    %61 = arith.addf %58, %60 : vector<8x256xf32>
    %62 = arith.negf %61 : vector<8x256xf32>
    %63 = math.exp %62 : vector<8x256xf32>
    %cst_48 = arith.constant 1.000000e+00 : f32
    %64 = vector.broadcast %cst_48 : f32 to vector<8x256xf32>
    %65 = arith.addf %64, %63 : vector<8x256xf32>
    %66 = arith.divf %64, %65 : vector<8x256xf32>
    %67 = arith.mulf %61, %66 : vector<8x256xf32>
    %c0_49 = arith.constant 0 : index
    %c17_50 = arith.constant 17 : index
    %68 = vector.load %arg13[%c0_49, %c17_50] : memref<8x290xf32, #tpu.memory_space<vmem>>, vector<8x256xf32>
    tpu.vector_store %arg13[%c0_49, %c17_50], %67 {strides = array<i32>} : memref<8x290xf32, #tpu.memory_space<vmem>>, vector<8x256xf32>,
    %c0_51 = arith.constant 0 : index
    %c0_52 = arith.constant 0 : index
    %69 = vector.load %arg13[%c0_51, %c0_52] : memref<8x290xf32, #tpu.memory_space<vmem>>, vector<8x256xf32>
    %c0_53 = arith.constant 0 : index
    %c0_54 = arith.constant 0 : index
    %70 = vector.load %arg7[%c0_53, %c0_54] : memref<2x256xf32, #tpu.memory_space<vmem>>, vector<1x256xf32>
    %71 = vector.shape_cast %70 : vector<1x256xf32> to vector<256xf32>
    %72 = vector.shape_cast %71 : vector<256xf32> to vector<1x256xf32>
    %73 = vector.broadcast %72 : vector<1x256xf32> to vector<8x256xf32>
    %74 = arith.mulf %69, %73 : vector<8x256xf32>
    %c0_55 = arith.constant 0 : index
    %c0_56 = arith.constant 0 : index
    %75 = vector.load %arg14[%c0_55, %c0_56] : memref<72x256xf32, #tpu.memory_space<vmem>>, vector<8x256xf32>
    tpu.vector_store %arg14[%c0_55, %c0_56], %74 {strides = array<i32>} : memref<72x256xf32, #tpu.memory_space<vmem>>, vector<8x256xf32>,
    %c0_57 = arith.constant 0 : index
    %c1_58 = arith.constant 1 : index
    %76 = vector.load %arg13[%c0_57, %c1_58] : memref<8x290xf32, #tpu.memory_space<vmem>>, vector<8x256xf32>
    %c8_59 = arith.constant 8 : index
    %c0_60 = arith.constant 0 : index
    %77 = vector.load %arg14[%c8_59, %c0_60] : memref<72x256xf32, #tpu.memory_space<vmem>>, vector<8x256xf32>
    tpu.vector_store %arg14[%c8_59, %c0_60], %76 {strides = array<i32>} : memref<72x256xf32, #tpu.memory_space<vmem>>, vector<8x256xf32>,
    %c0_61 = arith.constant 0 : index
    %c2_62 = arith.constant 2 : index
    %78 = vector.load %arg13[%c0_61, %c2_62] : memref<8x290xf32, #tpu.memory_space<vmem>>, vector<8x256xf32>
    %c1_63 = arith.constant 1 : index
    %c0_64 = arith.constant 0 : index
    %79 = vector.load %arg7[%c1_63, %c0_64] : memref<2x256xf32, #tpu.memory_space<vmem>>, vector<1x256xf32>
    %80 = vector.shape_cast %79 : vector<1x256xf32> to vector<256xf32>
    %81 = vector.shape_cast %80 : vector<256xf32> to vector<1x256xf32>
    %82 = vector.broadcast %81 : vector<1x256xf32> to vector<8x256xf32>
    %83 = arith.mulf %78, %82 : vector<8x256xf32>
    %c16_65 = arith.constant 16 : index
    %c0_66 = arith.constant 0 : index
    %84 = vector.load %arg14[%c16_65, %c0_66] : memref<72x256xf32, #tpu.memory_space<vmem>>, vector<8x256xf32>
    tpu.vector_store %arg14[%c16_65, %c0_66], %83 {strides = array<i32>} : memref<72x256xf32, #tpu.memory_space<vmem>>, vector<8x256xf32>,
    %c0_67 = arith.constant 0 : index
    %c16_68 = arith.constant 16 : index
    %85 = vector.load %arg13[%c0_67, %c16_68] : memref<8x290xf32, #tpu.memory_space<vmem>>, vector<8x256xf32>
    %c0_69 = arith.constant 0 : index
    %c0_70 = arith.constant 0 : index
    %86 = vector.load %arg7[%c0_69, %c0_70] : memref<2x256xf32, #tpu.memory_space<vmem>>, vector<1x256xf32>
    %87 = vector.shape_cast %86 : vector<1x256xf32> to vector<256xf32>
    %88 = vector.shape_cast %87 : vector<256xf32> to vector<1x256xf32>
    %89 = vector.broadcast %88 : vector<1x256xf32> to vector<8x256xf32>
    %90 = arith.mulf %85, %89 : vector<8x256xf32>
    %c24_71 = arith.constant 24 : index
    %c0_72 = arith.constant 0 : index
    %91 = vector.load %arg14[%c24_71, %c0_72] : memref<72x256xf32, #tpu.memory_space<vmem>>, vector<8x256xf32>
    tpu.vector_store %arg14[%c24_71, %c0_72], %90 {strides = array<i32>} : memref<72x256xf32, #tpu.memory_space<vmem>>, vector<8x256xf32>,
    %c0_73 = arith.constant 0 : index
    %c17_74 = arith.constant 17 : index
    %92 = vector.load %arg13[%c0_73, %c17_74] : memref<8x290xf32, #tpu.memory_space<vmem>>, vector<8x256xf32>
    %c32_75 = arith.constant 32 : index
    %c0_76 = arith.constant 0 : index
    %93 = vector.load %arg14[%c32_75, %c0_76] : memref<72x256xf32, #tpu.memory_space<vmem>>, vector<8x256xf32>
    tpu.vector_store %arg14[%c32_75, %c0_76], %92 {strides = array<i32>} : memref<72x256xf32, #tpu.memory_space<vmem>>, vector<8x256xf32>,
    %c0_77 = arith.constant 0 : index
    %c18_78 = arith.constant 18 : index
    %94 = vector.load %arg13[%c0_77, %c18_78] : memref<8x290xf32, #tpu.memory_space<vmem>>, vector<8x256xf32>
    %c1_79 = arith.constant 1 : index
    %c0_80 = arith.constant 0 : index
    %95 = vector.load %arg7[%c1_79, %c0_80] : memref<2x256xf32, #tpu.memory_space<vmem>>, vector<1x256xf32>
    %96 = vector.shape_cast %95 : vector<1x256xf32> to vector<256xf32>
    %97 = vector.shape_cast %96 : vector<256xf32> to vector<1x256xf32>
    %98 = vector.broadcast %97 : vector<1x256xf32> to vector<8x256xf32>
    %99 = arith.mulf %94, %98 : vector<8x256xf32>
    %c40_81 = arith.constant 40 : index
    %c0_82 = arith.constant 0 : index
    %100 = vector.load %arg14[%c40_81, %c0_82] : memref<72x256xf32, #tpu.memory_space<vmem>>, vector<8x256xf32>
    tpu.vector_store %arg14[%c40_81, %c0_82], %99 {strides = array<i32>} : memref<72x256xf32, #tpu.memory_space<vmem>>, vector<8x256xf32>,
    %c0_83 = arith.constant 0 : index
    %c32_84 = arith.constant 32 : index
    %101 = vector.load %arg13[%c0_83, %c32_84] : memref<8x290xf32, #tpu.memory_space<vmem>>, vector<8x256xf32>
    %c0_85 = arith.constant 0 : index
    %c0_86 = arith.constant 0 : index
    %102 = vector.load %arg7[%c0_85, %c0_86] : memref<2x256xf32, #tpu.memory_space<vmem>>, vector<1x256xf32>
    %103 = vector.shape_cast %102 : vector<1x256xf32> to vector<256xf32>
    %104 = vector.shape_cast %103 : vector<256xf32> to vector<1x256xf32>
    %105 = vector.broadcast %104 : vector<1x256xf32> to vector<8x256xf32>
    %106 = arith.mulf %101, %105 : vector<8x256xf32>
    %c48_87 = arith.constant 48 : index
    %c0_88 = arith.constant 0 : index
    %107 = vector.load %arg14[%c48_87, %c0_88] : memref<72x256xf32, #tpu.memory_space<vmem>>, vector<8x256xf32>
    tpu.vector_store %arg14[%c48_87, %c0_88], %106 {strides = array<i32>} : memref<72x256xf32, #tpu.memory_space<vmem>>, vector<8x256xf32>,
    %c0_89 = arith.constant 0 : index
    %c33_90 = arith.constant 33 : index
    %108 = vector.load %arg13[%c0_89, %c33_90] : memref<8x290xf32, #tpu.memory_space<vmem>>, vector<8x256xf32>
    %c56_91 = arith.constant 56 : index
    %c0_92 = arith.constant 0 : index
    %109 = vector.load %arg14[%c56_91, %c0_92] : memref<72x256xf32, #tpu.memory_space<vmem>>, vector<8x256xf32>
    tpu.vector_store %arg14[%c56_91, %c0_92], %108 {strides = array<i32>} : memref<72x256xf32, #tpu.memory_space<vmem>>, vector<8x256xf32>,
    %c0_93 = arith.constant 0 : index
    %c34_94 = arith.constant 34 : index
    %110 = vector.load %arg13[%c0_93, %c34_94] : memref<8x290xf32, #tpu.memory_space<vmem>>, vector<8x256xf32>
    %c1_95 = arith.constant 1 : index
    %c0_96 = arith.constant 0 : index
    %111 = vector.load %arg7[%c1_95, %c0_96] : memref<2x256xf32, #tpu.memory_space<vmem>>, vector<1x256xf32>
    %112 = vector.shape_cast %111 : vector<1x256xf32> to vector<256xf32>
    %113 = vector.shape_cast %112 : vector<256xf32> to vector<1x256xf32>
    %114 = vector.broadcast %113 : vector<1x256xf32> to vector<8x256xf32>
    %115 = arith.mulf %110, %114 : vector<8x256xf32>
    %c64_97 = arith.constant 64 : index
    %c0_98 = arith.constant 0 : index
    %116 = vector.load %arg14[%c64_97, %c0_98] : memref<72x256xf32, #tpu.memory_space<vmem>>, vector<8x256xf32>
    tpu.vector_store %arg14[%c64_97, %c0_98], %115 {strides = array<i32>} : memref<72x256xf32, #tpu.memory_space<vmem>>, vector<8x256xf32>,
    %c0_99 = arith.constant 0 : index
    %c0_100 = arith.constant 0 : index
    %117 = vector.load %arg5[%c0_99, %c0_100] : memref<8x72xbf16, #tpu.memory_space<vmem>>, vector<8x72xbf16>
    %c0_101 = arith.constant 0 : index
    %c0_102 = arith.constant 0 : index
    %118 = vector.load %arg14[%c0_101, %c0_102] : memref<72x256xf32, #tpu.memory_space<vmem>>, vector<72x256xf32>
    %119 = arith.truncf %118 : vector<72x256xf32> to vector<72x256xbf16>
    %cst_103 = arith.constant dense<0.000000e+00> : vector<8x256xf32>
    %120 = tpu.matmul %117, %119, %cst_103 {dimension_numbers = #tpu.dot_dimension_numbers<[1], [0], [0], [1], [0, 0, 1, 1], [], []>} : vector<8x72xbf16>, vector<72x256xbf16>, vector<8x256xf32> -> vector<8x256xf32>
    %c0_104 = arith.constant 0 : index
    %c0_105 = arith.constant 0 : index
    %121 = vector.load %arg6[%c0_104, %c0_105] : memref<8x1xf32, #tpu.memory_space<vmem>>, vector<8x1xf32>
    %122 = vector.broadcast %121 : vector<8x1xf32> to vector<8x256xf32>
    %123 = arith.addf %120, %122 : vector<8x256xf32>
    %124 = arith.negf %123 : vector<8x256xf32>
    %125 = math.exp %124 : vector<8x256xf32>
    %cst_106 = arith.constant 1.000000e+00 : f32
    %126 = vector.broadcast %cst_106 : f32 to vector<8x256xf32>
    %127 = arith.addf %126, %125 : vector<8x256xf32>
    %128 = arith.divf %126, %127 : vector<8x256xf32>
    %129 = arith.mulf %123, %128 : vector<8x256xf32>
    %c0_107 = arith.constant 0 : index
    %c0_108 = arith.constant 0 : index
    %130 = vector.load %arg8[%c0_107, %c0_108] : memref<16x8xbf16, #tpu.memory_space<vmem>>, vector<16x8xbf16>
    %c0_109 = arith.constant 0 : index
    %c0_110 = arith.constant 0 : index
    %c0_111 = arith.constant 0 : index
    %131 = vector.load %arg1[%c0_109, %c0_110, %c0_111] : memref<1x8x256xbf16, #tpu.memory_space<vmem>>, vector<1x8x256xbf16>
    %132 = vector.shape_cast %131 : vector<1x8x256xbf16> to vector<8x256xbf16>
    %cst_112 = arith.constant dense<0.000000e+00> : vector<16x256xf32>
    %133 = tpu.matmul %130, %132, %cst_112 {dimension_numbers = #tpu.dot_dimension_numbers<[1], [0], [0], [1], [0, 0, 1, 1], [], []>} : vector<16x8xbf16>, vector<8x256xbf16>, vector<16x256xf32> -> vector<16x256xf32>
    %c0_113 = arith.constant 0 : index
    %c0_114 = arith.constant 0 : index
    %134 = vector.load %arg9[%c0_113, %c0_114] : memref<16x8xbf16, #tpu.memory_space<vmem>>, vector<16x8xbf16>
    %c0_115 = arith.constant 0 : index
    %c0_116 = arith.constant 0 : index
    %c0_117 = arith.constant 0 : index
    %135 = vector.load %arg2[%c0_115, %c0_116, %c0_117] : memref<1x8x256xbf16, #tpu.memory_space<vmem>>, vector<1x8x256xbf16>
    %136 = vector.shape_cast %135 : vector<1x8x256xbf16> to vector<8x256xbf16>
    %cst_118 = arith.constant dense<0.000000e+00> : vector<16x256xf32>
    %137 = tpu.matmul %134, %136, %cst_118 {dimension_numbers = #tpu.dot_dimension_numbers<[1], [0], [0], [1], [0, 0, 1, 1], [], []>} : vector<16x8xbf16>, vector<8x256xbf16>, vector<16x256xf32> -> vector<16x256xf32>
    %138 = arith.addf %133, %137 : vector<16x256xf32>
    %c0_119 = arith.constant 0 : index
    %c0_120 = arith.constant 0 : index
    %139 = vector.load %arg10[%c0_119, %c0_120] : memref<16x8xbf16, #tpu.memory_space<vmem>>, vector<16x8xbf16>
    %140 = arith.truncf %129 : vector<8x256xf32> to vector<8x256xbf16>
    %cst_121 = arith.constant dense<0.000000e+00> : vector<16x256xf32>
    %141 = tpu.matmul %139, %140, %cst_121 {dimension_numbers = #tpu.dot_dimension_numbers<[1], [0], [0], [1], [0, 0, 1, 1], [], []>} : vector<16x8xbf16>, vector<8x256xbf16>, vector<16x256xf32> -> vector<16x256xf32>
    %142 = arith.addf %138, %141 : vector<16x256xf32>
    %c0_122 = arith.constant 0 : index
    %c0_123 = arith.constant 0 : index
    %143 = vector.load %arg11[%c0_122, %c0_123] : memref<16x1xf32, #tpu.memory_space<vmem>>, vector<16x1xf32>
    %144 = vector.broadcast %143 : vector<16x1xf32> to vector<16x256xf32>
    %145 = arith.addf %142, %144 : vector<16x256xf32>
    %146 = arith.negf %145 : vector<16x256xf32>
    %147 = math.exp %146 : vector<16x256xf32>
    %cst_124 = arith.constant 1.000000e+00 : f32
    %148 = vector.broadcast %cst_124 : f32 to vector<16x256xf32>
    %149 = arith.addf %148, %147 : vector<16x256xf32>
    %150 = arith.divf %148, %149 : vector<16x256xf32>
    %151 = arith.mulf %145, %150 : vector<16x256xf32>
    %c0_125 = arith.constant 0 : index
    %c0_126 = arith.constant 0 : index
    %c0_127 = arith.constant 0 : index
    %152 = vector.load %arg12[%c0_125, %c0_126, %c0_127] : memref<1x16x256xf32, #tpu.memory_space<vmem>>, vector<1x16x256xf32>
    %153 = vector.shape_cast %152 : vector<1x16x256xf32> to vector<16x256xf32>
    %154 = vector.shape_cast %151 : vector<16x256xf32> to vector<1x16x256xf32>
    tpu.vector_store %arg12[%c0_125, %c0_126, %c0_127], %154 {strides = array<i32>} : memref<1x16x256xf32, #tpu.memory_space<vmem>>, vector<1x16x256xf32>,
    return
  }
  func.func @transform_0(%arg0: i32) -> (i32, i32, i32) {
    %c0_i32 = arith.constant 0 : i32
    %c0_i32_0 = arith.constant 0 : i32
    %c0_i32_1 = arith.constant 0 : i32
    return %arg0, %c0_i32, %c0_i32_0 : i32, i32, i32
  }
  func.func @transform_1(%arg0: i32) -> (i32, i32, i32) {
    %c0_i32 = arith.constant 0 : i32
    %c0_i32_0 = arith.constant 0 : i32
    %c0_i32_1 = arith.constant 0 : i32
    return %arg0, %c0_i32, %c0_i32_0 : i32, i32, i32
  }
  func.func @transform_2(%arg0: i32) -> (i32, i32) {
    %c0_i32 = arith.constant 0 : i32
    %c0_i32_0 = arith.constant 0 : i32
    %c0_i32_1 = arith.constant 0 : i32
    return %c0_i32, %c0_i32_0 : i32, i32
  }
  func.func @transform_3(%arg0: i32) -> (i32, i32) {
    %c0_i32 = arith.constant 0 : i32
    %c0_i32_0 = arith.constant 0 : i32
    %c0_i32_1 = arith.constant 0 : i32
    return %c0_i32, %c0_i32_0 : i32, i32
  }
  func.func @transform_4(%arg0: i32) -> (i32, i32) {
    %c0_i32 = arith.constant 0 : i32
    %c0_i32_0 = arith.constant 0 : i32
    %c0_i32_1 = arith.constant 0 : i32
    return %c0_i32, %c0_i32_0 : i32, i32
  }
  func.func @transform_5(%arg0: i32) -> (i32, i32) {
    %c0_i32 = arith.constant 0 : i32
    %c0_i32_0 = arith.constant 0 : i32
    %c0_i32_1 = arith.constant 0 : i32
    return %c0_i32, %c0_i32_0 : i32, i32
  }
  func.func @transform_6(%arg0: i32) -> (i32, i32) {
    %c0_i32 = arith.constant 0 : i32
    %c0_i32_0 = arith.constant 0 : i32
    %c0_i32_1 = arith.constant 0 : i32
    return %c0_i32, %c0_i32_0 : i32, i32
  }
  func.func @transform_7(%arg0: i32) -> (i32, i32) {
    %c0_i32 = arith.constant 0 : i32
    %c0_i32_0 = arith.constant 0 : i32
    %c0_i32_1 = arith.constant 0 : i32
    return %c0_i32, %c0_i32_0 : i32, i32
  }
  func.func @transform_8(%arg0: i32) -> (i32, i32) {
    %c0_i32 = arith.constant 0 : i32
    %c0_i32_0 = arith.constant 0 : i32
    %c0_i32_1 = arith.constant 0 : i32
    return %c0_i32, %c0_i32_0 : i32, i32
  }
  func.func @transform_9(%arg0: i32) -> (i32, i32) {
    %c0_i32 = arith.constant 0 : i32
    %c0_i32_0 = arith.constant 0 : i32
    %c0_i32_1 = arith.constant 0 : i32
    return %c0_i32, %c0_i32_0 : i32, i32
  }
  func.func @transform_10(%arg0: i32) -> (i32, i32) {
    %c0_i32 = arith.constant 0 : i32
    %c0_i32_0 = arith.constant 0 : i32
    %c0_i32_1 = arith.constant 0 : i32
    return %c0_i32, %c0_i32_0 : i32, i32
  }
  func.func @transform_11(%arg0: i32) -> (i32, i32, i32) {
    %c0_i32 = arith.constant 0 : i32
    %c0_i32_0 = arith.constant 0 : i32
    %c0_i32_1 = arith.constant 0 : i32
    return %arg0, %c0_i32, %c0_i32_0 : i32, i32, i32
  }
}

</mosaic_0001>

<llo_original>
// kernel: c2f_with_mca_forward.3
$region0: #{c2f_with_mca_forward.3}
  #allocation0 [shape = 'u32[]', space=smem, size = 0x4, offset = 0x4, fixed_abs, tag = 'smem constant byte address 0x4 - core index']
  #allocation1 [shape = 'u32[144,128]{1,0:T(1,128)}', space=vmem, size = 0x12000, scoped, tag = 'internal scratch']
  %s0 = inlined_call_operand.hbm [shape: f32[2,16,16,16], index: 0, kind: input, shape index: {}]
  %s1 = inlined_call_operand.hbm [shape: f32[16,16], index: 1, kind: input, shape index: {}]
  %s2 = inlined_call_operand.hbm [shape: f32[16,16], index: 2, kind: input, shape index: {}]
  %s3 = inlined_call_operand.hbm [shape: f32[16,16], index: 3, kind: input, shape index: {}]
  %s4 = inlined_call_operand.hbm [shape: f32[16,16], index: 4, kind: input, shape index: {}]
  %s5 = inlined_call_operand.vmem [shape: f32[2,16,16], index: 5, kind: output, shape index: {}]
  %s6 = sld [smem:[#allocation0]]
  $region73: #{c2f_with_mca_forward.3} parent=0
    _
  %s8 = ssub.s32 1, %s6
  %s9 = scalar_select 0, %s8, %s6
  $region1: #{c2f_with_mca_forward.3} parent=0
    #allocation2 [shape = 'u8[262144]{0}', space=vmem, size = 0x40000, scoped, tag = 'input window, operand 0']
    #allocation3 [shape = 's32[2]{0}', space=sflag, size = 0x8, scoped, tag = 'scoped memory for c2f_with_mca_forward.3']
    #allocation4 [shape = 'u8[8192]{0}', space=vmem, size = 0x2000, scoped, tag = 'input window, operand 1, single buffered']
    #allocation5 [shape = 's32[1]{0}', space=sflag, size = 0x4, scoped, tag = 'scoped memory for c2f_with_mca_forward.3']
    #allocation6 [shape = 'u8[8192]{0}', space=vmem, size = 0x2000, scoped, tag = 'input window, operand 2, single buffered']
    #allocation7 [shape = 'u8[8192]{0}', space=vmem, size = 0x2000, scoped, tag = 'input window, operand 3, single buffered']
    #allocation8 [shape = 's32[1]{0}', space=sflag, size = 0x4, scoped, tag = 'scoped memory for c2f_with_mca_forward.3']
    #allocation9 [shape = 'u8[8192]{0}', space=vmem, size = 0x2000, scoped, tag = 'input window, operand 4, single buffered']
    %10 = vsyncpa [#allocation3], 0
    %s11 = scalar_lea.sflag [#allocation3], 1
    %12 = vsyncpa %s11, 0
    %13 = vsyncpa [#allocation5], 0
    %14 = vsyncpa [#allocation8], 0
    loop: start=0, step=1, limit=4
    $region2: #{c2f_with_mca_forward.3} parent=1 // loop_pre_header
      _
    $region3: #{c2f_with_mca_forward.3} parent=1 // loop_header
      %s16 = sphi 0, %s20
      %p17 = scmp.ge.s32.totalorder %s16, 4
      %s26 = sphi 0, %s28
      %s29 = sphi 0, %s26
      %s30 = sphi 0, %s29
      %s46 = sphi 0, %s30
      %s50 = sphi 0, %s50
      %s52 = sphi 0, %s50
      %s53 = sphi 0, %s52
      %s67 = sphi 0, %s53
      %s71 = sphi 0, %s71
      %s73 = sphi 0, %s71
      %s74 = sphi 0, %s73
      %s88 = sphi 0, %s74
      %s92 = sphi 0, %s92
      %s94 = sphi 0, %s92
      %s95 = sphi 0, %s94
      %s109 = sphi 0, %s95
      %s113 = sphi 0, %s113
      %s115 = sphi 0, %s113
      %s116 = sphi 0, %s115
      %s130 = sphi 0, %s116
      %s136 = sphi 0, %s138
      %s139 = sphi 0, %s136
      %s140 = sphi 0, %s139
      %s156 = sphi 0, %s140
    $region4: #{c2f_with_mca_forward.3} parent=1 // loop_header_branch
      %19 = sbr.rel (%p17) target = $region8
    $region5: #{c2f_with_mca_forward.3} parent=1 // loop_body
      %s21 = ssub.s32 %s16, 1
      %s22 = ssub.s32 %s16, 2
      %s23 = sadd.s32 %s16, 1
      %s24 = ssub.s32 %s16, %s23
      %p25 = scmp.eq.s32.totalorder %s24, 0
      %s27 = sadd.s32 %s26, 1
      %s28 = scalar_select %p25, %s26, %s27
      %p31 = pneg %p25
      %p32 = scmp.eq.s32.totalorder %s16, 1
      %p33 = por %p31, %p32
      %p34 = scmp.ne.s32.totalorder %s26, %s29
      %p35 = scmp.eq.s32.totalorder %s16, 0
      %p36 = por %p34, %p35
      %p37 = scmp.ne.s32.totalorder %s26, %s29
      %p38 = scmp.eq.s32.totalorder %s21, 1
      %p39 = por %p37, %p38
      %p40 = scmp.ne.s32.totalorder %s29, %s30
      %p41 = scmp.eq.s32.totalorder %s21, 0
      %p42 = por %p40, %p41
      %p43 = scmp.ne.s32.totalorder %s29, %s30
      %p44 = scmp.eq.s32.totalorder %s22, 1
      %p45 = por %p43, %p44
      %p47 = scmp.ne.s32.totalorder %s30, %s46
      %p48 = scmp.eq.s32.totalorder %s22, 0
      %p49 = por %p47, %p48
      %s51 = sadd.s32 %s50, 1
      %p54 = scmp.eq.s32.totalorder %s16, 1
      %p55 = scmp.ne.s32.totalorder %s50, %s52
      %p56 = scmp.eq.s32.totalorder %s16, 0
      %p57 = por %p55, %p56
      %p58 = scmp.ne.s32.totalorder %s50, %s52
      %p59 = scmp.eq.s32.totalorder %s21, 1
      %p60 = por %p58, %p59
      %p61 = scmp.ne.s32.totalorder %s52, %s53
      %p62 = scmp.eq.s32.totalorder %s21, 0
      %p63 = por %p61, %p62
      %p64 = scmp.ne.s32.totalorder %s52, %s53
      %p65 = scmp.eq.s32.totalorder %s22, 1
      %p66 = por %p64, %p65
      %p68 = scmp.ne.s32.totalorder %s53, %s67
      %p69 = scmp.eq.s32.totalorder %s22, 0
      %p70 = por %p68, %p69
      %s72 = sadd.s32 %s71, 1
      %p75 = scmp.eq.s32.totalorder %s16, 1
      %p76 = scmp.ne.s32.totalorder %s71, %s73
      %p77 = scmp.eq.s32.totalorder %s16, 0
      %p78 = por %p76, %p77
      %p79 = scmp.ne.s32.totalorder %s71, %s73
      %p80 = scmp.eq.s32.totalorder %s21, 1
      %p81 = por %p79, %p80
      %p82 = scmp.ne.s32.totalorder %s73, %s74
      %p83 = scmp.eq.s32.totalorder %s21, 0
      %p84 = por %p82, %p83
      %p85 = scmp.ne.s32.totalorder %s73, %s74
      %p86 = scmp.eq.s32.totalorder %s22, 1
      %p87 = por %p85, %p86
      %p89 = scmp.ne.s32.totalorder %s74, %s88
      %p90 = scmp.eq.s32.totalorder %s22, 0
      %p91 = por %p89, %p90
      %s93 = sadd.s32 %s92, 1
      %p96 = scmp.eq.s32.totalorder %s16, 1
      %p97 = scmp.ne.s32.totalorder %s92, %s94
      %p98 = scmp.eq.s32.totalorder %s16, 0
      %p99 = por %p97, %p98
      %p100 = scmp.ne.s32.totalorder %s92, %s94
      %p101 = scmp.eq.s32.totalorder %s21, 1
      %p102 = por %p100, %p101
      %p103 = scmp.ne.s32.totalorder %s94, %s95
      %p104 = scmp.eq.s32.totalorder %s21, 0
      %p105 = por %p103, %p104
      %p106 = scmp.ne.s32.totalorder %s94, %s95
      %p107 = scmp.eq.s32.totalorder %s22, 1
      %p108 = por %p106, %p107
      %p110 = scmp.ne.s32.totalorder %s95, %s109
      %p111 = scmp.eq.s32.totalorder %s22, 0
      %p112 = por %p110, %p111
      %s114 = sadd.s32 %s113, 1
      %p117 = scmp.eq.s32.totalorder %s16, 1
      %p118 = scmp.ne.s32.totalorder %s113, %s115
      %p119 = scmp.eq.s32.totalorder %s16, 0
      %p120 = por %p118, %p119
      %p121 = scmp.ne.s32.totalorder %s113, %s115
      %p122 = scmp.eq.s32.totalorder %s21, 1
      %p123 = por %p121, %p122
      %p124 = scmp.ne.s32.totalorder %s115, %s116
      %p125 = scmp.eq.s32.totalorder %s21, 0
      %p126 = por %p124, %p125
      %p127 = scmp.ne.s32.totalorder %s115, %s116
      %p128 = scmp.eq.s32.totalorder %s22, 1
      %p129 = por %p127, %p128
      %p131 = scmp.ne.s32.totalorder %s116, %s130
      %p132 = scmp.eq.s32.totalorder %s22, 0
      %p133 = por %p131, %p132
      %s134 = ssub.s32 %s16, %s23
      %p135 = scmp.eq.s32.totalorder %s134, 0
      %s137 = sadd.s32 %s136, 1
      %s138 = scalar_select %p135, %s136, %s137
      %p141 = pneg %p135
      %p142 = scmp.eq.s32.totalorder %s16, 1
      %p143 = por %p141, %p142
      %p144 = scmp.ne.s32.totalorder %s136, %s139
      %p145 = scmp.eq.s32.totalorder %s16, 0
      %p146 = por %p144, %p145
      %p147 = scmp.ne.s32.totalorder %s136, %s139
      %p148 = scmp.eq.s32.totalorder %s21, 1
      %p149 = por %p147, %p148
      %p150 = scmp.ne.s32.totalorder %s139, %s140
      %p151 = scmp.eq.s32.totalorder %s21, 0
      %p152 = por %p150, %p151
      %p153 = scmp.ne.s32.totalorder %s139, %s140
      %p154 = scmp.eq.s32.totalorder %s22, 1
      %p155 = por %p153, %p154
      %p157 = scmp.ne.s32.totalorder %s140, %s156
      %p158 = scmp.eq.s32.totalorder %s22, 0
      %p159 = por %p157, %p158
      %p160 = scmp.le.s32.totalorder 1, %s16
      %p161 = scmp.lt.s32.totalorder %s16, 3
      %p162 = pnand %p160, %p161
      %p163 = pneg %p162
      // Predicated region
      $region9: #{c2f_with_mca_forward.3} parent=5 // pred_check
        _
      $region10: #{c2f_with_mca_forward.3} parent=5 // pred_check_branch
        %165 = sbr.rel (%p162) target = $region12
      $region11: #{c2f_with_mca_forward.3} parent=5 // pred_region
        %s166 = ssub.s32 %s16, 1
        // Predicated region
        $region13: #{c2f_with_mca_forward.3} parent=11 // pred_check
          %p167 = pneg %p63
        $region14: #{c2f_with_mca_forward.3} parent=11 // pred_check_branch
          %169 = sbr.rel (%p167) target = $region16
        $region15: #{c2f_with_mca_forward.3} parent=11 // pred_region
          %s171 = ssub.s32 256, 256
          %172 = vsyncadd [#allocation5], %s171
          %s173 = sshll.u32 [#allocation4], 4
          %s174 = int_to_ptr.vmem [resolvable:$true] %s173
          %179 = dma.hbm_to_vmem [thread:$0]  %s1, 256, %s174, [#allocation5], 128, 128, 8
        $region16: #{c2f_with_mca_forward.3} parent=11 // pred_fallthru
          _
        // Predicated region
        $region17: #{c2f_with_mca_forward.3} parent=11 // pred_check
          %p180 = pneg %p84
        $region18: #{c2f_with_mca_forward.3} parent=11 // pred_check_branch
          %182 = sbr.rel (%p180) target = $region20
        $region19: #{c2f_with_mca_forward.3} parent=11 // pred_region
          %s184 = ssub.s32 256, 256
          %185 = vsyncadd [#allocation5], %s184
          %s186 = sshll.u32 [#allocation6], 4
          %s187 = int_to_ptr.vmem [resolvable:$true] %s186
          %192 = dma.hbm_to_vmem [thread:$0]  %s2, 256, %s187, [#allocation5], 128, 128, 8
        $region20: #{c2f_with_mca_forward.3} parent=11 // pred_fallthru
          _
        // Predicated region
        $region21: #{c2f_with_mca_forward.3} parent=11 // pred_check
          %p193 = pneg %p105
        $region22: #{c2f_with_mca_forward.3} parent=11 // pred_check_branch
          %195 = sbr.rel (%p193) target = $region24
        $region23: #{c2f_with_mca_forward.3} parent=11 // pred_region
          %s197 = ssub.s32 256, 256
          %198 = vsyncadd [#allocation8], %s197
          %s199 = sshll.u32 [#allocation7], 4
          %s200 = int_to_ptr.vmem [resolvable:$true] %s199
          %205 = dma.hbm_to_vmem [thread:$0]  %s3, 256, %s200, [#allocation8], 128, 128, 8
        $region24: #{c2f_with_mca_forward.3} parent=11 // pred_fallthru
          _
        // Predicated region
        $region25: #{c2f_with_mca_forward.3} parent=11 // pred_check
          %p206 = pneg %p126
        $region26: #{c2f_with_mca_forward.3} parent=11 // pred_check_branch
          %208 = sbr.rel (%p206) target = $region28
        $region27: #{c2f_with_mca_forward.3} parent=11 // pred_region
          %s210 = ssub.s32 256, 256
          %211 = vsyncadd [#allocation8], %s210
          %s212 = sshll.u32 [#allocation9], 4
          %s213 = int_to_ptr.vmem [resolvable:$true] %s212
          %218 = dma.hbm_to_vmem [thread:$0]  %s4, 256, %s213, [#allocation8], 128, 128, 8
        $region28: #{c2f_with_mca_forward.3} parent=11 // pred_fallthru
          _
      $region12: #{c2f_with_mca_forward.3} parent=5 // pred_fallthru
        _
      %p219 = scmp.lt.s32.totalorder %s16, 2
      // Predicated region
      $region29: #{c2f_with_mca_forward.3} parent=5 // pred_check
        %p220 = pneg %p219
      $region30: #{c2f_with_mca_forward.3} parent=5 // pred_check_branch
        %222 = sbr.rel (%p220) target = $region32
      $region31: #{c2f_with_mca_forward.3} parent=5 // pred_region
        // Predicated region
        $region33: #{c2f_with_mca_forward.3} parent=31 // pred_check
          %p223 = pneg %p36
        $region34: #{c2f_with_mca_forward.3} parent=31 // pred_check_branch
          %225 = sbr.rel (%p223) target = $region36
        $region35: #{c2f_with_mca_forward.3} parent=31 // pred_region
          %s226 = sand.u32 %s26, 1
          %s227 = scalar_lea.sflag [#allocation3], %s226
          %s228 = sand.u32 %s26, 1
          %s229 = smul.addr %s228, 256
          %s230 = scalar_lea.vmem [#allocation2], %s229
          %s232 = ssub.s32 4096, 4096
          %233 = vsyncadd %s227, %s232
          %s234 = smul.addr %s16, 32
          %s235 = smul.addr %s234, 128
          %s236 = scalar_lea.hbm %s0, %s235
          %s237 = sshll.u32 %s230, 4
          %s238 = int_to_ptr.vmem [resolvable:$true] %s237
          %243 = dma.hbm_to_vmem [thread:$0]  %s236, 4096, %s238, %s227, 128, 128, 8
        $region36: #{c2f_with_mca_forward.3} parent=31 // pred_fallthru
          _
      $region32: #{c2f_with_mca_forward.3} parent=5 // pred_fallthru
        _
      %p244 = scmp.le.s32.totalorder 1, %s16
      %p245 = scmp.lt.s32.totalorder %s16, 3
      %p246 = pnand %p244, %p245
      %p247 = pneg %p246
      // Predicated region
      $region37: #{c2f_with_mca_forward.3} parent=5 // pred_check
        _
      $region38: #{c2f_with_mca_forward.3} parent=5 // pred_check_branch
        %249 = sbr.rel (%p246) target = $region40
      $region39: #{c2f_with_mca_forward.3} parent=5 // pred_region
        %s250 = ssub.s32 %s16, 1
        %s251 = sand.u32 %s29, 1
        %s252 = scalar_lea.sflag [#allocation3], %s251
        %s253 = sand.u32 %s29, 1
        %s254 = smul.addr %s253, 256
        %s255 = scalar_lea.vmem [#allocation2], %s254
        // Predicated region
        $region41: #{c2f_with_mca_forward.3} parent=39 // pred_check
          %p256 = pneg %p42
        $region42: #{c2f_with_mca_forward.3} parent=39 // pred_check_branch
          %258 = sbr.rel (%p256) target = $region44
        $region43: #{c2f_with_mca_forward.3} parent=39 // pred_region
          %259 = dma.done %s252, 4096
        $region44: #{c2f_with_mca_forward.3} parent=39 // pred_fallthru
          _
        // Predicated region
        $region45: #{c2f_with_mca_forward.3} parent=39 // pred_check
          %p260 = pneg %p63
        $region46: #{c2f_with_mca_forward.3} parent=39 // pred_check_branch
          %262 = sbr.rel (%p260) target = $region48
        $region47: #{c2f_with_mca_forward.3} parent=39 // pred_region
          %263 = dma.done [#allocation5], 256
        $region48: #{c2f_with_mca_forward.3} parent=39 // pred_fallthru
          _
        // Predicated region
        $region49: #{c2f_with_mca_forward.3} parent=39 // pred_check
          %p264 = pneg %p84
        $region50: #{c2f_with_mca_forward.3} parent=39 // pred_check_branch
          %266 = sbr.rel (%p264) target = $region52
        $region51: #{c2f_with_mca_forward.3} parent=39 // pred_region
          %267 = dma.done [#allocation5], 256
        $region52: #{c2f_with_mca_forward.3} parent=39 // pred_fallthru
          _
        // Predicated region
        $region53: #{c2f_with_mca_forward.3} parent=39 // pred_check
          %p268 = pneg %p105
        $region54: #{c2f_with_mca_forward.3} parent=39 // pred_check_branch
          %270 = sbr.rel (%p268) target = $region56
        $region55: #{c2f_with_mca_forward.3} parent=39 // pred_region
          %271 = dma.done [#allocation8], 256
        $region56: #{c2f_with_mca_forward.3} parent=39 // pred_fallthru
          _
        // Predicated region
        $region57: #{c2f_with_mca_forward.3} parent=39 // pred_check
          %p272 = pneg %p126
        $region58: #{c2f_with_mca_forward.3} parent=39 // pred_check_branch
          %274 = sbr.rel (%p272) target = $region60
        $region59: #{c2f_with_mca_forward.3} parent=39 // pred_region
          %275 = dma.done [#allocation8], 256
        $region60: #{c2f_with_mca_forward.3} parent=39 // pred_fallthru
          _
        %s276 = sand.u32 %s29, 1
        %s277 = scalar_lea.sflag [#allocation3], %s276
        %s278 = sand.u32 %s29, 1
        %s279 = smul.addr %s278, 256
        %s280 = scalar_lea.vmem [#allocation2], %s279
        %p281 = pneg %p42
        %p282 = pneg %p39
        %p283 = pneg %p63
        %p284 = pneg %p60
        %p285 = pneg %p84
        %p286 = pneg %p81
        %p287 = pneg %p105
        %p288 = pneg %p102
        %p289 = pneg %p126
        %p290 = pneg %p123
        %p291 = pneg %p152
        %p292 = pneg %p149
        %p293 = scmp.lt.s32.totalorder %s21, 1
        %s294 = scalar_select %p293, %s21, 1
        %s295 = smul.addr %s294, 2
        %s296 = smul.addr %s295, 8
        %s297 = scalar_lea.vmem %s5, %s296
        %p298 = scmp.lt.s32.totalorder %s21, 1
        %s299 = scalar_select %p298, %s21, 1
        %s300 = smul.addr %s299, 2
        %s301 = smul.addr %s300, 8
        %s302 = scalar_lea.vmem %s5, %s301
        %v303 = vld [vmem:[%s255] sm:$0xff]
        %v304 = vld [vmem:[%s255 + $0x8] sm:$0xff]
        %v305 = vld [vmem:[%s255 + $0x10] sm:$0xff]
        %v306 = vld [vmem:[%s255 + $0x18] sm:$0xff]
        %v307 = vld [vmem:[%s255 + $0x20] sm:$0xff]
        %v308 = vld [vmem:[%s255 + $0x28] sm:$0xff]
        %v309 = vld [vmem:[%s255 + $0x30] sm:$0xff]
        %v310 = vld [vmem:[%s255 + $0x38] sm:$0xff]
        %v311 = vld [vmem:[%s255 + $0x40] sm:$0xff]
        %v312 = vld [vmem:[%s255 + $0x48] sm:$0xff]
        %v313 = vld [vmem:[%s255 + $0x50] sm:$0xff]
        %v314 = vld [vmem:[%s255 + $0x58] sm:$0xff]
        %v315 = vld [vmem:[%s255 + $0x60] sm:$0xff]
        %v316 = vld [vmem:[%s255 + $0x68] sm:$0xff]
        %v317 = vld [vmem:[%s255 + $0x70] sm:$0xff]
        %v318 = vld [vmem:[%s255 + $0x78] sm:$0xff]
        %v319 = vld [vmem:[%s255 + $0x80] sm:$0xff]
        %v320 = vld [vmem:[%s255 + $0x88] sm:$0xff]
        %v321 = vld [vmem:[%s255 + $0x90] sm:$0xff]
        %v322 = vld [vmem:[%s255 + $0x98] sm:$0xff]
        %v323 = vld [vmem:[%s255 + $0xa0] sm:$0xff]
        %v324 = vld [vmem:[%s255 + $0xa8] sm:$0xff]
        %v325 = vld [vmem:[%s255 + $0xb0] sm:$0xff]
        %v326 = vld [vmem:[%s255 + $0xb8] sm:$0xff]
        %v327 = vld [vmem:[%s255 + $0xc0] sm:$0xff]
        %v328 = vld [vmem:[%s255 + $0xc8] sm:$0xff]
        %v329 = vld [vmem:[%s255 + $0xd0] sm:$0xff]
        %v330 = vld [vmem:[%s255 + $0xd8] sm:$0xff]
        %v331 = vld [vmem:[%s255 + $0xe0] sm:$0xff]
        %v332 = vld [vmem:[%s255 + $0xe8] sm:$0xff]
        %v333 = vld [vmem:[%s255 + $0xf0] sm:$0xff]
        %v334 = vld [vmem:[%s255 + $0xf8] sm:$0xff]
        %vm335 = vcmask 130048
        %v336 = vsel %vm335, %v303, 0.0
        %v337 = vsel %vm335, %v305, 0.0
        %v338 = vadd.f32 %v336, %v337
        %v339 = vsel %vm335, %v307, 0.0
        %v340 = vadd.f32 %v338, %v339
        %v341 = vsel %vm335, %v309, 0.0
        %v342 = vadd.f32 %v340, %v341
        %v343 = vsel %vm335, %v311, 0.0
        %v344 = vadd.f32 %v342, %v343
        %v345 = vsel %vm335, %v313, 0.0
        %v346 = vadd.f32 %v344, %v345
        %v347 = vsel %vm335, %v315, 0.0
        %v348 = vadd.f32 %v346, %v347
        %v349 = vsel %vm335, %v317, 0.0
        %v350 = vadd.f32 %v348, %v349
        %v351 = vsel %vm335, %v319, 0.0
        %v352 = vadd.f32 %v350, %v351
        %v353 = vsel %vm335, %v321, 0.0
        %v354 = vadd.f32 %v352, %v353
        %v355 = vsel %vm335, %v323, 0.0
        %v356 = vadd.f32 %v354, %v355
        %v357 = vsel %vm335, %v325, 0.0
        %v358 = vadd.f32 %v356, %v357
        %v359 = vsel %vm335, %v327, 0.0
        %v360 = vadd.f32 %v358, %v359
        %v361 = vsel %vm335, %v329, 0.0
        %v362 = vadd.f32 %v360, %v361
        %v363 = vsel %vm335, %v331, 0.0
        %v364 = vadd.f32 %v362, %v363
        %v365 = vsel %vm335, %v333, 0.0
        %v366 = vadd.f32 %v364, %v365
        %v367 = vsel %vm335, %v304, 0.0
        %v368 = vsel %vm335, %v306, 0.0
        %v369 = vadd.f32 %v367, %v368
        %v370 = vsel %vm335, %v308, 0.0
        %v371 = vadd.f32 %v369, %v370
        %v372 = vsel %vm335, %v310, 0.0
        %v373 = vadd.f32 %v371, %v372
        %v374 = vsel %vm335, %v312, 0.0
        %v375 = vadd.f32 %v373, %v374
        %v376 = vsel %vm335, %v314, 0.0
        %v377 = vadd.f32 %v375, %v376
        %v378 = vsel %vm335, %v316, 0.0
        %v379 = vadd.f32 %v377, %v378
        %v380 = vsel %vm335, %v318, 0.0
        %v381 = vadd.f32 %v379, %v380
        %v382 = vsel %vm335, %v320, 0.0
        %v383 = vadd.f32 %v381, %v382
        %v384 = vsel %vm335, %v322, 0.0
        %v385 = vadd.f32 %v383, %v384
        %v386 = vsel %vm335, %v324, 0.0
        %v387 = vadd.f32 %v385, %v386
        %v388 = vsel %vm335, %v326, 0.0
        %v389 = vadd.f32 %v387, %v388
        %v390 = vsel %vm335, %v328, 0.0
        %v391 = vadd.f32 %v389, %v390
        %v392 = vsel %vm335, %v330, 0.0
        %v393 = vadd.f32 %v391, %v392
        %v394 = vsel %vm335, %v332, 0.0
        %v395 = vadd.f32 %v393, %v394
        %v396 = vsel %vm335, %v334, 0.0
        %v397 = vadd.f32 %v395, %v396
        %v398 = vmul.f32 %v303, %v303
        %v399 = vmul.f32 %v304, %v304
        %v400 = vmul.f32 %v305, %v305
        %v401 = vmul.f32 %v306, %v306
        %v402 = vmul.f32 %v307, %v307
        %v403 = vmul.f32 %v308, %v308
        %v404 = vmul.f32 %v309, %v309
        %v405 = vmul.f32 %v310, %v310
        %v406 = vmul.f32 %v311, %v311
        %v407 = vmul.f32 %v312, %v312
        %v408 = vmul.f32 %v313, %v313
        %v409 = vmul.f32 %v314, %v314
        %v410 = vmul.f32 %v315, %v315
        %v411 = vmul.f32 %v316, %v316
        %v412 = vmul.f32 %v317, %v317
        %v413 = vmul.f32 %v318, %v318
        %v414 = vmul.f32 %v319, %v319
        %v415 = vmul.f32 %v320, %v320
        %v416 = vmul.f32 %v321, %v321
        %v417 = vmul.f32 %v322, %v322
        %v418 = vmul.f32 %v323, %v323
        %v419 = vmul.f32 %v324, %v324
        %v420 = vmul.f32 %v325, %v325
        %v421 = vmul.f32 %v326, %v326
        %v422 = vmul.f32 %v327, %v327
        %v423 = vmul.f32 %v328, %v328
        %v424 = vmul.f32 %v329, %v329
        %v425 = vmul.f32 %v330, %v330
        %v426 = vmul.f32 %v331, %v331
        %v427 = vmul.f32 %v332, %v332
        %v428 = vmul.f32 %v333, %v333
        %v429 = vmul.f32 %v334, %v334
        %v430 = vsel %vm335, %v398, 0.0
        %v431 = vsel %vm335, %v400, 0.0
        %v432 = vadd.f32 %v430, %v431
        %v433 = vsel %vm335, %v402, 0.0
        %v434 = vadd.f32 %v432, %v433
        %v435 = vsel %vm335, %v404, 0.0
        %v436 = vadd.f32 %v434, %v435
        %v437 = vsel %vm335, %v406, 0.0
        %v438 = vadd.f32 %v436, %v437
        %v439 = vsel %vm335, %v408, 0.0
        %v440 = vadd.f32 %v438, %v439
        %v441 = vsel %vm335, %v410, 0.0
        %v442 = vadd.f32 %v440, %v441
        %v443 = vsel %vm335, %v412, 0.0
        %v444 = vadd.f32 %v442, %v443
        %v445 = vsel %vm335, %v414, 0.0
        %v446 = vadd.f32 %v444, %v445
        %v447 = vsel %vm335, %v416, 0.0
        %v448 = vadd.f32 %v446, %v447
        %v449 = vsel %vm335, %v418, 0.0
        %v450 = vadd.f32 %v448, %v449
        %v451 = vsel %vm335, %v420, 0.0
        %v452 = vadd.f32 %v450, %v451
        %v453 = vsel %vm335, %v422, 0.0
        %v454 = vadd.f32 %v452, %v453
        %v455 = vsel %vm335, %v424, 0.0
        %v456 = vadd.f32 %v454, %v455
        %v457 = vsel %vm335, %v426, 0.0
        %v458 = vadd.f32 %v456, %v457
        %v459 = vsel %vm335, %v428, 0.0
        %v460 = vadd.f32 %v458, %v459
        %v461 = vsel %vm335, %v399, 0.0
        %v462 = vsel %vm335, %v401, 0.0
        %v463 = vadd.f32 %v461, %v462
        %v464 = vsel %vm335, %v403, 0.0
        %v465 = vadd.f32 %v463, %v464
        %v466 = vsel %vm335, %v405, 0.0
        %v467 = vadd.f32 %v465, %v466
        %v468 = vsel %vm335, %v407, 0.0
        %v469 = vadd.f32 %v467, %v468
        %v470 = vsel %vm335, %v409, 0.0
        %v471 = vadd.f32 %v469, %v470
        %v472 = vsel %vm335, %v411, 0.0
        %v473 = vadd.f32 %v471, %v472
        %v474 = vsel %vm335, %v413, 0.0
        %v475 = vadd.f32 %v473, %v474
        %v476 = vsel %vm335, %v415, 0.0
        %v477 = vadd.f32 %v475, %v476
        %v478 = vsel %vm335, %v417, 0.0
        %v479 = vadd.f32 %v477, %v478
        %v480 = vsel %vm335, %v419, 0.0
        %v481 = vadd.f32 %v479, %v480
        %v482 = vsel %vm335, %v421, 0.0
        %v483 = vadd.f32 %v481, %v482
        %v484 = vsel %vm335, %v423, 0.0
        %v485 = vadd.f32 %v483, %v484
        %v486 = vsel %vm335, %v425, 0.0
        %v487 = vadd.f32 %v485, %v486
        %v488 = vsel %vm335, %v427, 0.0
        %v489 = vadd.f32 %v487, %v488
        %v490 = vsel %vm335, %v429, 0.0
        %v491 = vadd.f32 %v489, %v490
        %v492 = vsel %vm335, %v366, 0.0
        %493 = vadd.xlane.f32.xlu0 %v492
        %v494 = vpop.xlane.xlu0 %493
        %v495 = vsel %vm335, %v397, 0.0
        %496 = vadd.xlane.f32.xlu0 %v495
        %v497 = vpop.xlane.xlu0 %496
        %v498 = vsel %vm335, %v460, 0.0
        %499 = vadd.xlane.f32.xlu0 %v498
        %v500 = vpop.xlane.xlu0 %499
        %v501 = vsel %vm335, %v491, 0.0
        %502 = vadd.xlane.f32.xlu0 %v501
        %v503 = vpop.xlane.xlu0 %502
        %v504 = vrcp.pop 256.0
        %v505 = vmul.f32 %v494, %v504
        %v506 = vmul.f32 %v497, %v504
        %v507 = vmul.f32 %v505, 256.0
        %v508 = vmul.f32 %v506, 256.0
        %v509 = vmul.f32 %v507, %v505
        %v510 = vmul.f32 %v508, %v506
        %v511 = vsub.f32 %v500, %v509
        %v512 = vsub.f32 %v503, %v510
        %v513 = vmax.f32 %v511, 0.0
        %v514 = vmax.f32 %v512, 0.0
        %v515 = vrcp.pop 255.0
        %v516 = vmul.f32 %v513, %v515
        %v517 = vmul.f32 %v514, %v515
        %v518 = vrsqrt.pop %v516
        %v519 = vmul.f32 %v516, %v518
        %vm520 = vcmp.eq.f32.partialorder %v516, inf
        %v521 = vsel %vm520, %v516, %v519
        %vm522 = vcmp.eq.f32.partialorder %v516, 0.0
        %v523 = vand.u32 %v516, 2147483648
        %v524 = vsel %vm522, %v523, %v521
        %v525 = vrsqrt.pop %v517
        %v526 = vmul.f32 %v517, %v525
        %vm527 = vcmp.eq.f32.partialorder %v517, inf
        %v528 = vsel %vm527, %v517, %v526
        %vm529 = vcmp.eq.f32.partialorder %v517, 0.0
        %v530 = vand.u32 %v517, 2147483648
        %v531 = vsel %vm529, %v530, %v528
        %v532 = vadd.f32 %v492, %v495
        %v533 = vrot.slane %v532, 4
        %v534 = vadd.f32 %v532, %v533
        %v535 = vrot.slane %v534, 2
        %v536 = vadd.f32 %v534, %v535
        %v537 = vrot.slane %v536, 1
        %v538 = vadd.f32 %v536, %v537
        %v539 = vadd.f32 %v498, %v501
        %v540 = vrot.slane %v539, 4
        %v541 = vadd.f32 %v539, %v540
        %v542 = vrot.slane %v541, 2
        %v543 = vadd.f32 %v541, %v542
        %v544 = vrot.slane %v543, 1
        %v545 = vadd.f32 %v543, %v544
        %v546 = vmul.f32 %v538, %v504
        %v547 = vmul.f32 %v546, 256.0
        %v548 = vmul.f32 %v547, %v546
        %v549 = vsub.f32 %v545, %v548
        %v550 = vmax.f32 %v549, 0.0
        %v551 = vmul.f32 %v550, %v515
        %v552 = vrsqrt.pop %v551
        %v553 = vmul.f32 %v551, %v552
        %vm554 = vcmp.eq.f32.partialorder %v551, inf
        %v555 = vsel %vm554, %v551, %v553
        %vm556 = vcmp.eq.f32.partialorder %v551, 0.0
        %v557 = vand.u32 %v551, 2147483648
        %v558 = vsel %vm556, %v557, %v555
        %v559 = vld [vmem:[#allocation4] sm:$0xff]
        %v560 = vld [vmem:[#allocation4 + $0x8] sm:$0xff]
        %v561 = vld [vmem:[#allocation6] sm:$0xff]
        %v562 = vld [vmem:[#allocation6 + $0x8] sm:$0xff]
        %v564 = vsel %vm335, %v561, 0
        %v567 = vsel %vm335, %v562, 0
        %569 = vmatprep.subr.mxu0 0.0
        %570 = vmatpush1.msra.mxu0 %v524
        %571 = vmatprep.subr.mxu0 0.0
        %572 = vmatpush1.msra.mxu0 %v531
        %573 = vmatprep.subr.mxu0 0.0
        %574 = vmatpush1.msra.mxu0 0.0
        %575 = vmatprep.subr.mxu0 0.0
        %576 = vmatpush1.msra.mxu0 0.0
        %577 = vmatprep.subr.mxu0 0.0
        %578 = vmatpush1.msra.mxu0 0.0
        %579 = vmatprep.subr.mxu0 0.0
        %580 = vmatpush1.msra.mxu0 0.0
        %581 = vmatprep.subr.mxu0 0.0
        %582 = vmatpush1.msra.mxu0 0.0
        %583 = vmatprep.subr.mxu0 0.0
        %584 = vmatpush1.msra.mxu0 0.0
        %585 = vmatprep.subr.mxu0 0.0
        %586 = vmatpush1.msra.mxu0 0.0
        %587 = vmatprep.subr.mxu0 0.0
        %588 = vmatpush1.msra.mxu0 0.0
        %589 = vmatprep.subr.mxu0 0.0
        %590 = vmatpush1.msra.mxu0 0.0
        %591 = vmatprep.subr.mxu0 0.0
        %592 = vmatpush1.msra.mxu0 0.0
        %593 = vmatprep.subr.mxu0 0.0
        %594 = vmatpush1.msra.mxu0 0.0
        %595 = vmatprep.subr.mxu0 0.0
        %596 = vmatpush1.msra.mxu0 0.0
        %597 = vmatprep.subr.mxu0 0.0
        %598 = vmatpush1.msra.mxu0 0.0
        %599 = vmatprep.subr.mxu0 0.0
        %600 = vmatpush1.msra.mxu0 0.0
        %601 = vmatprep.subr.mxu0 0.0
        %602 = vmatpush1.msra.mxu0 0.0
        %603 = vmatprep.subr.mxu0 0.0
        %604 = vmatpush1.msra.mxu0 0.0
        %605 = vmatprep.subr.mxu0 0.0
        %606 = vmatpush1.msra.mxu0 0.0
        %607 = vmatprep.subr.mxu0 0.0
        %608 = vmatpush1.msra.mxu0 0.0
        %609 = vmatprep.subr.mxu0 0.0
        %610 = vmatpush1.msra.mxu0 0.0
        %611 = vmatprep.subr.mxu0 0.0
        %612 = vmatpush1.msra.mxu0 0.0
        %613 = vmatprep.subr.mxu0 0.0
        %614 = vmatpush1.msra.mxu0 0.0
        %615 = vmatprep.subr.mxu0 0.0
        %616 = vmatpush1.msra.mxu0 0.0
        %617 = vmatprep.subr.mxu0 0.0
        %618 = vmatpush1.msra.mxu0 0.0
        %619 = vmatprep.subr.mxu0 0.0
        %620 = vmatpush1.msra.mxu0 0.0
        %621 = vmatprep.subr.mxu0 0.0
        %622 = vmatpush1.msra.mxu0 0.0
        %623 = vmatprep.subr.mxu0 0.0
        %624 = vmatpush1.msra.mxu0 0.0
        %625 = vmatprep.subr.mxu0 0.0
        %626 = vmatpush1.msra.mxu0 0.0
        %627 = vmatprep.subr.mxu0 0.0
        %628 = vmatpush1.msra.mxu0 0.0
        %629 = vmatprep.subr.mxu0 0.0
        %630 = vmatpush1.msra.mxu0 0.0
        %631 = vmatprep.subr.mxu0 0.0
        %632 = vmatpush1.msra.mxu0 0.0
        %633 = vmatprep.mubr.f32.mxu0 0.0
        %634 = vmatmul.mubr.f32.gmra.mrb[0].mxu0 %v564
        %v635 = vpop.f32.mrb[0].mxu0
        %v636 = vadd.f32 0.0, %v635
        %v637 = vpop.f32.mrb[0].mxu0
        %638 = vmatprep.mubr.f32.mxu0 0.0
        %639 = vmatmul.mubr.f32.gmra.mrb[0].mxu0 %v567
        %v640 = vpop.f32.mrb[0].mxu0
        %v641 = vadd.f32 0.0, %v640
        %v642 = vpop.f32.mrb[0].mxu0
        %643 = vdwg.mxu0
        %v645 = vsel %vm335, %v559, 0
        %v648 = vsel %vm335, %v560, 0
        %650 = vmatprep.subr.mxu0 0.0
        %651 = vmatpush1.msra.mxu0 %v505
        %652 = vmatprep.subr.mxu0 0.0
        %653 = vmatpush1.msra.mxu0 %v506
        %654 = vmatprep.subr.mxu0 0.0
        %655 = vmatpush1.msra.mxu0 0.0
        %656 = vmatprep.subr.mxu0 0.0
        %657 = vmatpush1.msra.mxu0 0.0
        %658 = vmatprep.subr.mxu0 0.0
        %659 = vmatpush1.msra.mxu0 0.0
        %660 = vmatprep.subr.mxu0 0.0
        %661 = vmatpush1.msra.mxu0 0.0
        %662 = vmatprep.subr.mxu0 0.0
        %663 = vmatpush1.msra.mxu0 0.0
        %664 = vmatprep.subr.mxu0 0.0
        %665 = vmatpush1.msra.mxu0 0.0
        %666 = vmatprep.subr.mxu0 0.0
        %667 = vmatpush1.msra.mxu0 0.0
        %668 = vmatprep.subr.mxu0 0.0
        %669 = vmatpush1.msra.mxu0 0.0
        %670 = vmatprep.subr.mxu0 0.0
        %671 = vmatpush1.msra.mxu0 0.0
        %672 = vmatprep.subr.mxu0 0.0
        %673 = vmatpush1.msra.mxu0 0.0
        %674 = vmatprep.subr.mxu0 0.0
        %675 = vmatpush1.msra.mxu0 0.0
        %676 = vmatprep.subr.mxu0 0.0
        %677 = vmatpush1.msra.mxu0 0.0
        %678 = vmatprep.subr.mxu0 0.0
        %679 = vmatpush1.msra.mxu0 0.0
        %680 = vmatprep.subr.mxu0 0.0
        %681 = vmatpush1.msra.mxu0 0.0
        %682 = vmatprep.subr.mxu0 0.0
        %683 = vmatpush1.msra.mxu0 0.0
        %684 = vmatprep.subr.mxu0 0.0
        %685 = vmatpush1.msra.mxu0 0.0
        %686 = vmatprep.subr.mxu0 0.0
        %687 = vmatpush1.msra.mxu0 0.0
        %688 = vmatprep.subr.mxu0 0.0
        %689 = vmatpush1.msra.mxu0 0.0
        %690 = vmatprep.subr.mxu0 0.0
        %691 = vmatpush1.msra.mxu0 0.0
        %692 = vmatprep.subr.mxu0 0.0
        %693 = vmatpush1.msra.mxu0 0.0
        %694 = vmatprep.subr.mxu0 0.0
        %695 = vmatpush1.msra.mxu0 0.0
        %696 = vmatprep.subr.mxu0 0.0
        %697 = vmatpush1.msra.mxu0 0.0
        %698 = vmatprep.subr.mxu0 0.0
        %699 = vmatpush1.msra.mxu0 0.0
        %700 = vmatprep.subr.mxu0 0.0
        %701 = vmatpush1.msra.mxu0 0.0
        %702 = vmatprep.subr.mxu0 0.0
        %703 = vmatpush1.msra.mxu0 0.0
        %704 = vmatprep.subr.mxu0 0.0
        %705 = vmatpush1.msra.mxu0 0.0
        %706 = vmatprep.subr.mxu0 0.0
        %707 = vmatpush1.msra.mxu0 0.0
        %708 = vmatprep.subr.mxu0 0.0
        %709 = vmatpush1.msra.mxu0 0.0
        %710 = vmatprep.subr.mxu0 0.0
        %711 = vmatpush1.msra.mxu0 0.0
        %712 = vmatprep.subr.mxu0 0.0
        %713 = vmatpush1.msra.mxu0 0.0
        %714 = vmatprep.mubr.f32.mxu0 0.0
        %715 = vmatmul.mubr.f32.gmra.mrb[0].mxu0 %v645
        %v716 = vpop.f32.mrb[0].mxu0
        %v717 = vadd.f32 %v636, %v716
        %v718 = vpop.f32.mrb[0].mxu0
        %719 = vmatprep.mubr.f32.mxu0 0.0
        %720 = vmatmul.mubr.f32.gmra.mrb[0].mxu0 %v648
        %v721 = vpop.f32.mrb[0].mxu0
        %v722 = vadd.f32 %v641, %v721
        %v723 = vpop.f32.mrb[0].mxu0
        %724 = vdwg.mxu0
        %v725 = vxor.u32 %v717, 2147483648
        %v726 = vxor.u32 %v722, 2147483648
        %v727 = vmul.f32 %v725, 1.442695
        %v728 = vpow.pop %v727
        %v729 = vmul.f32 %v726, 1.442695
        %v730 = vpow.pop %v729
        %v731 = vadd.f32 %v728, 1.0
        %v732 = vadd.f32 %v730, 1.0
        %v733 = vrcp.pop %v731
        %v734 = vmul.f32 1.0, %v733
        %v735 = vrcp.pop %v732
        %v736 = vmul.f32 1.0, %v735
        %v737 = vld [vmem:[#allocation7] sm:$0xff]
        %v738 = vld [vmem:[#allocation7 + $0x8] sm:$0xff]
        %v739 = vld [vmem:[#allocation9] sm:$0xff]
        %v740 = vld [vmem:[#allocation9 + $0x8] sm:$0xff]
        %v742 = vsel %vm335, %v558, 0
        %744 = vmatprep.subr.mxu0 0.0
        %745 = vmatpush1.msra.mxu0 %v739
        %746 = vmatprep.subr.mxu0 0.0
        %747 = vmatpush1.msra.mxu0 %v740
        %748 = vmatprep.subr.mxu0 0.0
        %749 = vmatpush1.msra.mxu0 0.0
        %750 = vmatprep.subr.mxu0 0.0
        %751 = vmatpush1.msra.mxu0 0.0
        %752 = vmatprep.subr.mxu0 0.0
        %753 = vmatpush1.msra.mxu0 0.0
        %754 = vmatprep.subr.mxu0 0.0
        %755 = vmatpush1.msra.mxu0 0.0
        %756 = vmatprep.subr.mxu0 0.0
        %757 = vmatpush1.msra.mxu0 0.0
        %758 = vmatprep.subr.mxu0 0.0
        %759 = vmatpush1.msra.mxu0 0.0
        %760 = vmatprep.subr.mxu0 0.0
        %761 = vmatpush1.msra.mxu0 0.0
        %762 = vmatprep.subr.mxu0 0.0
        %763 = vmatpush1.msra.mxu0 0.0
        %764 = vmatprep.subr.mxu0 0.0
        %765 = vmatpush1.msra.mxu0 0.0
        %766 = vmatprep.subr.mxu0 0.0
        %767 = vmatpush1.msra.mxu0 0.0
        %768 = vmatprep.subr.mxu0 0.0
        %769 = vmatpush1.msra.mxu0 0.0
        %770 = vmatprep.subr.mxu0 0.0
        %771 = vmatpush1.msra.mxu0 0.0
        %772 = vmatprep.subr.mxu0 0.0
        %773 = vmatpush1.msra.mxu0 0.0
        %774 = vmatprep.subr.mxu0 0.0
        %775 = vmatpush1.msra.mxu0 0.0
        %776 = vmatprep.subr.mxu0 0.0
        %777 = vmatpush1.msra.mxu0 0.0
        %778 = vmatprep.subr.mxu0 0.0
        %779 = vmatpush1.msra.mxu0 0.0
        %780 = vmatprep.subr.mxu0 0.0
        %781 = vmatpush1.msra.mxu0 0.0
        %782 = vmatprep.subr.mxu0 0.0
        %783 = vmatpush1.msra.mxu0 0.0
        %784 = vmatprep.subr.mxu0 0.0
        %785 = vmatpush1.msra.mxu0 0.0
        %786 = vmatprep.subr.mxu0 0.0
        %787 = vmatpush1.msra.mxu0 0.0
        %788 = vmatprep.subr.mxu0 0.0
        %789 = vmatpush1.msra.mxu0 0.0
        %790 = vmatprep.subr.mxu0 0.0
        %791 = vmatpush1.msra.mxu0 0.0
        %792 = vmatprep.subr.mxu0 0.0
        %793 = vmatpush1.msra.mxu0 0.0
        %794 = vmatprep.subr.mxu0 0.0
        %795 = vmatpush1.msra.mxu0 0.0
        %796 = vmatprep.subr.mxu0 0.0
        %797 = vmatpush1.msra.mxu0 0.0
        %798 = vmatprep.subr.mxu0 0.0
        %799 = vmatpush1.msra.mxu0 0.0
        %800 = vmatprep.subr.mxu0 0.0
        %801 = vmatpush1.msra.mxu0 0.0
        %802 = vmatprep.subr.mxu0 0.0
        %803 = vmatpush1.msra.mxu0 0.0
        %804 = vmatprep.subr.mxu0 0.0
        %805 = vmatpush1.msra.mxu0 0.0
        %806 = vmatprep.subr.mxu0 0.0
        %807 = vmatpush1.msra.mxu0 0.0
        %808 = vmatprep.mubr.f32.mxu0 0.0
        %809 = vmatmul.mubr.f32.gmra.mrb[0].mxu0 %v742
        %v810 = vpop.f32.mrb[0].mxu0
        %v811 = vadd.f32 0.0, %v810
        %v812 = vpop.f32.mrb[0].mxu0
        %813 = vdwg.mxu0
        %v815 = vsel %vm335, %v546, 0
        %817 = vmatprep.subr.mxu0 0.0
        %818 = vmatpush1.msra.mxu0 %v737
        %819 = vmatprep.subr.mxu0 0.0
        %820 = vmatpush1.msra.mxu0 %v738
        %821 = vmatprep.subr.mxu0 0.0
        %822 = vmatpush1.msra.mxu0 0.0
        %823 = vmatprep.subr.mxu0 0.0
        %824 = vmatpush1.msra.mxu0 0.0
        %825 = vmatprep.subr.mxu0 0.0
        %826 = vmatpush1.msra.mxu0 0.0
        %827 = vmatprep.subr.mxu0 0.0
        %828 = vmatpush1.msra.mxu0 0.0
        %829 = vmatprep.subr.mxu0 0.0
        %830 = vmatpush1.msra.mxu0 0.0
        %831 = vmatprep.subr.mxu0 0.0
        %832 = vmatpush1.msra.mxu0 0.0
        %833 = vmatprep.subr.mxu0 0.0
        %834 = vmatpush1.msra.mxu0 0.0
        %835 = vmatprep.subr.mxu0 0.0
        %836 = vmatpush1.msra.mxu0 0.0
        %837 = vmatprep.subr.mxu0 0.0
        %838 = vmatpush1.msra.mxu0 0.0
        %839 = vmatprep.subr.mxu0 0.0
        %840 = vmatpush1.msra.mxu0 0.0
        %841 = vmatprep.subr.mxu0 0.0
        %842 = vmatpush1.msra.mxu0 0.0
        %843 = vmatprep.subr.mxu0 0.0
        %844 = vmatpush1.msra.mxu0 0.0
        %845 = vmatprep.subr.mxu0 0.0
        %846 = vmatpush1.msra.mxu0 0.0
        %847 = vmatprep.subr.mxu0 0.0
        %848 = vmatpush1.msra.mxu0 0.0
        %849 = vmatprep.subr.mxu0 0.0
        %850 = vmatpush1.msra.mxu0 0.0
        %851 = vmatprep.subr.mxu0 0.0
        %852 = vmatpush1.msra.mxu0 0.0
        %853 = vmatprep.subr.mxu0 0.0
        %854 = vmatpush1.msra.mxu0 0.0
        %855 = vmatprep.subr.mxu0 0.0
        %856 = vmatpush1.msra.mxu0 0.0
        %857 = vmatprep.subr.mxu0 0.0
        %858 = vmatpush1.msra.mxu0 0.0
        %859 = vmatprep.subr.mxu0 0.0
        %860 = vmatpush1.msra.mxu0 0.0
        %861 = vmatprep.subr.mxu0 0.0
        %862 = vmatpush1.msra.mxu0 0.0
        %863 = vmatprep.subr.mxu0 0.0
        %864 = vmatpush1.msra.mxu0 0.0
        %865 = vmatprep.subr.mxu0 0.0
        %866 = vmatpush1.msra.mxu0 0.0
        %867 = vmatprep.subr.mxu0 0.0
        %868 = vmatpush1.msra.mxu0 0.0
        %869 = vmatprep.subr.mxu0 0.0
        %870 = vmatpush1.msra.mxu0 0.0
        %871 = vmatprep.subr.mxu0 0.0
        %872 = vmatpush1.msra.mxu0 0.0
        %873 = vmatprep.subr.mxu0 0.0
        %874 = vmatpush1.msra.mxu0 0.0
        %875 = vmatprep.subr.mxu0 0.0
        %876 = vmatpush1.msra.mxu0 0.0
        %877 = vmatprep.subr.mxu0 0.0
        %878 = vmatpush1.msra.mxu0 0.0
        %879 = vmatprep.subr.mxu0 0.0
        %880 = vmatpush1.msra.mxu0 0.0
        %881 = vmatprep.mubr.f32.mxu0 0.0
        %882 = vmatmul.mubr.f32.gmra.mrb[0].mxu0 %v815
        %v883 = vpop.f32.mrb[0].mxu0
        %v884 = vadd.f32 %v811, %v883
        %v885 = vpop.f32.mrb[0].mxu0
        %886 = vdwg.mxu0
        %v887 = vxor.u32 %v884, 2147483648
        %v888 = vmul.f32 %v887, 1.442695
        %v889 = vpow.pop %v888
        %v890 = vadd.f32 %v889, 1.0
        %v891 = vrcp.pop %v890
        %v892 = vmul.f32 1.0, %v891
        %894 = vset.pattern.permute.xlu0 0
        %895 = vperm.xlu0 %894, %v734
        %v896 = vpop.permute.xlu0 %895
        %899 = vset.pattern.permute.xlu0 0
        %900 = vperm.xlu0 %899, %v736
        %v901 = vpop.permute.xlu0 %900
        %v903 = vlaneseq
        %v904 = vshrl.u32 %v903, 7
        %v905 = vsub.s32 0, %v904
        %v906 = vrot.slane %v892, %v905
        %v907 = vadd.f32 %v896, %v906
        %v908 = vadd.f32 %v901, %v906
        %v909 = vmul.f32 %v907, 0.5
        %v910 = vmul.f32 %v908, 0.5
        %911 = vst.msk [vmem:[%s302] sm:$0xff] %vm335, %v909
        %912 = vst.msk [vmem:[%s302 + $0x8] sm:$0xff] %vm335, %v910
        %p913 = scmp.lt.s32.totalorder %s21, 1
        %s914 = scalar_select %p913, %s21, 1
        %s915 = smul.addr %s914, 2
        %s916 = smul.addr %s915, 8
        %s917 = scalar_lea.vmem %s5, %s916
        // Predicated region
        $region61: #{c2f_with_mca_forward.3} parent=39 // pred_check
          %p918 = pneg %p149
        $region62: #{c2f_with_mca_forward.3} parent=39 // pred_check_branch
          %920 = sbr.rel (%p918) target = $region64
        $region63: #{c2f_with_mca_forward.3} parent=39 // pred_region
          _
        $region64: #{c2f_with_mca_forward.3} parent=39 // pred_fallthru
          _
      $region40: #{c2f_with_mca_forward.3} parent=5 // pred_fallthru
        _
      %p921 = scmp.le.s32.totalorder 2, %s16
      // Predicated region
      $region65: #{c2f_with_mca_forward.3} parent=5 // pred_check
        %p922 = pneg %p921
      $region66: #{c2f_with_mca_forward.3} parent=5 // pred_check_branch
        %924 = sbr.rel (%p922) target = $region68
      $region67: #{c2f_with_mca_forward.3} parent=5 // pred_region
        %s925 = ssub.s32 %s16, 2
        // Predicated region
        $region69: #{c2f_with_mca_forward.3} parent=67 // pred_check
          %p926 = pneg %p155
        $region70: #{c2f_with_mca_forward.3} parent=67 // pred_check_branch
          %928 = sbr.rel (%p926) target = $region72
        $region71: #{c2f_with_mca_forward.3} parent=67 // pred_region
          %p929 = scmp.lt.s32.totalorder %s22, 1
          %s930 = scalar_select %p929, %s22, 1
          %s931 = smul.addr %s930, 2
          %s932 = smul.addr %s931, 8
          %s933 = scalar_lea.vmem %s5, %s932
        $region72: #{c2f_with_mca_forward.3} parent=67 // pred_fallthru
          _
      $region68: #{c2f_with_mca_forward.3} parent=5 // pred_fallthru
        _
    $region6: #{c2f_with_mca_forward.3} parent=1 // loop_footer
      %s20 = sadd.s32 1, %s16
    $region7: #{c2f_with_mca_forward.3} parent=1 // loop_footer_branch
      %15 = sbr.rel target = $region3
    $region8: #{c2f_with_mca_forward.3} parent=1 // loop_exit
      _
    %934 = vsyncpa [#allocation3], 1
    %s935 = scalar_lea.sflag [#allocation3], 1
    %936 = vsyncpa %s935, 1
    %937 = vsyncpa [#allocation5], 1
    %938 = vsyncpa [#allocation8], 1

// kernel: c2f_with_mca_forward.4
$region0: #{c2f_with_mca_forward.4}
  #allocation0 [shape = 'u32[]', space=smem, size = 0x4, offset = 0x4, fixed_abs, tag = 'smem constant byte address 0x4 - core index']
  #allocation1 [shape = 'u32[144,128]{1,0:T(1,128)}', space=vmem, size = 0x12000, scoped, tag = 'internal scratch']
  %s0 = inlined_call_operand.vmem [shape: f32[2,16,256], index: 0, kind: input, shape index: {}]
  %s1 = inlined_call_operand.vmem [shape: f32[2,1,256], index: 1, kind: input, shape index: {}]
  %s2 = inlined_call_operand.vmem [shape: bf16[16,16], index: 2, kind: input, shape index: {}]
  %s3 = inlined_call_operand.vmem [shape: f32[16,1], index: 3, kind: input, shape index: {}]
  %s4 = inlined_call_operand.vmem [shape: bf16[2,8,256], index: 4, kind: output, shape index: {0}]
  %s5 = inlined_call_operand.vmem [shape: bf16[2,8,256], index: 5, kind: output, shape index: {1}]
  %6 = xla_tuple %s4, %s5
  %s7 = sld [smem:[#allocation0]]
  $region57: #{c2f_with_mca_forward.4} parent=0
    _
  %s9 = ssub.s32 1, %s7
  %s10 = scalar_select 0, %s9, %s7
  loop: start=0, step=1, limit=4
  $region2: #{c2f_with_mca_forward.4} parent=0 // loop_pre_header
    _
  $region3: #{c2f_with_mca_forward.4} parent=0 // loop_header
    %s12 = sphi 0, %s16
    %p13 = scmp.ge.s32.totalorder %s12, 4
    %s19 = sphi 0, %s31
    %s20 = sphi 0, %s27
    %s21 = sphi 0, %s19
    %s22 = sphi 0, %s20
    %s23 = sphi 0, %s21
    %s24 = sphi 0, %s22
    %s36 = sphi 0, %s38
    %s39 = sphi 0, %s36
    %s40 = sphi 0, %s39
    %s56 = sphi 0, %s40
    %s64 = sphi 0, %s66
    %s67 = sphi 0, %s64
    %s68 = sphi 0, %s67
    %s84 = sphi 0, %s68
    %s88 = sphi 0, %s88
    %s90 = sphi 0, %s88
    %s91 = sphi 0, %s90
    %s105 = sphi 0, %s91
    %s109 = sphi 0, %s109
    %s111 = sphi 0, %s109
    %s112 = sphi 0, %s111
    %s126 = sphi 0, %s112
    %s134 = sphi 0, %s136
    %s137 = sphi 0, %s134
    %s138 = sphi 0, %s137
    %s154 = sphi 0, %s138
    %s162 = sphi 0, %s164
    %s165 = sphi 0, %s162
    %s166 = sphi 0, %s165
    %s182 = sphi 0, %s166
  $region4: #{c2f_with_mca_forward.4} parent=0 // loop_header_branch
    %15 = sbr.rel (%p13) target = $region8
  $region5: #{c2f_with_mca_forward.4} parent=0 // loop_body
    %s17 = ssub.s32 %s12, 1
    %s18 = ssub.s32 %s12, 2
    %s25 = sadd.s32 1, %s20
    %p26 = scmp.ge.s32.totalorder %s25, 1
    %s27 = scalar_select %p26, 0, %s25
    %s28 = sadd.s32 1, %s19
    %s29 = scalar_select %p26, %s28, %s19
    %p30 = scmp.ge.s32.totalorder %s29, 2
    %s31 = scalar_select %p30, 0, %s29
    %s32 = ssub.s32 %s19, %s31
    %s33 = ssub.s32 %s20, %s27
    %s34 = sor.u32 %s32, %s33
    %p35 = scmp.eq.s32.totalorder %s34, 0
    %s37 = sadd.s32 %s36, 1
    %s38 = scalar_select %p35, %s36, %s37
    %p41 = pneg %p35
    %p42 = scmp.eq.s32.totalorder %s12, 1
    %p43 = por %p41, %p42
    %p44 = scmp.ne.s32.totalorder %s36, %s39
    %p45 = scmp.eq.s32.totalorder %s12, 0
    %p46 = por %p44, %p45
    %p47 = scmp.ne.s32.totalorder %s36, %s39
    %p48 = scmp.eq.s32.totalorder %s17, 1
    %p49 = por %p47, %p48
    %p50 = scmp.ne.s32.totalorder %s39, %s40
    %p51 = scmp.eq.s32.totalorder %s17, 0
    %p52 = por %p50, %p51
    %p53 = scmp.ne.s32.totalorder %s39, %s40
    %p54 = scmp.eq.s32.totalorder %s18, 1
    %p55 = por %p53, %p54
    %p57 = scmp.ne.s32.totalorder %s40, %s56
    %p58 = scmp.eq.s32.totalorder %s18, 0
    %p59 = por %p57, %p58
    %s60 = ssub.s32 %s19, %s31
    %s61 = ssub.s32 %s20, %s27
    %s62 = sor.u32 %s60, %s61
    %p63 = scmp.eq.s32.totalorder %s62, 0
    %s65 = sadd.s32 %s64, 1
    %s66 = scalar_select %p63, %s64, %s65
    %p69 = pneg %p63
    %p70 = scmp.eq.s32.totalorder %s12, 1
    %p71 = por %p69, %p70
    %p72 = scmp.ne.s32.totalorder %s64, %s67
    %p73 = scmp.eq.s32.totalorder %s12, 0
    %p74 = por %p72, %p73
    %p75 = scmp.ne.s32.totalorder %s64, %s67
    %p76 = scmp.eq.s32.totalorder %s17, 1
    %p77 = por %p75, %p76
    %p78 = scmp.ne.s32.totalorder %s67, %s68
    %p79 = scmp.eq.s32.totalorder %s17, 0
    %p80 = por %p78, %p79
    %p81 = scmp.ne.s32.totalorder %s67, %s68
    %p82 = scmp.eq.s32.totalorder %s18, 1
    %p83 = por %p81, %p82
    %p85 = scmp.ne.s32.totalorder %s68, %s84
    %p86 = scmp.eq.s32.totalorder %s18, 0
    %p87 = por %p85, %p86
    %s89 = sadd.s32 %s88, 1
    %p92 = scmp.eq.s32.totalorder %s12, 1
    %p93 = scmp.ne.s32.totalorder %s88, %s90
    %p94 = scmp.eq.s32.totalorder %s12, 0
    %p95 = por %p93, %p94
    %p96 = scmp.ne.s32.totalorder %s88, %s90
    %p97 = scmp.eq.s32.totalorder %s17, 1
    %p98 = por %p96, %p97
    %p99 = scmp.ne.s32.totalorder %s90, %s91
    %p100 = scmp.eq.s32.totalorder %s17, 0
    %p101 = por %p99, %p100
    %p102 = scmp.ne.s32.totalorder %s90, %s91
    %p103 = scmp.eq.s32.totalorder %s18, 1
    %p104 = por %p102, %p103
    %p106 = scmp.ne.s32.totalorder %s91, %s105
    %p107 = scmp.eq.s32.totalorder %s18, 0
    %p108 = por %p106, %p107
    %s110 = sadd.s32 %s109, 1
    %p113 = scmp.eq.s32.totalorder %s12, 1
    %p114 = scmp.ne.s32.totalorder %s109, %s111
    %p115 = scmp.eq.s32.totalorder %s12, 0
    %p116 = por %p114, %p115
    %p117 = scmp.ne.s32.totalorder %s109, %s111
    %p118 = scmp.eq.s32.totalorder %s17, 1
    %p119 = por %p117, %p118
    %p120 = scmp.ne.s32.totalorder %s111, %s112
    %p121 = scmp.eq.s32.totalorder %s17, 0
    %p122 = por %p120, %p121
    %p123 = scmp.ne.s32.totalorder %s111, %s112
    %p124 = scmp.eq.s32.totalorder %s18, 1
    %p125 = por %p123, %p124
    %p127 = scmp.ne.s32.totalorder %s112, %s126
    %p128 = scmp.eq.s32.totalorder %s18, 0
    %p129 = por %p127, %p128
    %s130 = ssub.s32 %s19, %s31
    %s131 = ssub.s32 %s20, %s27
    %s132 = sor.u32 %s130, %s131
    %p133 = scmp.eq.s32.totalorder %s132, 0
    %s135 = sadd.s32 %s134, 1
    %s136 = scalar_select %p133, %s134, %s135
    %p139 = pneg %p133
    %p140 = scmp.eq.s32.totalorder %s12, 1
    %p141 = por %p139, %p140
    %p142 = scmp.ne.s32.totalorder %s134, %s137
    %p143 = scmp.eq.s32.totalorder %s12, 0
    %p144 = por %p142, %p143
    %p145 = scmp.ne.s32.totalorder %s134, %s137
    %p146 = scmp.eq.s32.totalorder %s17, 1
    %p147 = por %p145, %p146
    %p148 = scmp.ne.s32.totalorder %s137, %s138
    %p149 = scmp.eq.s32.totalorder %s17, 0
    %p150 = por %p148, %p149
    %p151 = scmp.ne.s32.totalorder %s137, %s138
    %p152 = scmp.eq.s32.totalorder %s18, 1
    %p153 = por %p151, %p152
    %p155 = scmp.ne.s32.totalorder %s138, %s154
    %p156 = scmp.eq.s32.totalorder %s18, 0
    %p157 = por %p155, %p156
    %s158 = ssub.s32 %s19, %s31
    %s159 = ssub.s32 %s20, %s27
    %s160 = sor.u32 %s158, %s159
    %p161 = scmp.eq.s32.totalorder %s160, 0
    %s163 = sadd.s32 %s162, 1
    %s164 = scalar_select %p161, %s162, %s163
    %p167 = pneg %p161
    %p168 = scmp.eq.s32.totalorder %s12, 1
    %p169 = por %p167, %p168
    %p170 = scmp.ne.s32.totalorder %s162, %s165
    %p171 = scmp.eq.s32.totalorder %s12, 0
    %p172 = por %p170, %p171
    %p173 = scmp.ne.s32.totalorder %s162, %s165
    %p174 = scmp.eq.s32.totalorder %s17, 1
    %p175 = por %p173, %p174
    %p176 = scmp.ne.s32.totalorder %s165, %s166
    %p177 = scmp.eq.s32.totalorder %s17, 0
    %p178 = por %p176, %p177
    %p179 = scmp.ne.s32.totalorder %s165, %s166
    %p180 = scmp.eq.s32.totalorder %s18, 1
    %p181 = por %p179, %p180
    %p183 = scmp.ne.s32.totalorder %s166, %s182
    %p184 = scmp.eq.s32.totalorder %s18, 0
    %p185 = por %p183, %p184
    %p186 = scmp.le.s32.totalorder 1, %s12
    %p187 = scmp.lt.s32.totalorder %s12, 3
    %p188 = pnand %p186, %p187
    %p189 = pneg %p188
    // Predicated region
    $region9: #{c2f_with_mca_forward.4} parent=5 // pred_check
      _
    $region10: #{c2f_with_mca_forward.4} parent=5 // pred_check_branch
      %191 = sbr.rel (%p188) target = $region12
    $region11: #{c2f_with_mca_forward.4} parent=5 // pred_region
      %s192 = ssub.s32 %s12, 1
      // Predicated region
      $region13: #{c2f_with_mca_forward.4} parent=11 // pred_check
        %p193 = pneg %p101
      $region14: #{c2f_with_mca_forward.4} parent=11 // pred_check_branch
        %195 = sbr.rel (%p193) target = $region16
      $region15: #{c2f_with_mca_forward.4} parent=11 // pred_region
        _
      $region16: #{c2f_with_mca_forward.4} parent=11 // pred_fallthru
        _
      // Predicated region
      $region17: #{c2f_with_mca_forward.4} parent=11 // pred_check
        %p196 = pneg %p122
      $region18: #{c2f_with_mca_forward.4} parent=11 // pred_check_branch
        %198 = sbr.rel (%p196) target = $region20
      $region19: #{c2f_with_mca_forward.4} parent=11 // pred_region
        _
      $region20: #{c2f_with_mca_forward.4} parent=11 // pred_fallthru
        _
    $region12: #{c2f_with_mca_forward.4} parent=5 // pred_fallthru
      _
    %p199 = scmp.lt.s32.totalorder %s12, 2
    // Predicated region
    $region21: #{c2f_with_mca_forward.4} parent=5 // pred_check
      %p200 = pneg %p199
    $region22: #{c2f_with_mca_forward.4} parent=5 // pred_check_branch
      %202 = sbr.rel (%p200) target = $region24
    $region23: #{c2f_with_mca_forward.4} parent=5 // pred_region
      // Predicated region
      $region25: #{c2f_with_mca_forward.4} parent=23 // pred_check
        %p203 = pneg %p46
      $region26: #{c2f_with_mca_forward.4} parent=23 // pred_check_branch
        %205 = sbr.rel (%p203) target = $region28
      $region27: #{c2f_with_mca_forward.4} parent=23 // pred_region
        %s206 = smul.u32 2, %s20
        %p207 = scmp.lt.s32.totalorder %s19, 1
        %s208 = scalar_select %p207, %s19, 1
        %p209 = scmp.lt.s32.totalorder %s206, 1
        %s210 = scalar_select %p209, %s206, 1
        %s211 = smul.addr %s208, 4
        %s212 = sadd.s32 %s210, %s211
        %s213 = smul.addr %s212, 8
        %s214 = scalar_lea.vmem %s0, %s213
        %s215 = smul.u32 2, %s20
      $region28: #{c2f_with_mca_forward.4} parent=23 // pred_fallthru
        _
      // Predicated region
      $region29: #{c2f_with_mca_forward.4} parent=23 // pred_check
        %p216 = pneg %p74
      $region30: #{c2f_with_mca_forward.4} parent=23 // pred_check_branch
        %218 = sbr.rel (%p216) target = $region32
      $region31: #{c2f_with_mca_forward.4} parent=23 // pred_region
        %s219 = smul.u32 2, %s20
        %p220 = scmp.lt.s32.totalorder %s19, 1
        %s221 = scalar_select %p220, %s19, 1
        %p222 = scmp.lt.s32.totalorder %s219, 1
        %s223 = scalar_select %p222, %s219, 1
        %s224 = smul.addr %s221, 2
        %s225 = sadd.s32 %s223, %s224
        %s226 = scalar_lea.vmem %s1, %s225
        %s227 = smul.u32 2, %s20
      $region32: #{c2f_with_mca_forward.4} parent=23 // pred_fallthru
        _
    $region24: #{c2f_with_mca_forward.4} parent=5 // pred_fallthru
      _
    %p228 = scmp.le.s32.totalorder 1, %s12
    %p229 = scmp.lt.s32.totalorder %s12, 3
    %p230 = pnand %p228, %p229
    %p231 = pneg %p230
    // Predicated region
    $region33: #{c2f_with_mca_forward.4} parent=5 // pred_check
      _
    $region34: #{c2f_with_mca_forward.4} parent=5 // pred_check_branch
      %233 = sbr.rel (%p230) target = $region36
    $region35: #{c2f_with_mca_forward.4} parent=5 // pred_region
      %s234 = ssub.s32 %s12, 1
      %s235 = smul.u32 2, %s22
      %p236 = scmp.lt.s32.totalorder %s21, 1
      %s237 = scalar_select %p236, %s21, 1
      %p238 = scmp.lt.s32.totalorder %s235, 1
      %s239 = scalar_select %p238, %s235, 1
      %s240 = smul.addr %s237, 4
      %s241 = sadd.s32 %s239, %s240
      %s242 = smul.addr %s241, 8
      %s243 = scalar_lea.vmem %s0, %s242
      %p244 = pneg %p52
      %p245 = pneg %p49
      %s246 = smul.u32 2, %s22
      %p247 = scmp.lt.s32.totalorder %s21, 1
      %s248 = scalar_select %p247, %s21, 1
      %p249 = scmp.lt.s32.totalorder %s246, 1
      %s250 = scalar_select %p249, %s246, 1
      %s251 = smul.addr %s248, 2
      %s252 = sadd.s32 %s250, %s251
      %s253 = scalar_lea.vmem %s1, %s252
      %p254 = pneg %p80
      %p255 = pneg %p77
      %p256 = pneg %p101
      %p257 = pneg %p98
      %p258 = pneg %p122
      %p259 = pneg %p119
      %p260 = pneg %p150
      %p261 = pneg %p147
      %s262 = smul.u32 2, %s22
      %p263 = scmp.lt.s32.totalorder %s21, 1
      %s264 = scalar_select %p263, %s21, 1
      %p265 = scmp.lt.s32.totalorder %s262, 1
      %s266 = scalar_select %p265, %s262, 1
      %s267 = smul.addr %s264, 2
      %s268 = sadd.s32 %s266, %s267
      %s269 = smul.addr %s268, 4
      %s270 = scalar_lea.vmem %s4, %s269
      %p271 = pneg %p178
      %p272 = pneg %p175
      %s273 = smul.u32 2, %s22
      %p274 = scmp.lt.s32.totalorder %s21, 1
      %s275 = scalar_select %p274, %s21, 1
      %p276 = scmp.lt.s32.totalorder %s273, 1
      %s277 = scalar_select %p276, %s273, 1
      %s278 = smul.addr %s275, 2
      %s279 = sadd.s32 %s277, %s278
      %s280 = smul.addr %s279, 4
      %s281 = scalar_lea.vmem %s5, %s280
      %s282 = smul.u32 2, %s22
      %p283 = scmp.lt.s32.totalorder %s21, 1
      %s284 = scalar_select %p283, %s21, 1
      %p285 = scmp.lt.s32.totalorder %s282, 1
      %s286 = scalar_select %p285, %s282, 1
      %s287 = smul.addr %s284, 4
      %s288 = sadd.s32 %s286, %s287
      %s289 = smul.addr %s288, 8
      %s290 = scalar_lea.vmem %s0, %s289
      %s291 = smul.u32 2, %s22
      %s292 = smul.u32 2, %s22
      %p293 = scmp.lt.s32.totalorder %s21, 1
      %s294 = scalar_select %p293, %s21, 1
      %p295 = scmp.lt.s32.totalorder %s292, 1
      %s296 = scalar_select %p295, %s292, 1
      %s297 = smul.addr %s294, 2
      %s298 = sadd.s32 %s296, %s297
      %s299 = scalar_lea.vmem %s1, %s298
      %s300 = smul.u32 2, %s22
      %s301 = smul.u32 2, %s22
      %p302 = scmp.lt.s32.totalorder %s21, 1
      %s303 = scalar_select %p302, %s21, 1
      %p304 = scmp.lt.s32.totalorder %s301, 1
      %s305 = scalar_select %p304, %s301, 1
      %s306 = smul.addr %s303, 2
      %s307 = sadd.s32 %s305, %s306
      %s308 = smul.addr %s307, 4
      %s309 = scalar_lea.vmem %s4, %s308
      %s310 = smul.u32 2, %s22
      %s311 = smul.u32 2, %s22
      %p312 = scmp.lt.s32.totalorder %s21, 1
      %s313 = scalar_select %p312, %s21, 1
      %p314 = scmp.lt.s32.totalorder %s311, 1
      %s315 = scalar_select %p314, %s311, 1
      %s316 = smul.addr %s313, 2
      %s317 = sadd.s32 %s315, %s316
      %s318 = smul.addr %s317, 4
      %s319 = scalar_lea.vmem %s5, %s318
      %s320 = smul.u32 2, %s22
      %v322 = vld [vmem:[%s2] sm:$0xf]
      %v323 = vld [vmem:[%s2 + $0x4] sm:$0xf]
      %v324 = vld [vmem:[%s290] sm:$0xff]
      %v325 = vld [vmem:[%s290 + $0x8] sm:$0xff]
      %v326 = vld [vmem:[%s290 + $0x10] sm:$0xff]
      %v327 = vld [vmem:[%s290 + $0x18] sm:$0xff]
      %v328 = vpack.c.bf16 %v326, %v324
      %v329 = vpack.c.bf16 %v327, %v325
      %v332 = vunpack.c.l.b16 %v322
      %v333 = vunpack.c.l.b16 %v323
      %v334 = vpack.c.b16 %v333, %v332
      %vm335 = vcmask 130048
      %v337 = vsel %vm335, %v334, 0
      %339 = vmatprep.subr.bf16.mxu0 %v329
      %340 = vmatpush1.bf16.msra.mxu0 %v328
      %341 = vmatprep.subr.bf16.mxu0 0
      %342 = vmatpush1.bf16.msra.mxu0 0
      %343 = vmatprep.subr.bf16.mxu0 0
      %344 = vmatpush1.bf16.msra.mxu0 0
      %345 = vmatprep.subr.bf16.mxu0 0
      %346 = vmatpush1.bf16.msra.mxu0 0
      %347 = vmatprep.subr.bf16.mxu0 0
      %348 = vmatpush1.bf16.msra.mxu0 0
      %349 = vmatprep.subr.bf16.mxu0 0
      %350 = vmatpush1.bf16.msra.mxu0 0
      %351 = vmatprep.subr.bf16.mxu0 0
      %352 = vmatpush1.bf16.msra.mxu0 0
      %353 = vmatprep.subr.bf16.mxu0 0
      %354 = vmatpush1.bf16.msra.mxu0 0
      %355 = vmatprep.subr.bf16.mxu0 0
      %356 = vmatpush1.bf16.msra.mxu0 0
      %357 = vmatprep.subr.bf16.mxu0 0
      %358 = vmatpush1.bf16.msra.mxu0 0
      %359 = vmatprep.subr.bf16.mxu0 0
      %360 = vmatpush1.bf16.msra.mxu0 0
      %361 = vmatprep.subr.bf16.mxu0 0
      %362 = vmatpush1.bf16.msra.mxu0 0
      %363 = vmatprep.subr.bf16.mxu0 0
      %364 = vmatpush1.bf16.msra.mxu0 0
      %365 = vmatprep.subr.bf16.mxu0 0
      %366 = vmatpush1.bf16.msra.mxu0 0
      %367 = vmatprep.subr.bf16.mxu0 0
      %368 = vmatpush1.bf16.msra.mxu0 0
      %369 = vmatprep.subr.bf16.mxu0 0
      %370 = vmatpush1.bf16.msra.mxu0 0
      %371 = vmatprep.mubr.bf16.mxu0 0
      %372 = vmatmul.mubr.bf16.gmra.mrb[0].mxu0 %v337
      %v373 = vpop.f32.mrb[0].mxu0
      %v374 = vadd.f32 0.0, %v373
      %v375 = vpop.f32.mrb[0].mxu0
      %v376 = vadd.f32 0.0, %v375
      %v377 = vpop.f32.mrb[0].mxu0
      %v378 = vadd.f32 0.0, %v377
      %v379 = vpop.f32.mrb[0].mxu0
      %v380 = vadd.f32 0.0, %v379
      %381 = vdwg.mxu0
      %v382 = vld [vmem:[%s299] sm:$0x3]
      %v384 = vlaneseq
      %v385 = vshrl.u32 %v384, 7
      %v386 = vsub.s32 0, %v385
      %v387 = vrot.slane %v382, %v386
      %v388 = vlaneseq
      %v389 = vshrl.u32 %v388, 7
      %v390 = vsub.s32 1, %v389
      %v391 = vrot.slane %v382, %v390
      %v394 = vmul.f32 %v374, %v387
      %v395 = vmul.f32 %v376, %v391
      %v396 = vmul.f32 %v378, %v387
      %v397 = vmul.f32 %v380, %v391
      %v398 = vld [vmem:[%s3] sm:$0xff]
      %v399 = vld [vmem:[%s3 + $0x8] sm:$0xff]
      %401 = vset.pattern.permute.xlu0 0
      %402 = vperm.xlu0 %401, %v398
      %v403 = vpop.permute.xlu0 %402
      %406 = vset.pattern.permute.xlu0 0
      %407 = vperm.xlu0 %406, %v399
      %v408 = vpop.permute.xlu0 %407
      %v410 = vadd.f32 %v394, %v403
      %v411 = vadd.f32 %v395, %v403
      %v412 = vadd.f32 %v396, %v408
      %v413 = vadd.f32 %v397, %v408
      %v414 = vxor.u32 %v410, 2147483648
      %v415 = vxor.u32 %v411, 2147483648
      %v416 = vxor.u32 %v412, 2147483648
      %v417 = vxor.u32 %v413, 2147483648
      %v418 = vmul.f32 %v414, 1.442695
      %v419 = vpow.pop %v418
      %v420 = vmul.f32 %v415, 1.442695
      %v421 = vpow.pop %v420
      %v422 = vmul.f32 %v416, 1.442695
      %v423 = vpow.pop %v422
      %v424 = vmul.f32 %v417, 1.442695
      %v425 = vpow.pop %v424
      %v426 = vadd.f32 %v419, 1.0
      %v427 = vadd.f32 %v421, 1.0
      %v428 = vadd.f32 %v423, 1.0
      %v429 = vadd.f32 %v425, 1.0
      %v430 = vrcp.pop %v426
      %v431 = vmul.f32 1.0, %v430
      %v432 = vrcp.pop %v427
      %v433 = vmul.f32 1.0, %v432
      %v434 = vrcp.pop %v428
      %v435 = vmul.f32 1.0, %v434
      %v436 = vrcp.pop %v429
      %v437 = vmul.f32 1.0, %v436
      %v438 = vmul.f32 %v410, %v431
      %v439 = vmul.f32 %v411, %v433
      %v440 = vmul.f32 %v412, %v435
      %v441 = vmul.f32 %v413, %v437
      %v442 = vpack.c.bf16 %v438, %v438
      %v443 = vpack.c.bf16 %v439, %v439
      %v446 = vunpack.c.l.b16 %v442
      %v447 = vunpack.c.l.b16 %v443
      %v448 = vpack.c.b16 %v447, %v446
      %450 = vst [vmem:[%s309] sm:$0xff] %v448
      %v451 = vpack.c.bf16 %v440, %v440
      %v452 = vpack.c.bf16 %v441, %v441
      %v455 = vunpack.c.l.b16 %v451
      %v456 = vunpack.c.l.b16 %v452
      %v457 = vpack.c.b16 %v456, %v455
      %459 = vst [vmem:[%s319] sm:$0xff] %v457
      %s460 = smul.u32 2, %s22
      %p461 = scmp.lt.s32.totalorder %s21, 1
      %s462 = scalar_select %p461, %s21, 1
      %p463 = scmp.lt.s32.totalorder %s460, 1
      %s464 = scalar_select %p463, %s460, 1
      %s465 = smul.addr %s462, 2
      %s466 = sadd.s32 %s464, %s465
      %s467 = smul.addr %s466, 4
      %s468 = scalar_lea.vmem %s4, %s467
      %s469 = smul.u32 2, %s22
      %p470 = scmp.lt.s32.totalorder %s21, 1
      %s471 = scalar_select %p470, %s21, 1
      %p472 = scmp.lt.s32.totalorder %s469, 1
      %s473 = scalar_select %p472, %s469, 1
      %s474 = smul.addr %s471, 2
      %s475 = sadd.s32 %s473, %s474
      %s476 = smul.addr %s475, 4
      %s477 = scalar_lea.vmem %s5, %s476
      // Predicated region
      $region37: #{c2f_with_mca_forward.4} parent=35 // pred_check
        %p478 = pneg %p147
      $region38: #{c2f_with_mca_forward.4} parent=35 // pred_check_branch
        %480 = sbr.rel (%p478) target = $region40
      $region39: #{c2f_with_mca_forward.4} parent=35 // pred_region
        %s481 = smul.u32 2, %s22
      $region40: #{c2f_with_mca_forward.4} parent=35 // pred_fallthru
        _
      // Predicated region
      $region41: #{c2f_with_mca_forward.4} parent=35 // pred_check
        %p482 = pneg %p175
      $region42: #{c2f_with_mca_forward.4} parent=35 // pred_check_branch
        %484 = sbr.rel (%p482) target = $region44
      $region43: #{c2f_with_mca_forward.4} parent=35 // pred_region
        %s485 = smul.u32 2, %s22
      $region44: #{c2f_with_mca_forward.4} parent=35 // pred_fallthru
        _
    $region36: #{c2f_with_mca_forward.4} parent=5 // pred_fallthru
      _
    %p486 = scmp.le.s32.totalorder 2, %s12
    // Predicated region
    $region45: #{c2f_with_mca_forward.4} parent=5 // pred_check
      %p487 = pneg %p486
    $region46: #{c2f_with_mca_forward.4} parent=5 // pred_check_branch
      %489 = sbr.rel (%p487) target = $region48
    $region47: #{c2f_with_mca_forward.4} parent=5 // pred_region
      %s490 = ssub.s32 %s12, 2
      // Predicated region
      $region49: #{c2f_with_mca_forward.4} parent=47 // pred_check
        %p491 = pneg %p153
      $region50: #{c2f_with_mca_forward.4} parent=47 // pred_check_branch
        %493 = sbr.rel (%p491) target = $region52
      $region51: #{c2f_with_mca_forward.4} parent=47 // pred_region
        %s494 = smul.u32 2, %s24
        %p495 = scmp.lt.s32.totalorder %s23, 1
        %s496 = scalar_select %p495, %s23, 1
        %p497 = scmp.lt.s32.totalorder %s494, 1
        %s498 = scalar_select %p497, %s494, 1
        %s499 = smul.addr %s496, 2
        %s500 = sadd.s32 %s498, %s499
        %s501 = smul.addr %s500, 4
        %s502 = scalar_lea.vmem %s4, %s501
      $region52: #{c2f_with_mca_forward.4} parent=47 // pred_fallthru
        _
      // Predicated region
      $region53: #{c2f_with_mca_forward.4} parent=47 // pred_check
        %p503 = pneg %p181
      $region54: #{c2f_with_mca_forward.4} parent=47 // pred_check_branch
        %505 = sbr.rel (%p503) target = $region56
      $region55: #{c2f_with_mca_forward.4} parent=47 // pred_region
        %s506 = smul.u32 2, %s24
        %p507 = scmp.lt.s32.totalorder %s23, 1
        %s508 = scalar_select %p507, %s23, 1
        %p509 = scmp.lt.s32.totalorder %s506, 1
        %s510 = scalar_select %p509, %s506, 1
        %s511 = smul.addr %s508, 2
        %s512 = sadd.s32 %s510, %s511
        %s513 = smul.addr %s512, 4
        %s514 = scalar_lea.vmem %s5, %s513
      $region56: #{c2f_with_mca_forward.4} parent=47 // pred_fallthru
        _
    $region48: #{c2f_with_mca_forward.4} parent=5 // pred_fallthru
      _
  $region6: #{c2f_with_mca_forward.4} parent=0 // loop_footer
    %s16 = sadd.s32 1, %s12
  $region7: #{c2f_with_mca_forward.4} parent=0 // loop_footer_branch
    %11 = sbr.rel target = $region3
  $region8: #{c2f_with_mca_forward.4} parent=0 // loop_exit
    _

// kernel: c2f_with_mca_forward.5
$region0: #{c2f_with_mca_forward.5}
  #allocation0 [shape = 'u32[]', space=smem, size = 0x4, offset = 0x4, fixed_abs, tag = 'smem constant byte address 0x4 - core index']
  #allocation1 [shape = 'u32[144,128]{1,0:T(1,128)}', space=vmem, size = 0x12000, scoped, tag = 'internal scratch']
  #allocation2 [shape = 'f32[8,290]{1,0:T(8,128)}', space=vmem, size = 0x3000, scoped, tag = 'scratch operand']
  #allocation3 [shape = 'f32[72,256]{1,0:T(8,128)}', space=vmem, size = 0x12000, scoped, tag = 'scratch operand']
  %s0 = inlined_call_operand.vmem [shape: bf16[2,8,256], index: 0, kind: input, shape index: {}]
  %s1 = inlined_call_operand.vmem [shape: bf16[2,8,256], index: 1, kind: input, shape index: {}]
  %s2 = inlined_call_operand.vmem [shape: bf16[8,72], index: 2, kind: input, shape index: {}]
  %s3 = inlined_call_operand.vmem [shape: f32[8,1], index: 3, kind: input, shape index: {}]
  %s4 = inlined_call_operand.vmem [shape: bf16[8,72], index: 4, kind: input, shape index: {}]
  %s5 = inlined_call_operand.vmem [shape: f32[8,1], index: 5, kind: input, shape index: {}]
  %s6 = inlined_call_operand.vmem [shape: f32[2,256], index: 6, kind: input, shape index: {}]
  %s7 = inlined_call_operand.vmem [shape: bf16[16,8], index: 7, kind: input, shape index: {}]
  %s8 = inlined_call_operand.vmem [shape: bf16[16,8], index: 8, kind: input, shape index: {}]
  %s9 = inlined_call_operand.vmem [shape: bf16[16,8], index: 9, kind: input, shape index: {}]
  %s10 = inlined_call_operand.vmem [shape: f32[16,1], index: 10, kind: input, shape index: {}]
  %s11 = inlined_call_operand.vmem [shape: f32[2,16,256], index: 11, kind: output, shape index: {}]
  %s12 = sld [smem:[#allocation0]]
  $region77: #{c2f_with_mca_forward.5} parent=0
    _
  %s14 = ssub.s32 1, %s12
  %s15 = scalar_select 0, %s14, %s12
  loop: start=0, step=1, limit=4
  $region2: #{c2f_with_mca_forward.5} parent=0 // loop_pre_header
    _
  $region3: #{c2f_with_mca_forward.5} parent=0 // loop_header
    %s17 = sphi 0, %s21
    %p18 = scmp.ge.s32.totalorder %s17, 4
    %s27 = sphi 0, %s29
    %s30 = sphi 0, %s27
    %s31 = sphi 0, %s30
    %s47 = sphi 0, %s31
    %s53 = sphi 0, %s55
    %s56 = sphi 0, %s53
    %s57 = sphi 0, %s56
    %s73 = sphi 0, %s57
    %s77 = sphi 0, %s77
    %s79 = sphi 0, %s77
    %s80 = sphi 0, %s79
    %s94 = sphi 0, %s80
    %s98 = sphi 0, %s98
    %s100 = sphi 0, %s98
    %s101 = sphi 0, %s100
    %s115 = sphi 0, %s101
    %s119 = sphi 0, %s119
    %s121 = sphi 0, %s119
    %s122 = sphi 0, %s121
    %s136 = sphi 0, %s122
    %s140 = sphi 0, %s140
    %s142 = sphi 0, %s140
    %s143 = sphi 0, %s142
    %s157 = sphi 0, %s143
    %s161 = sphi 0, %s161
    %s163 = sphi 0, %s161
    %s164 = sphi 0, %s163
    %s178 = sphi 0, %s164
    %s182 = sphi 0, %s182
    %s184 = sphi 0, %s182
    %s185 = sphi 0, %s184
    %s199 = sphi 0, %s185
    %s203 = sphi 0, %s203
    %s205 = sphi 0, %s203
    %s206 = sphi 0, %s205
    %s220 = sphi 0, %s206
    %s224 = sphi 0, %s224
    %s226 = sphi 0, %s224
    %s227 = sphi 0, %s226
    %s241 = sphi 0, %s227
    %s245 = sphi 0, %s245
    %s247 = sphi 0, %s245
    %s248 = sphi 0, %s247
    %s262 = sphi 0, %s248
    %s268 = sphi 0, %s270
    %s271 = sphi 0, %s268
    %s272 = sphi 0, %s271
    %s288 = sphi 0, %s272
  $region4: #{c2f_with_mca_forward.5} parent=0 // loop_header_branch
    %20 = sbr.rel (%p18) target = $region8
  $region5: #{c2f_with_mca_forward.5} parent=0 // loop_body
    %s22 = ssub.s32 %s17, 1
    %s23 = ssub.s32 %s17, 2
    %s24 = sadd.s32 %s17, 1
    %s25 = ssub.s32 %s17, %s24
    %p26 = scmp.eq.s32.totalorder %s25, 0
    %s28 = sadd.s32 %s27, 1
    %s29 = scalar_select %p26, %s27, %s28
    %p32 = pneg %p26
    %p33 = scmp.eq.s32.totalorder %s17, 1
    %p34 = por %p32, %p33
    %p35 = scmp.ne.s32.totalorder %s27, %s30
    %p36 = scmp.eq.s32.totalorder %s17, 0
    %p37 = por %p35, %p36
    %p38 = scmp.ne.s32.totalorder %s27, %s30
    %p39 = scmp.eq.s32.totalorder %s22, 1
    %p40 = por %p38, %p39
    %p41 = scmp.ne.s32.totalorder %s30, %s31
    %p42 = scmp.eq.s32.totalorder %s22, 0
    %p43 = por %p41, %p42
    %p44 = scmp.ne.s32.totalorder %s30, %s31
    %p45 = scmp.eq.s32.totalorder %s23, 1
    %p46 = por %p44, %p45
    %p48 = scmp.ne.s32.totalorder %s31, %s47
    %p49 = scmp.eq.s32.totalorder %s23, 0
    %p50 = por %p48, %p49
    %s51 = ssub.s32 %s17, %s24
    %p52 = scmp.eq.s32.totalorder %s51, 0
    %s54 = sadd.s32 %s53, 1
    %s55 = scalar_select %p52, %s53, %s54
    %p58 = pneg %p52
    %p59 = scmp.eq.s32.totalorder %s17, 1
    %p60 = por %p58, %p59
    %p61 = scmp.ne.s32.totalorder %s53, %s56
    %p62 = scmp.eq.s32.totalorder %s17, 0
    %p63 = por %p61, %p62
    %p64 = scmp.ne.s32.totalorder %s53, %s56
    %p65 = scmp.eq.s32.totalorder %s22, 1
    %p66 = por %p64, %p65
    %p67 = scmp.ne.s32.totalorder %s56, %s57
    %p68 = scmp.eq.s32.totalorder %s22, 0
    %p69 = por %p67, %p68
    %p70 = scmp.ne.s32.totalorder %s56, %s57
    %p71 = scmp.eq.s32.totalorder %s23, 1
    %p72 = por %p70, %p71
    %p74 = scmp.ne.s32.totalorder %s57, %s73
    %p75 = scmp.eq.s32.totalorder %s23, 0
    %p76 = por %p74, %p75
    %s78 = sadd.s32 %s77, 1
    %p81 = scmp.eq.s32.totalorder %s17, 1
    %p82 = scmp.ne.s32.totalorder %s77, %s79
    %p83 = scmp.eq.s32.totalorder %s17, 0
    %p84 = por %p82, %p83
    %p85 = scmp.ne.s32.totalorder %s77, %s79
    %p86 = scmp.eq.s32.totalorder %s22, 1
    %p87 = por %p85, %p86
    %p88 = scmp.ne.s32.totalorder %s79, %s80
    %p89 = scmp.eq.s32.totalorder %s22, 0
    %p90 = por %p88, %p89
    %p91 = scmp.ne.s32.totalorder %s79, %s80
    %p92 = scmp.eq.s32.totalorder %s23, 1
    %p93 = por %p91, %p92
    %p95 = scmp.ne.s32.totalorder %s80, %s94
    %p96 = scmp.eq.s32.totalorder %s23, 0
    %p97 = por %p95, %p96
    %s99 = sadd.s32 %s98, 1
    %p102 = scmp.eq.s32.totalorder %s17, 1
    %p103 = scmp.ne.s32.totalorder %s98, %s100
    %p104 = scmp.eq.s32.totalorder %s17, 0
    %p105 = por %p103, %p104
    %p106 = scmp.ne.s32.totalorder %s98, %s100
    %p107 = scmp.eq.s32.totalorder %s22, 1
    %p108 = por %p106, %p107
    %p109 = scmp.ne.s32.totalorder %s100, %s101
    %p110 = scmp.eq.s32.totalorder %s22, 0
    %p111 = por %p109, %p110
    %p112 = scmp.ne.s32.totalorder %s100, %s101
    %p113 = scmp.eq.s32.totalorder %s23, 1
    %p114 = por %p112, %p113
    %p116 = scmp.ne.s32.totalorder %s101, %s115
    %p117 = scmp.eq.s32.totalorder %s23, 0
    %p118 = por %p116, %p117
    %s120 = sadd.s32 %s119, 1
    %p123 = scmp.eq.s32.totalorder %s17, 1
    %p124 = scmp.ne.s32.totalorder %s119, %s121
    %p125 = scmp.eq.s32.totalorder %s17, 0
    %p126 = por %p124, %p125
    %p127 = scmp.ne.s32.totalorder %s119, %s121
    %p128 = scmp.eq.s32.totalorder %s22, 1
    %p129 = por %p127, %p128
    %p130 = scmp.ne.s32.totalorder %s121, %s122
    %p131 = scmp.eq.s32.totalorder %s22, 0
    %p132 = por %p130, %p131
    %p133 = scmp.ne.s32.totalorder %s121, %s122
    %p134 = scmp.eq.s32.totalorder %s23, 1
    %p135 = por %p133, %p134
    %p137 = scmp.ne.s32.totalorder %s122, %s136
    %p138 = scmp.eq.s32.totalorder %s23, 0
    %p139 = por %p137, %p138
    %s141 = sadd.s32 %s140, 1
    %p144 = scmp.eq.s32.totalorder %s17, 1
    %p145 = scmp.ne.s32.totalorder %s140, %s142
    %p146 = scmp.eq.s32.totalorder %s17, 0
    %p147 = por %p145, %p146
    %p148 = scmp.ne.s32.totalorder %s140, %s142
    %p149 = scmp.eq.s32.totalorder %s22, 1
    %p150 = por %p148, %p149
    %p151 = scmp.ne.s32.totalorder %s142, %s143
    %p152 = scmp.eq.s32.totalorder %s22, 0
    %p153 = por %p151, %p152
    %p154 = scmp.ne.s32.totalorder %s142, %s143
    %p155 = scmp.eq.s32.totalorder %s23, 1
    %p156 = por %p154, %p155
    %p158 = scmp.ne.s32.totalorder %s143, %s157
    %p159 = scmp.eq.s32.totalorder %s23, 0
    %p160 = por %p158, %p159
    %s162 = sadd.s32 %s161, 1
    %p165 = scmp.eq.s32.totalorder %s17, 1
    %p166 = scmp.ne.s32.totalorder %s161, %s163
    %p167 = scmp.eq.s32.totalorder %s17, 0
    %p168 = por %p166, %p167
    %p169 = scmp.ne.s32.totalorder %s161, %s163
    %p170 = scmp.eq.s32.totalorder %s22, 1
    %p171 = por %p169, %p170
    %p172 = scmp.ne.s32.totalorder %s163, %s164
    %p173 = scmp.eq.s32.totalorder %s22, 0
    %p174 = por %p172, %p173
    %p175 = scmp.ne.s32.totalorder %s163, %s164
    %p176 = scmp.eq.s32.totalorder %s23, 1
    %p177 = por %p175, %p176
    %p179 = scmp.ne.s32.totalorder %s164, %s178
    %p180 = scmp.eq.s32.totalorder %s23, 0
    %p181 = por %p179, %p180
    %s183 = sadd.s32 %s182, 1
    %p186 = scmp.eq.s32.totalorder %s17, 1
    %p187 = scmp.ne.s32.totalorder %s182, %s184
    %p188 = scmp.eq.s32.totalorder %s17, 0
    %p189 = por %p187, %p188
    %p190 = scmp.ne.s32.totalorder %s182, %s184
    %p191 = scmp.eq.s32.totalorder %s22, 1
    %p192 = por %p190, %p191
    %p193 = scmp.ne.s32.totalorder %s184, %s185
    %p194 = scmp.eq.s32.totalorder %s22, 0
    %p195 = por %p193, %p194
    %p196 = scmp.ne.s32.totalorder %s184, %s185
    %p197 = scmp.eq.s32.totalorder %s23, 1
    %p198 = por %p196, %p197
    %p200 = scmp.ne.s32.totalorder %s185, %s199
    %p201 = scmp.eq.s32.totalorder %s23, 0
    %p202 = por %p200, %p201
    %s204 = sadd.s32 %s203, 1
    %p207 = scmp.eq.s32.totalorder %s17, 1
    %p208 = scmp.ne.s32.totalorder %s203, %s205
    %p209 = scmp.eq.s32.totalorder %s17, 0
    %p210 = por %p208, %p209
    %p211 = scmp.ne.s32.totalorder %s203, %s205
    %p212 = scmp.eq.s32.totalorder %s22, 1
    %p213 = por %p211, %p212
    %p214 = scmp.ne.s32.totalorder %s205, %s206
    %p215 = scmp.eq.s32.totalorder %s22, 0
    %p216 = por %p214, %p215
    %p217 = scmp.ne.s32.totalorder %s205, %s206
    %p218 = scmp.eq.s32.totalorder %s23, 1
    %p219 = por %p217, %p218
    %p221 = scmp.ne.s32.totalorder %s206, %s220
    %p222 = scmp.eq.s32.totalorder %s23, 0
    %p223 = por %p221, %p222
    %s225 = sadd.s32 %s224, 1
    %p228 = scmp.eq.s32.totalorder %s17, 1
    %p229 = scmp.ne.s32.totalorder %s224, %s226
    %p230 = scmp.eq.s32.totalorder %s17, 0
    %p231 = por %p229, %p230
    %p232 = scmp.ne.s32.totalorder %s224, %s226
    %p233 = scmp.eq.s32.totalorder %s22, 1
    %p234 = por %p232, %p233
    %p235 = scmp.ne.s32.totalorder %s226, %s227
    %p236 = scmp.eq.s32.totalorder %s22, 0
    %p237 = por %p235, %p236
    %p238 = scmp.ne.s32.totalorder %s226, %s227
    %p239 = scmp.eq.s32.totalorder %s23, 1
    %p240 = por %p238, %p239
    %p242 = scmp.ne.s32.totalorder %s227, %s241
    %p243 = scmp.eq.s32.totalorder %s23, 0
    %p244 = por %p242, %p243
    %s246 = sadd.s32 %s245, 1
    %p249 = scmp.eq.s32.totalorder %s17, 1
    %p250 = scmp.ne.s32.totalorder %s245, %s247
    %p251 = scmp.eq.s32.totalorder %s17, 0
    %p252 = por %p250, %p251
    %p253 = scmp.ne.s32.totalorder %s245, %s247
    %p254 = scmp.eq.s32.totalorder %s22, 1
    %p255 = por %p253, %p254
    %p256 = scmp.ne.s32.totalorder %s247, %s248
    %p257 = scmp.eq.s32.totalorder %s22, 0
    %p258 = por %p256, %p257
    %p259 = scmp.ne.s32.totalorder %s247, %s248
    %p260 = scmp.eq.s32.totalorder %s23, 1
    %p261 = por %p259, %p260
    %p263 = scmp.ne.s32.totalorder %s248, %s262
    %p264 = scmp.eq.s32.totalorder %s23, 0
    %p265 = por %p263, %p264
    %s266 = ssub.s32 %s17, %s24
    %p267 = scmp.eq.s32.totalorder %s266, 0
    %s269 = sadd.s32 %s268, 1
    %s270 = scalar_select %p267, %s268, %s269
    %p273 = pneg %p267
    %p274 = scmp.eq.s32.totalorder %s17, 1
    %p275 = por %p273, %p274
    %p276 = scmp.ne.s32.totalorder %s268, %s271
    %p277 = scmp.eq.s32.totalorder %s17, 0
    %p278 = por %p276, %p277
    %p279 = scmp.ne.s32.totalorder %s268, %s271
    %p280 = scmp.eq.s32.totalorder %s22, 1
    %p281 = por %p279, %p280
    %p282 = scmp.ne.s32.totalorder %s271, %s272
    %p283 = scmp.eq.s32.totalorder %s22, 0
    %p284 = por %p282, %p283
    %p285 = scmp.ne.s32.totalorder %s271, %s272
    %p286 = scmp.eq.s32.totalorder %s23, 1
    %p287 = por %p285, %p286
    %p289 = scmp.ne.s32.totalorder %s272, %s288
    %p290 = scmp.eq.s32.totalorder %s23, 0
    %p291 = por %p289, %p290
    %p292 = scmp.le.s32.totalorder 1, %s17
    %p293 = scmp.lt.s32.totalorder %s17, 3
    %p294 = pnand %p292, %p293
    %p295 = pneg %p294
    // Predicated region
    $region9: #{c2f_with_mca_forward.5} parent=5 // pred_check
      _
    $region10: #{c2f_with_mca_forward.5} parent=5 // pred_check_branch
      %297 = sbr.rel (%p294) target = $region12
    $region11: #{c2f_with_mca_forward.5} parent=5 // pred_region
      %s298 = ssub.s32 %s17, 1
      // Predicated region
      $region13: #{c2f_with_mca_forward.5} parent=11 // pred_check
        %p299 = pneg %p90
      $region14: #{c2f_with_mca_forward.5} parent=11 // pred_check_branch
        %301 = sbr.rel (%p299) target = $region16
      $region15: #{c2f_with_mca_forward.5} parent=11 // pred_region
        _
      $region16: #{c2f_with_mca_forward.5} parent=11 // pred_fallthru
        _
      // Predicated region
      $region17: #{c2f_with_mca_forward.5} parent=11 // pred_check
        %p302 = pneg %p111
      $region18: #{c2f_with_mca_forward.5} parent=11 // pred_check_branch
        %304 = sbr.rel (%p302) target = $region20
      $region19: #{c2f_with_mca_forward.5} parent=11 // pred_region
        _
      $region20: #{c2f_with_mca_forward.5} parent=11 // pred_fallthru
        _
      // Predicated region
      $region21: #{c2f_with_mca_forward.5} parent=11 // pred_check
        %p305 = pneg %p132
      $region22: #{c2f_with_mca_forward.5} parent=11 // pred_check_branch
        %307 = sbr.rel (%p305) target = $region24
      $region23: #{c2f_with_mca_forward.5} parent=11 // pred_region
        _
      $region24: #{c2f_with_mca_forward.5} parent=11 // pred_fallthru
        _
      // Predicated region
      $region25: #{c2f_with_mca_forward.5} parent=11 // pred_check
        %p308 = pneg %p153
      $region26: #{c2f_with_mca_forward.5} parent=11 // pred_check_branch
        %310 = sbr.rel (%p308) target = $region28
      $region27: #{c2f_with_mca_forward.5} parent=11 // pred_region
        _
      $region28: #{c2f_with_mca_forward.5} parent=11 // pred_fallthru
        _
      // Predicated region
      $region29: #{c2f_with_mca_forward.5} parent=11 // pred_check
        %p311 = pneg %p174
      $region30: #{c2f_with_mca_forward.5} parent=11 // pred_check_branch
        %313 = sbr.rel (%p311) target = $region32
      $region31: #{c2f_with_mca_forward.5} parent=11 // pred_region
        _
      $region32: #{c2f_with_mca_forward.5} parent=11 // pred_fallthru
        _
      // Predicated region
      $region33: #{c2f_with_mca_forward.5} parent=11 // pred_check
        %p314 = pneg %p195
      $region34: #{c2f_with_mca_forward.5} parent=11 // pred_check_branch
        %316 = sbr.rel (%p314) target = $region36
      $region35: #{c2f_with_mca_forward.5} parent=11 // pred_region
        _
      $region36: #{c2f_with_mca_forward.5} parent=11 // pred_fallthru
        _
      // Predicated region
      $region37: #{c2f_with_mca_forward.5} parent=11 // pred_check
        %p317 = pneg %p216
      $region38: #{c2f_with_mca_forward.5} parent=11 // pred_check_branch
        %319 = sbr.rel (%p317) target = $region40
      $region39: #{c2f_with_mca_forward.5} parent=11 // pred_region
        _
      $region40: #{c2f_with_mca_forward.5} parent=11 // pred_fallthru
        _
      // Predicated region
      $region41: #{c2f_with_mca_forward.5} parent=11 // pred_check
        %p320 = pneg %p237
      $region42: #{c2f_with_mca_forward.5} parent=11 // pred_check_branch
        %322 = sbr.rel (%p320) target = $region44
      $region43: #{c2f_with_mca_forward.5} parent=11 // pred_region
        _
      $region44: #{c2f_with_mca_forward.5} parent=11 // pred_fallthru
        _
      // Predicated region
      $region45: #{c2f_with_mca_forward.5} parent=11 // pred_check
        %p323 = pneg %p258
      $region46: #{c2f_with_mca_forward.5} parent=11 // pred_check_branch
        %325 = sbr.rel (%p323) target = $region48
      $region47: #{c2f_with_mca_forward.5} parent=11 // pred_region
        _
      $region48: #{c2f_with_mca_forward.5} parent=11 // pred_fallthru
        _
    $region12: #{c2f_with_mca_forward.5} parent=5 // pred_fallthru
      _
    %p326 = scmp.lt.s32.totalorder %s17, 2
    // Predicated region
    $region49: #{c2f_with_mca_forward.5} parent=5 // pred_check
      %p327 = pneg %p326
    $region50: #{c2f_with_mca_forward.5} parent=5 // pred_check_branch
      %329 = sbr.rel (%p327) target = $region52
    $region51: #{c2f_with_mca_forward.5} parent=5 // pred_region
      // Predicated region
      $region53: #{c2f_with_mca_forward.5} parent=51 // pred_check
        %p330 = pneg %p37
      $region54: #{c2f_with_mca_forward.5} parent=51 // pred_check_branch
        %332 = sbr.rel (%p330) target = $region56
      $region55: #{c2f_with_mca_forward.5} parent=51 // pred_region
        %p333 = scmp.lt.s32.totalorder %s17, 1
        %s334 = scalar_select %p333, %s17, 1
        %s335 = smul.addr %s334, 2
        %s336 = smul.addr %s335, 4
        %s337 = scalar_lea.vmem %s0, %s336
      $region56: #{c2f_with_mca_forward.5} parent=51 // pred_fallthru
        _
      // Predicated region
      $region57: #{c2f_with_mca_forward.5} parent=51 // pred_check
        %p338 = pneg %p63
      $region58: #{c2f_with_mca_forward.5} parent=51 // pred_check_branch
        %340 = sbr.rel (%p338) target = $region60
      $region59: #{c2f_with_mca_forward.5} parent=51 // pred_region
        %p341 = scmp.lt.s32.totalorder %s17, 1
        %s342 = scalar_select %p341, %s17, 1
        %s343 = smul.addr %s342, 2
        %s344 = smul.addr %s343, 4
        %s345 = scalar_lea.vmem %s1, %s344
      $region60: #{c2f_with_mca_forward.5} parent=51 // pred_fallthru
        _
    $region52: #{c2f_with_mca_forward.5} parent=5 // pred_fallthru
      _
    %p346 = scmp.le.s32.totalorder 1, %s17
    %p347 = scmp.lt.s32.totalorder %s17, 3
    %p348 = pnand %p346, %p347
    %p349 = pneg %p348
    // Predicated region
    $region61: #{c2f_with_mca_forward.5} parent=5 // pred_check
      _
    $region62: #{c2f_with_mca_forward.5} parent=5 // pred_check_branch
      %351 = sbr.rel (%p348) target = $region64
    $region63: #{c2f_with_mca_forward.5} parent=5 // pred_region
      %s352 = ssub.s32 %s17, 1
      %p353 = scmp.lt.s32.totalorder %s22, 1
      %s354 = scalar_select %p353, %s22, 1
      %s355 = smul.addr %s354, 2
      %s356 = smul.addr %s355, 4
      %s357 = scalar_lea.vmem %s0, %s356
      %p358 = pneg %p43
      %p359 = pneg %p40
      %p360 = scmp.lt.s32.totalorder %s22, 1
      %s361 = scalar_select %p360, %s22, 1
      %s362 = smul.addr %s361, 2
      %s363 = smul.addr %s362, 4
      %s364 = scalar_lea.vmem %s1, %s363
      %p365 = pneg %p69
      %p366 = pneg %p66
      %p367 = pneg %p90
      %p368 = pneg %p87
      %p369 = pneg %p111
      %p370 = pneg %p108
      %p371 = pneg %p132
      %p372 = pneg %p129
      %p373 = pneg %p153
      %p374 = pneg %p150
      %p375 = pneg %p174
      %p376 = pneg %p171
      %p377 = pneg %p195
      %p378 = pneg %p192
      %p379 = pneg %p216
      %p380 = pneg %p213
      %p381 = pneg %p237
      %p382 = pneg %p234
      %p383 = pneg %p258
      %p384 = pneg %p255
      %p385 = pneg %p284
      %p386 = pneg %p281
      %p387 = scmp.lt.s32.totalorder %s22, 1
      %s388 = scalar_select %p387, %s22, 1
      %s389 = smul.addr %s388, 4
      %s390 = smul.addr %s389, 8
      %s391 = scalar_lea.vmem %s11, %s390
      %p392 = scmp.lt.s32.totalorder %s22, 1
      %s393 = scalar_select %p392, %s22, 1
      %s394 = smul.addr %s393, 2
      %s395 = smul.addr %s394, 4
      %s396 = scalar_lea.vmem %s0, %s395
      %p397 = scmp.lt.s32.totalorder %s22, 1
      %s398 = scalar_select %p397, %s22, 1
      %s399 = smul.addr %s398, 2
      %s400 = smul.addr %s399, 4
      %s401 = scalar_lea.vmem %s1, %s400
      %p402 = scmp.lt.s32.totalorder %s22, 1
      %s403 = scalar_select %p402, %s22, 1
      %s404 = smul.addr %s403, 4
      %s405 = smul.addr %s404, 8
      %s406 = scalar_lea.vmem %s11, %s405
      %vm408 = vcmask 138240
      %409 = vst.msk [vmem:[#allocation2] sm:$0xff] %vm408, 0.0
      %vm410 = vcmask 277640
      %411 = vst.msk [vmem:[#allocation2 + $0x10] sm:$0xff] %vm410, 0.0
      %v412 = vld [vmem:[%s401] sm:$0xff]
      %v413 = vunpack.c.l.bf16 %v412
      %v414 = vunpack.c.h.bf16 %v412
      %417 = vrot.lane.b32.xlu0 %v413, 17
      %v418 = vpop.permute.xlu0 %417
      %419 = vrot.lane.b32.xlu0 %v414, 17
      %v420 = vpop.permute.xlu0 %419
      %v421 = vsel %vm408, %v418, %v420
      %vm425 = vcmask 1047688
      %426 = vst.msk [vmem:[#allocation2] sm:$0xff] %vm425, %v418
      %427 = vst [vmem:[#allocation2 + $0x8] sm:$0xff] %v421
      %428 = vst.msk [vmem:[#allocation2 + $0x10] sm:$0xff] %vm408, %v420
      %v429 = vld [vmem:[#allocation2] sm:$0xff]
      %v430 = vld [vmem:[#allocation2 + $0x8] sm:$0xff]
      %v431 = vld [vmem:[%s6] ss:$2 sm:$0x3]
      %v433 = vlaneseq
      %v434 = vshrl.u32 %v433, 7
      %v435 = vsub.s32 0, %v434
      %v436 = vrot.slane %v431, %v435
      %v437 = vlaneseq
      %v438 = vshrl.u32 %v437, 7
      %v439 = vsub.s32 1, %v438
      %v440 = vrot.slane %v431, %v439
      %v443 = vmul.f32 %v429, %v436
      %v444 = vmul.f32 %v430, %v440
      %445 = vst [vmem:[#allocation3] sm:$0xff] %v443
      %446 = vst [vmem:[#allocation3 + $0x8] sm:$0xff] %v444
      %v447 = vld [vmem:[#allocation2] sm:$0xff]
      %v448 = vld [vmem:[#allocation2 + $0x8] sm:$0xff]
      %v449 = vld [vmem:[#allocation2 + $0x10] sm:$0xff]
      %453 = vrot.lane.b32.xlu0 %v447, 127
      %v454 = vpop.permute.xlu0 %453
      %455 = vrot.lane.b32.xlu0 %v448, 127
      %v456 = vpop.permute.xlu0 %455
      %457 = vrot.lane.b32.xlu0 %v449, 127
      %v458 = vpop.permute.xlu0 %457
      %vm459 = vcmask 1039360
      %v460 = vsel %vm459, %v454, %v456
      %v461 = vsel %vm459, %v456, %v458
      %464 = vst [vmem:[#allocation3 + $0x10] sm:$0xff] %v460
      %465 = vst [vmem:[#allocation3 + $0x18] sm:$0xff] %v461
      %v466 = vld [vmem:[#allocation2] sm:$0xff]
      %v467 = vld [vmem:[#allocation2 + $0x8] sm:$0xff]
      %v468 = vld [vmem:[#allocation2 + $0x10] sm:$0xff]
      %s469 = scalar_lea.vmem %s6, 1
      %v470 = vld [vmem:[%s469] ss:$2 sm:$0x3]
      %v472 = vlaneseq
      %v473 = vshrl.u32 %v472, 7
      %v474 = vsub.s32 0, %v473
      %v475 = vrot.slane %v470, %v474
      %v476 = vlaneseq
      %v477 = vshrl.u32 %v476, 7
      %v478 = vsub.s32 1, %v477
      %v479 = vrot.slane %v470, %v478
      %480 = vrot.lane.b32.xlu0 %v475, 2
      %v481 = vpop.permute.xlu0 %480
      %482 = vrot.lane.b32.xlu0 %v479, 2
      %v483 = vpop.permute.xlu0 %482
      %vm484 = vcmask 15360
      %v485 = vsel %vm484, %v481, %v483
      %v489 = vmul.f32 %v466, %v481
      %v490 = vmul.f32 %v467, %v485
      %v491 = vmul.f32 %v468, %v483
      %495 = vrot.lane.b32.xlu0 %v489, 126
      %v496 = vpop.permute.xlu0 %495
      %497 = vrot.lane.b32.xlu0 %v490, 126
      %v498 = vpop.permute.xlu0 %497
      %499 = vrot.lane.b32.xlu0 %v491, 126
      %v500 = vpop.permute.xlu0 %499
      %vm501 = vcmask 1031168
      %v502 = vsel %vm501, %v496, %v498
      %v503 = vsel %vm501, %v498, %v500
      %506 = vst [vmem:[#allocation3 + $0x20] sm:$0xff] %v502
      %507 = vst [vmem:[#allocation3 + $0x28] sm:$0xff] %v503
      %v508 = vld [vmem:[#allocation2] sm:$0xff]
      %v509 = vld [vmem:[#allocation2 + $0x8] sm:$0xff]
      %v510 = vld [vmem:[#allocation2 + $0x10] sm:$0xff]
      %v511 = vld [vmem:[%s6] ss:$2 sm:$0x3]
      %v513 = vlaneseq
      %v514 = vshrl.u32 %v513, 7
      %v515 = vsub.s32 0, %v514
      %v516 = vrot.slane %v511, %v515
      %v517 = vlaneseq
      %v518 = vshrl.u32 %v517, 7
      %v519 = vsub.s32 1, %v518
      %v520 = vrot.slane %v511, %v519
      %521 = vrot.lane.b32.xlu0 %v516, 16
      %v522 = vpop.permute.xlu0 %521
      %523 = vrot.lane.b32.xlu0 %v520, 16
      %v524 = vpop.permute.xlu0 %523
      %vm525 = vcmask 130048
      %v526 = vsel %vm525, %v522, %v524
      %v530 = vmul.f32 %v508, %v522
      %v531 = vmul.f32 %v509, %v526
      %v532 = vmul.f32 %v510, %v524
      %536 = vrot.lane.b32.xlu0 %v530, 112
      %v537 = vpop.permute.xlu0 %536
      %538 = vrot.lane.b32.xlu0 %v531, 112
      %v539 = vpop.permute.xlu0 %538
      %540 = vrot.lane.b32.xlu0 %v532, 112
      %v541 = vpop.permute.xlu0 %540
      %vm542 = vcmask 916480
      %v543 = vsel %vm542, %v537, %v539
      %v544 = vsel %vm542, %v539, %v541
      %547 = vst [vmem:[#allocation3 + $0x30] sm:$0xff] %v543
      %548 = vst [vmem:[#allocation3 + $0x38] sm:$0xff] %v544
      %v549 = vld [vmem:[#allocation2] sm:$0xff]
      %v550 = vld [vmem:[#allocation2 + $0x8] sm:$0xff]
      %v551 = vld [vmem:[#allocation2 + $0x10] sm:$0xff]
      %555 = vrot.lane.b32.xlu0 %v549, 111
      %v556 = vpop.permute.xlu0 %555
      %557 = vrot.lane.b32.xlu0 %v550, 111
      %v558 = vpop.permute.xlu0 %557
      %559 = vrot.lane.b32.xlu0 %v551, 111
      %v560 = vpop.permute.xlu0 %559
      %vm561 = vcmask 908288
      %v562 = vsel %vm561, %v556, %v558
      %v563 = vsel %vm561, %v558, %v560
      %566 = vst [vmem:[#allocation3 + $0x40] sm:$0xff] %v562
      %567 = vst [vmem:[#allocation3 + $0x48] sm:$0xff] %v563
      %v568 = vld [vmem:[#allocation2] sm:$0xff]
      %v569 = vld [vmem:[#allocation2 + $0x8] sm:$0xff]
      %v570 = vld [vmem:[#allocation2 + $0x10] sm:$0xff]
      %v571 = vld [vmem:[%s469] ss:$2 sm:$0x3]
      %v573 = vlaneseq
      %v574 = vshrl.u32 %v573, 7
      %v575 = vsub.s32 0, %v574
      %v576 = vrot.slane %v571, %v575
      %v577 = vlaneseq
      %v578 = vshrl.u32 %v577, 7
      %v579 = vsub.s32 1, %v578
      %v580 = vrot.slane %v571, %v579
      %581 = vrot.lane.b32.xlu0 %v576, 18
      %v582 = vpop.permute.xlu0 %581
      %583 = vrot.lane.b32.xlu0 %v580, 18
      %v584 = vpop.permute.xlu0 %583
      %vm585 = vcmask 146432
      %v586 = vsel %vm585, %v582, %v584
      %v590 = vmul.f32 %v568, %v582
      %v591 = vmul.f32 %v569, %v586
      %v592 = vmul.f32 %v570, %v584
      %596 = vrot.lane.b32.xlu0 %v590, 110
      %v597 = vpop.permute.xlu0 %596
      %598 = vrot.lane.b32.xlu0 %v591, 110
      %v599 = vpop.permute.xlu0 %598
      %600 = vrot.lane.b32.xlu0 %v592, 110
      %v601 = vpop.permute.xlu0 %600
      %vm602 = vcmask 900096
      %v603 = vsel %vm602, %v597, %v599
      %v604 = vsel %vm602, %v599, %v601
      %607 = vst [vmem:[#allocation3 + $0x50] sm:$0xff] %v603
      %608 = vst [vmem:[#allocation3 + $0x58] sm:$0xff] %v604
      %v609 = vld [vmem:[#allocation2] sm:$0xff]
      %v610 = vld [vmem:[#allocation2 + $0x8] sm:$0xff]
      %v611 = vld [vmem:[#allocation2 + $0x10] sm:$0xff]
      %v612 = vld [vmem:[%s6] ss:$2 sm:$0x3]
      %v614 = vlaneseq
      %v615 = vshrl.u32 %v614, 7
      %v616 = vsub.s32 0, %v615
      %v617 = vrot.slane %v612, %v616
      %v618 = vlaneseq
      %v619 = vshrl.u32 %v618, 7
      %v620 = vsub.s32 1, %v619
      %v621 = vrot.slane %v612, %v620
      %622 = vrot.lane.b32.xlu0 %v617, 32
      %v623 = vpop.permute.xlu0 %622
      %624 = vrot.lane.b32.xlu0 %v621, 32
      %v625 = vpop.permute.xlu0 %624
      %vm626 = vcmask 261120
      %v627 = vsel %vm626, %v623, %v625
      %v631 = vmul.f32 %v609, %v623
      %v632 = vmul.f32 %v610, %v627
      %v633 = vmul.f32 %v611, %v625
      %637 = vrot.lane.b32.xlu0 %v631, 96
      %v638 = vpop.permute.xlu0 %637
      %639 = vrot.lane.b32.xlu0 %v632, 96
      %v640 = vpop.permute.xlu0 %639
      %641 = vrot.lane.b32.xlu0 %v633, 96
      %v642 = vpop.permute.xlu0 %641
      %vm643 = vcmask 785408
      %v644 = vsel %vm643, %v638, %v640
      %v645 = vsel %vm643, %v640, %v642
      %648 = vst [vmem:[#allocation3 + $0x60] sm:$0xff] %v644
      %649 = vst [vmem:[#allocation3 + $0x68] sm:$0xff] %v645
      %v650 = vld [vmem:[#allocation2] sm:$0xff]
      %v651 = vld [vmem:[#allocation2 + $0x8] sm:$0xff]
      %v652 = vld [vmem:[#allocation2 + $0x10] sm:$0xff]
      %656 = vrot.lane.b32.xlu0 %v650, 95
      %v657 = vpop.permute.xlu0 %656
      %658 = vrot.lane.b32.xlu0 %v651, 95
      %v659 = vpop.permute.xlu0 %658
      %660 = vrot.lane.b32.xlu0 %v652, 95
      %v661 = vpop.permute.xlu0 %660
      %vm662 = vcmask 777216
      %v663 = vsel %vm662, %v657, %v659
      %v664 = vsel %vm662, %v659, %v661
      %667 = vst [vmem:[#allocation3 + $0x70] sm:$0xff] %v663
      %668 = vst [vmem:[#allocation3 + $0x78] sm:$0xff] %v664
      %v669 = vld [vmem:[#allocation2] sm:$0xff]
      %v670 = vld [vmem:[#allocation2 + $0x8] sm:$0xff]
      %v671 = vld [vmem:[#allocation2 + $0x10] sm:$0xff]
      %v672 = vld [vmem:[%s469] ss:$2 sm:$0x3]
      %v674 = vlaneseq
      %v675 = vshrl.u32 %v674, 7
      %v676 = vsub.s32 0, %v675
      %v677 = vrot.slane %v672, %v676
      %v678 = vlaneseq
      %v679 = vshrl.u32 %v678, 7
      %v680 = vsub.s32 1, %v679
      %v681 = vrot.slane %v672, %v680
      %682 = vrot.lane.b32.xlu0 %v677, 34
      %v683 = vpop.permute.xlu0 %682
      %684 = vrot.lane.b32.xlu0 %v681, 34
      %v685 = vpop.permute.xlu0 %684
      %vm686 = vcmask 277504
      %v687 = vsel %vm686, %v683, %v685
      %v691 = vmul.f32 %v669, %v683
      %v692 = vmul.f32 %v670, %v687
      %v693 = vmul.f32 %v671, %v685
      %697 = vrot.lane.b32.xlu0 %v691, 94
      %v698 = vpop.permute.xlu0 %697
      %699 = vrot.lane.b32.xlu0 %v692, 94
      %v700 = vpop.permute.xlu0 %699
      %701 = vrot.lane.b32.xlu0 %v693, 94
      %v702 = vpop.permute.xlu0 %701
      %vm703 = vcmask 769024
      %v704 = vsel %vm703, %v698, %v700
      %v705 = vsel %vm703, %v700, %v702
      %708 = vst [vmem:[#allocation3 + $0x80] sm:$0xff] %v704
      %709 = vst [vmem:[#allocation3 + $0x88] sm:$0xff] %v705
      %v710 = vld [vmem:[%s2] sm:$0xf]
      %v711 = vld [vmem:[#allocation3] sm:$0xff]
      %v712 = vld [vmem:[#allocation3 + $0x8] sm:$0xff]
      %v713 = vld [vmem:[#allocation3 + $0x10] sm:$0xff]
      %v714 = vld [vmem:[#allocation3 + $0x18] sm:$0xff]
      %v715 = vld [vmem:[#allocation3 + $0x20] sm:$0xff]
      %v716 = vld [vmem:[#allocation3 + $0x28] sm:$0xff]
      %v717 = vld [vmem:[#allocation3 + $0x30] sm:$0xff]
      %v718 = vld [vmem:[#allocation3 + $0x38] sm:$0xff]
      %v719 = vld [vmem:[#allocation3 + $0x40] sm:$0xff]
      %v720 = vld [vmem:[#allocation3 + $0x48] sm:$0xff]
      %v721 = vld [vmem:[#allocation3 + $0x50] sm:$0xff]
      %v722 = vld [vmem:[#allocation3 + $0x58] sm:$0xff]
      %v723 = vld [vmem:[#allocation3 + $0x60] sm:$0xff]
      %v724 = vld [vmem:[#allocation3 + $0x68] sm:$0xff]
      %v725 = vld [vmem:[#allocation3 + $0x70] sm:$0xff]
      %v726 = vld [vmem:[#allocation3 + $0x78] sm:$0xff]
      %v727 = vld [vmem:[#allocation3 + $0x80] sm:$0xff]
      %v728 = vld [vmem:[#allocation3 + $0x88] sm:$0xff]
      %v729 = vpack.c.bf16 %v713, %v711
      %v730 = vpack.c.bf16 %v714, %v712
      %v731 = vpack.c.bf16 %v717, %v715
      %v732 = vpack.c.bf16 %v718, %v716
      %v733 = vpack.c.bf16 %v721, %v719
      %v734 = vpack.c.bf16 %v722, %v720
      %v735 = vpack.c.bf16 %v725, %v723
      %v736 = vpack.c.bf16 %v726, %v724
      %v737 = vpack.c.bf16 %v727, %v727
      %v738 = vpack.c.bf16 %v728, %v728
      %v739 = vld [vmem:[%s3] sm:$0xff]
      %741 = vset.pattern.permute.xlu0 0
      %742 = vperm.xlu0 %741, %v739
      %v743 = vpop.permute.xlu0 %742
      %vm745 = vcmask 588800
      %v747 = vsel %vm745, %v710, 0
      %vm749 = vcmask 1043456
      %v751 = vsel %vm749, %v737, 0
      %v754 = vsel %vm749, %v738, 0
      %756 = vmatprep.subr.bf16.mxu0 %v730
      %757 = vmatpush1.bf16.msra.mxu0 %v729
      %758 = vmatprep.subr.bf16.mxu0 %v732
      %759 = vmatpush1.bf16.msra.mxu0 %v731
      %760 = vmatprep.subr.bf16.mxu0 %v734
      %761 = vmatpush1.bf16.msra.mxu0 %v733
      %762 = vmatprep.subr.bf16.mxu0 %v736
      %763 = vmatpush1.bf16.msra.mxu0 %v735
      %764 = vmatprep.subr.bf16.mxu0 %v754
      %765 = vmatpush1.bf16.msra.mxu0 %v751
      %766 = vmatprep.subr.bf16.mxu0 0
      %767 = vmatpush1.bf16.msra.mxu0 0
      %768 = vmatprep.subr.bf16.mxu0 0
      %769 = vmatpush1.bf16.msra.mxu0 0
      %770 = vmatprep.subr.bf16.mxu0 0
      %771 = vmatpush1.bf16.msra.mxu0 0
      %772 = vmatprep.subr.bf16.mxu0 0
      %773 = vmatpush1.bf16.msra.mxu0 0
      %774 = vmatprep.subr.bf16.mxu0 0
      %775 = vmatpush1.bf16.msra.mxu0 0
      %776 = vmatprep.subr.bf16.mxu0 0
      %777 = vmatpush1.bf16.msra.mxu0 0
      %778 = vmatprep.subr.bf16.mxu0 0
      %779 = vmatpush1.bf16.msra.mxu0 0
      %780 = vmatprep.subr.bf16.mxu0 0
      %781 = vmatpush1.bf16.msra.mxu0 0
      %782 = vmatprep.subr.bf16.mxu0 0
      %783 = vmatpush1.bf16.msra.mxu0 0
      %784 = vmatprep.subr.bf16.mxu0 0
      %785 = vmatpush1.bf16.msra.mxu0 0
      %786 = vmatprep.subr.bf16.mxu0 0
      %787 = vmatpush1.bf16.msra.mxu0 0
      %788 = vmatprep.mubr.bf16.mxu0 0
      %789 = vmatmul.mubr.bf16.gmra.mrb[0].mxu0 %v747
      %v790 = vpop.f32.mrb[0].mxu0
      %v791 = vadd.f32 %v743, %v790
      %v792 = vpop.f32.mrb[0].mxu0
      %v793 = vadd.f32 %v743, %v792
      %v794 = vpop.f32.mrb[0].mxu0
      %v795 = vpop.f32.mrb[0].mxu0
      %796 = vdwg.mxu0
      %v797 = vxor.u32 %v791, 2147483648
      %v798 = vxor.u32 %v793, 2147483648
      %v799 = vmul.f32 %v797, 1.442695
      %v800 = vpow.pop %v799
      %v801 = vmul.f32 %v798, 1.442695
      %v802 = vpow.pop %v801
      %v803 = vadd.f32 %v800, 1.0
      %v804 = vadd.f32 %v802, 1.0
      %v805 = vrcp.pop %v803
      %v806 = vmul.f32 1.0, %v805
      %v807 = vrcp.pop %v804
      %v808 = vmul.f32 1.0, %v807
      %v809 = vmul.f32 %v791, %v806
      %v810 = vmul.f32 %v793, %v808
      %813 = vrot.lane.b32.xlu0 %v809, 17
      %v814 = vpop.permute.xlu0 %813
      %815 = vrot.lane.b32.xlu0 %v810, 17
      %v816 = vpop.permute.xlu0 %815
      %v817 = vsel %vm408, %v814, %v816
      %821 = vst.msk [vmem:[#allocation2] sm:$0xff] %vm425, %v814
      %822 = vst [vmem:[#allocation2 + $0x8] sm:$0xff] %v817
      %823 = vst.msk [vmem:[#allocation2 + $0x10] sm:$0xff] %vm408, %v816
      %v824 = vld [vmem:[#allocation2] sm:$0xff]
      %v825 = vld [vmem:[#allocation2 + $0x8] sm:$0xff]
      %v826 = vld [vmem:[%s6] ss:$2 sm:$0x3]
      %v828 = vlaneseq
      %v829 = vshrl.u32 %v828, 7
      %v830 = vsub.s32 0, %v829
      %v831 = vrot.slane %v826, %v830
      %v832 = vlaneseq
      %v833 = vshrl.u32 %v832, 7
      %v834 = vsub.s32 1, %v833
      %v835 = vrot.slane %v826, %v834
      %v838 = vmul.f32 %v824, %v831
      %v839 = vmul.f32 %v825, %v835
      %840 = vst [vmem:[#allocation3] sm:$0xff] %v838
      %841 = vst [vmem:[#allocation3 + $0x8] sm:$0xff] %v839
      %v842 = vld [vmem:[#allocation2] sm:$0xff]
      %v843 = vld [vmem:[#allocation2 + $0x8] sm:$0xff]
      %v844 = vld [vmem:[#allocation2 + $0x10] sm:$0xff]
      %848 = vrot.lane.b32.xlu0 %v842, 127
      %v849 = vpop.permute.xlu0 %848
      %850 = vrot.lane.b32.xlu0 %v843, 127
      %v851 = vpop.permute.xlu0 %850
      %852 = vrot.lane.b32.xlu0 %v844, 127
      %v853 = vpop.permute.xlu0 %852
      %v854 = vsel %vm459, %v849, %v851
      %v855 = vsel %vm459, %v851, %v853
      %858 = vst [vmem:[#allocation3 + $0x10] sm:$0xff] %v854
      %859 = vst [vmem:[#allocation3 + $0x18] sm:$0xff] %v855
      %v860 = vld [vmem:[#allocation2] sm:$0xff]
      %v861 = vld [vmem:[#allocation2 + $0x8] sm:$0xff]
      %v862 = vld [vmem:[#allocation2 + $0x10] sm:$0xff]
      %v863 = vld [vmem:[%s469] ss:$2 sm:$0x3]
      %v865 = vlaneseq
      %v866 = vshrl.u32 %v865, 7
      %v867 = vsub.s32 0, %v866
      %v868 = vrot.slane %v863, %v867
      %v869 = vlaneseq
      %v870 = vshrl.u32 %v869, 7
      %v871 = vsub.s32 1, %v870
      %v872 = vrot.slane %v863, %v871
      %873 = vrot.lane.b32.xlu0 %v868, 2
      %v874 = vpop.permute.xlu0 %873
      %875 = vrot.lane.b32.xlu0 %v872, 2
      %v876 = vpop.permute.xlu0 %875
      %v877 = vsel %vm484, %v874, %v876
      %v881 = vmul.f32 %v860, %v874
      %v882 = vmul.f32 %v861, %v877
      %v883 = vmul.f32 %v862, %v876
      %887 = vrot.lane.b32.xlu0 %v881, 126
      %v888 = vpop.permute.xlu0 %887
      %889 = vrot.lane.b32.xlu0 %v882, 126
      %v890 = vpop.permute.xlu0 %889
      %891 = vrot.lane.b32.xlu0 %v883, 126
      %v892 = vpop.permute.xlu0 %891
      %v893 = vsel %vm501, %v888, %v890
      %v894 = vsel %vm501, %v890, %v892
      %897 = vst [vmem:[#allocation3 + $0x20] sm:$0xff] %v893
      %898 = vst [vmem:[#allocation3 + $0x28] sm:$0xff] %v894
      %v899 = vld [vmem:[#allocation2] sm:$0xff]
      %v900 = vld [vmem:[#allocation2 + $0x8] sm:$0xff]
      %v901 = vld [vmem:[#allocation2 + $0x10] sm:$0xff]
      %v902 = vld [vmem:[%s6] ss:$2 sm:$0x3]
      %v904 = vlaneseq
      %v905 = vshrl.u32 %v904, 7
      %v906 = vsub.s32 0, %v905
      %v907 = vrot.slane %v902, %v906
      %v908 = vlaneseq
      %v909 = vshrl.u32 %v908, 7
      %v910 = vsub.s32 1, %v909
      %v911 = vrot.slane %v902, %v910
      %912 = vrot.lane.b32.xlu0 %v907, 16
      %v913 = vpop.permute.xlu0 %912
      %914 = vrot.lane.b32.xlu0 %v911, 16
      %v915 = vpop.permute.xlu0 %914
      %v916 = vsel %vm525, %v913, %v915
      %v920 = vmul.f32 %v899, %v913
      %v921 = vmul.f32 %v900, %v916
      %v922 = vmul.f32 %v901, %v915
      %926 = vrot.lane.b32.xlu0 %v920, 112
      %v927 = vpop.permute.xlu0 %926
      %928 = vrot.lane.b32.xlu0 %v921, 112
      %v929 = vpop.permute.xlu0 %928
      %930 = vrot.lane.b32.xlu0 %v922, 112
      %v931 = vpop.permute.xlu0 %930
      %v932 = vsel %vm542, %v927, %v929
      %v933 = vsel %vm542, %v929, %v931
      %936 = vst [vmem:[#allocation3 + $0x30] sm:$0xff] %v932
      %937 = vst [vmem:[#allocation3 + $0x38] sm:$0xff] %v933
      %v938 = vld [vmem:[#allocation2] sm:$0xff]
      %v939 = vld [vmem:[#allocation2 + $0x8] sm:$0xff]
      %v940 = vld [vmem:[#allocation2 + $0x10] sm:$0xff]
      %944 = vrot.lane.b32.xlu0 %v938, 111
      %v945 = vpop.permute.xlu0 %944
      %946 = vrot.lane.b32.xlu0 %v939, 111
      %v947 = vpop.permute.xlu0 %946
      %948 = vrot.lane.b32.xlu0 %v940, 111
      %v949 = vpop.permute.xlu0 %948
      %v950 = vsel %vm561, %v945, %v947
      %v951 = vsel %vm561, %v947, %v949
      %954 = vst [vmem:[#allocation3 + $0x40] sm:$0xff] %v950
      %955 = vst [vmem:[#allocation3 + $0x48] sm:$0xff] %v951
      %v956 = vld [vmem:[#allocation2] sm:$0xff]
      %v957 = vld [vmem:[#allocation2 + $0x8] sm:$0xff]
      %v958 = vld [vmem:[#allocation2 + $0x10] sm:$0xff]
      %v959 = vld [vmem:[%s469] ss:$2 sm:$0x3]
      %v961 = vlaneseq
      %v962 = vshrl.u32 %v961, 7
      %v963 = vsub.s32 0, %v962
      %v964 = vrot.slane %v959, %v963
      %v965 = vlaneseq
      %v966 = vshrl.u32 %v965, 7
      %v967 = vsub.s32 1, %v966
      %v968 = vrot.slane %v959, %v967
      %969 = vrot.lane.b32.xlu0 %v964, 18
      %v970 = vpop.permute.xlu0 %969
      %971 = vrot.lane.b32.xlu0 %v968, 18
      %v972 = vpop.permute.xlu0 %971
      %v973 = vsel %vm585, %v970, %v972
      %v977 = vmul.f32 %v956, %v970
      %v978 = vmul.f32 %v957, %v973
      %v979 = vmul.f32 %v958, %v972
      %983 = vrot.lane.b32.xlu0 %v977, 110
      %v984 = vpop.permute.xlu0 %983
      %985 = vrot.lane.b32.xlu0 %v978, 110
      %v986 = vpop.permute.xlu0 %985
      %987 = vrot.lane.b32.xlu0 %v979, 110
      %v988 = vpop.permute.xlu0 %987
      %v989 = vsel %vm602, %v984, %v986
      %v990 = vsel %vm602, %v986, %v988
      %993 = vst [vmem:[#allocation3 + $0x50] sm:$0xff] %v989
      %994 = vst [vmem:[#allocation3 + $0x58] sm:$0xff] %v990
      %v995 = vld [vmem:[#allocation2] sm:$0xff]
      %v996 = vld [vmem:[#allocation2 + $0x8] sm:$0xff]
      %v997 = vld [vmem:[#allocation2 + $0x10] sm:$0xff]
      %v998 = vld [vmem:[%s6] ss:$2 sm:$0x3]
      %v1000 = vlaneseq
      %v1001 = vshrl.u32 %v1000, 7
      %v1002 = vsub.s32 0, %v1001
      %v1003 = vrot.slane %v998, %v1002
      %v1004 = vlaneseq
      %v1005 = vshrl.u32 %v1004, 7
      %v1006 = vsub.s32 1, %v1005
      %v1007 = vrot.slane %v998, %v1006
      %1008 = vrot.lane.b32.xlu0 %v1003, 32
      %v1009 = vpop.permute.xlu0 %1008
      %1010 = vrot.lane.b32.xlu0 %v1007, 32
      %v1011 = vpop.permute.xlu0 %1010
      %v1012 = vsel %vm626, %v1009, %v1011
      %v1016 = vmul.f32 %v995, %v1009
      %v1017 = vmul.f32 %v996, %v1012
      %v1018 = vmul.f32 %v997, %v1011
      %1022 = vrot.lane.b32.xlu0 %v1016, 96
      %v1023 = vpop.permute.xlu0 %1022
      %1024 = vrot.lane.b32.xlu0 %v1017, 96
      %v1025 = vpop.permute.xlu0 %1024
      %1026 = vrot.lane.b32.xlu0 %v1018, 96
      %v1027 = vpop.permute.xlu0 %1026
      %v1028 = vsel %vm643, %v1023, %v1025
      %v1029 = vsel %vm643, %v1025, %v1027
      %1032 = vst [vmem:[#allocation3 + $0x60] sm:$0xff] %v1028
      %1033 = vst [vmem:[#allocation3 + $0x68] sm:$0xff] %v1029
      %v1034 = vld [vmem:[#allocation2] sm:$0xff]
      %v1035 = vld [vmem:[#allocation2 + $0x8] sm:$0xff]
      %v1036 = vld [vmem:[#allocation2 + $0x10] sm:$0xff]
      %1040 = vrot.lane.b32.xlu0 %v1034, 95
      %v1041 = vpop.permute.xlu0 %1040
      %1042 = vrot.lane.b32.xlu0 %v1035, 95
      %v1043 = vpop.permute.xlu0 %1042
      %1044 = vrot.lane.b32.xlu0 %v1036, 95
      %v1045 = vpop.permute.xlu0 %1044
      %v1046 = vsel %vm662, %v1041, %v1043
      %v1047 = vsel %vm662, %v1043, %v1045
      %1050 = vst [vmem:[#allocation3 + $0x70] sm:$0xff] %v1046
      %1051 = vst [vmem:[#allocation3 + $0x78] sm:$0xff] %v1047
      %v1052 = vld [vmem:[#allocation2] sm:$0xff]
      %v1053 = vld [vmem:[#allocation2 + $0x8] sm:$0xff]
      %v1054 = vld [vmem:[#allocation2 + $0x10] sm:$0xff]
      %v1055 = vld [vmem:[%s469] ss:$2 sm:$0x3]
      %v1057 = vlaneseq
      %v1058 = vshrl.u32 %v1057, 7
      %v1059 = vsub.s32 0, %v1058
      %v1060 = vrot.slane %v1055, %v1059
      %v1061 = vlaneseq
      %v1062 = vshrl.u32 %v1061, 7
      %v1063 = vsub.s32 1, %v1062
      %v1064 = vrot.slane %v1055, %v1063
      %1065 = vrot.lane.b32.xlu0 %v1060, 34
      %v1066 = vpop.permute.xlu0 %1065
      %1067 = vrot.lane.b32.xlu0 %v1064, 34
      %v1068 = vpop.permute.xlu0 %1067
      %v1069 = vsel %vm686, %v1066, %v1068
      %v1073 = vmul.f32 %v1052, %v1066
      %v1074 = vmul.f32 %v1053, %v1069
      %v1075 = vmul.f32 %v1054, %v1068
      %1079 = vrot.lane.b32.xlu0 %v1073, 94
      %v1080 = vpop.permute.xlu0 %1079
      %1081 = vrot.lane.b32.xlu0 %v1074, 94
      %v1082 = vpop.permute.xlu0 %1081
      %1083 = vrot.lane.b32.xlu0 %v1075, 94
      %v1084 = vpop.permute.xlu0 %1083
      %v1085 = vsel %vm703, %v1080, %v1082
      %v1086 = vsel %vm703, %v1082, %v1084
      %1089 = vst [vmem:[#allocation3 + $0x80] sm:$0xff] %v1085
      %1090 = vst [vmem:[#allocation3 + $0x88] sm:$0xff] %v1086
      %v1091 = vld [vmem:[%s4] sm:$0xf]
      %v1092 = vld [vmem:[#allocation3] sm:$0xff]
      %v1093 = vld [vmem:[#allocation3 + $0x8] sm:$0xff]
      %v1094 = vld [vmem:[#allocation3 + $0x10] sm:$0xff]
      %v1095 = vld [vmem:[#allocation3 + $0x18] sm:$0xff]
      %v1096 = vld [vmem:[#allocation3 + $0x20] sm:$0xff]
      %v1097 = vld [vmem:[#allocation3 + $0x28] sm:$0xff]
      %v1098 = vld [vmem:[#allocation3 + $0x30] sm:$0xff]
      %v1099 = vld [vmem:[#allocation3 + $0x38] sm:$0xff]
      %v1100 = vld [vmem:[#allocation3 + $0x40] sm:$0xff]
      %v1101 = vld [vmem:[#allocation3 + $0x48] sm:$0xff]
      %v1102 = vld [vmem:[#allocation3 + $0x50] sm:$0xff]
      %v1103 = vld [vmem:[#allocation3 + $0x58] sm:$0xff]
      %v1104 = vld [vmem:[#allocation3 + $0x60] sm:$0xff]
      %v1105 = vld [vmem:[#allocation3 + $0x68] sm:$0xff]
      %v1106 = vld [vmem:[#allocation3 + $0x70] sm:$0xff]
      %v1107 = vld [vmem:[#allocation3 + $0x78] sm:$0xff]
      %v1108 = vld [vmem:[#allocation3 + $0x80] sm:$0xff]
      %v1109 = vld [vmem:[#allocation3 + $0x88] sm:$0xff]
      %v1110 = vpack.c.bf16 %v1094, %v1092
      %v1111 = vpack.c.bf16 %v1095, %v1093
      %v1112 = vpack.c.bf16 %v1098, %v1096
      %v1113 = vpack.c.bf16 %v1099, %v1097
      %v1114 = vpack.c.bf16 %v1102, %v1100
      %v1115 = vpack.c.bf16 %v1103, %v1101
      %v1116 = vpack.c.bf16 %v1106, %v1104
      %v1117 = vpack.c.bf16 %v1107, %v1105
      %v1118 = vpack.c.bf16 %v1108, %v1108
      %v1119 = vpack.c.bf16 %v1109, %v1109
      %v1120 = vld [vmem:[%s5] sm:$0xff]
      %1122 = vset.pattern.permute.xlu0 0
      %1123 = vperm.xlu0 %1122, %v1120
      %v1124 = vpop.permute.xlu0 %1123
      %v1127 = vsel %vm745, %v1091, 0
      %v1130 = vsel %vm749, %v1118, 0
      %v1133 = vsel %vm749, %v1119, 0
      %1135 = vmatprep.subr.bf16.mxu0 %v1111
      %1136 = vmatpush1.bf16.msra.mxu0 %v1110
      %1137 = vmatprep.subr.bf16.mxu0 %v1113
      %1138 = vmatpush1.bf16.msra.mxu0 %v1112
      %1139 = vmatprep.subr.bf16.mxu0 %v1115
      %1140 = vmatpush1.bf16.msra.mxu0 %v1114
      %1141 = vmatprep.subr.bf16.mxu0 %v1117
      %1142 = vmatpush1.bf16.msra.mxu0 %v1116
      %1143 = vmatprep.subr.bf16.mxu0 %v1133
      %1144 = vmatpush1.bf16.msra.mxu0 %v1130
      %1145 = vmatprep.subr.bf16.mxu0 0
      %1146 = vmatpush1.bf16.msra.mxu0 0
      %1147 = vmatprep.subr.bf16.mxu0 0
      %1148 = vmatpush1.bf16.msra.mxu0 0
      %1149 = vmatprep.subr.bf16.mxu0 0
      %1150 = vmatpush1.bf16.msra.mxu0 0
      %1151 = vmatprep.subr.bf16.mxu0 0
      %1152 = vmatpush1.bf16.msra.mxu0 0
      %1153 = vmatprep.subr.bf16.mxu0 0
      %1154 = vmatpush1.bf16.msra.mxu0 0
      %1155 = vmatprep.subr.bf16.mxu0 0
      %1156 = vmatpush1.bf16.msra.mxu0 0
      %1157 = vmatprep.subr.bf16.mxu0 0
      %1158 = vmatpush1.bf16.msra.mxu0 0
      %1159 = vmatprep.subr.bf16.mxu0 0
      %1160 = vmatpush1.bf16.msra.mxu0 0
      %1161 = vmatprep.subr.bf16.mxu0 0
      %1162 = vmatpush1.bf16.msra.mxu0 0
      %1163 = vmatprep.subr.bf16.mxu0 0
      %1164 = vmatpush1.bf16.msra.mxu0 0
      %1165 = vmatprep.subr.bf16.mxu0 0
      %1166 = vmatpush1.bf16.msra.mxu0 0
      %1167 = vmatprep.mubr.bf16.mxu0 0
      %1168 = vmatmul.mubr.bf16.gmra.mrb[0].mxu0 %v1127
      %v1169 = vpop.f32.mrb[0].mxu0
      %v1170 = vadd.f32 %v1124, %v1169
      %v1171 = vpop.f32.mrb[0].mxu0
      %v1172 = vadd.f32 %v1124, %v1171
      %v1173 = vpop.f32.mrb[0].mxu0
      %v1174 = vpop.f32.mrb[0].mxu0
      %1175 = vdwg.mxu0
      %v1176 = vxor.u32 %v1170, 2147483648
      %v1177 = vxor.u32 %v1172, 2147483648
      %v1178 = vmul.f32 %v1176, 1.442695
      %v1179 = vpow.pop %v1178
      %v1180 = vmul.f32 %v1177, 1.442695
      %v1181 = vpow.pop %v1180
      %v1182 = vadd.f32 %v1179, 1.0
      %v1183 = vadd.f32 %v1181, 1.0
      %v1184 = vrcp.pop %v1182
      %v1185 = vmul.f32 1.0, %v1184
      %v1186 = vrcp.pop %v1183
      %v1187 = vmul.f32 1.0, %v1186
      %v1188 = vmul.f32 %v1170, %v1185
      %v1189 = vmul.f32 %v1172, %v1187
      %v1190 = vld [vmem:[%s7] sm:$0xf]
      %v1191 = vld [vmem:[%s7 + $0x4] sm:$0xf]
      %v1192 = vld [vmem:[%s396] sm:$0xff]
      %v1193 = vld [vmem:[%s8] sm:$0xf]
      %v1194 = vld [vmem:[%s8 + $0x4] sm:$0xf]
      %v1195 = vld [vmem:[%s401] sm:$0xff]
      %v1198 = vunpack.c.l.b16 %v1193
      %v1199 = vunpack.c.l.b16 %v1194
      %v1200 = vpack.c.b16 %v1199, %v1198
      %v1202 = vunpack.c.l.b16 %v1195
      %v1203 = vunpack.c.h.b16 %v1195
      %v1204 = vpack.c.b16 %v1202, %v1202
      %v1205 = vpack.c.b16 %v1203, %v1203
      %vm1206 = vcmask 64512
      %v1208 = vsel %vm1206, %v1200, 0
      %v1211 = vsel %vm749, %v1204, 0
      %v1214 = vsel %vm749, %v1205, 0
      %1216 = vmatprep.subr.bf16.mxu0 %v1214
      %1217 = vmatpush1.bf16.msra.mxu0 %v1211
      %1218 = vmatprep.subr.bf16.mxu0 0
      %1219 = vmatpush1.bf16.msra.mxu0 0
      %1220 = vmatprep.subr.bf16.mxu0 0
      %1221 = vmatpush1.bf16.msra.mxu0 0
      %1222 = vmatprep.subr.bf16.mxu0 0
      %1223 = vmatpush1.bf16.msra.mxu0 0
      %1224 = vmatprep.subr.bf16.mxu0 0
      %1225 = vmatpush1.bf16.msra.mxu0 0
      %1226 = vmatprep.subr.bf16.mxu0 0
      %1227 = vmatpush1.bf16.msra.mxu0 0
      %1228 = vmatprep.subr.bf16.mxu0 0
      %1229 = vmatpush1.bf16.msra.mxu0 0
      %1230 = vmatprep.subr.bf16.mxu0 0
      %1231 = vmatpush1.bf16.msra.mxu0 0
      %1232 = vmatprep.subr.bf16.mxu0 0
      %1233 = vmatpush1.bf16.msra.mxu0 0
      %1234 = vmatprep.subr.bf16.mxu0 0
      %1235 = vmatpush1.bf16.msra.mxu0 0
      %1236 = vmatprep.subr.bf16.mxu0 0
      %1237 = vmatpush1.bf16.msra.mxu0 0
      %1238 = vmatprep.subr.bf16.mxu0 0
      %1239 = vmatpush1.bf16.msra.mxu0 0
      %1240 = vmatprep.subr.bf16.mxu0 0
      %1241 = vmatpush1.bf16.msra.mxu0 0
      %1242 = vmatprep.subr.bf16.mxu0 0
      %1243 = vmatpush1.bf16.msra.mxu0 0
      %1244 = vmatprep.subr.bf16.mxu0 0
      %1245 = vmatpush1.bf16.msra.mxu0 0
      %1246 = vmatprep.subr.bf16.mxu0 0
      %1247 = vmatpush1.bf16.msra.mxu0 0
      %1248 = vmatprep.mubr.bf16.mxu0 0
      %1249 = vmatmul.mubr.bf16.gmra.mrb[0].mxu0 %v1208
      %v1250 = vpop.f32.mrb[0].mxu0
      %v1251 = vadd.f32 0.0, %v1250
      %v1252 = vpop.f32.mrb[0].mxu0
      %v1253 = vadd.f32 0.0, %v1252
      %v1254 = vpop.f32.mrb[0].mxu0
      %v1255 = vadd.f32 0.0, %v1254
      %v1256 = vpop.f32.mrb[0].mxu0
      %v1257 = vadd.f32 0.0, %v1256
      %1258 = vdwg.mxu0
      %v1261 = vunpack.c.l.b16 %v1190
      %v1262 = vunpack.c.l.b16 %v1191
      %v1263 = vpack.c.b16 %v1262, %v1261
      %v1265 = vunpack.c.l.b16 %v1192
      %v1266 = vunpack.c.h.b16 %v1192
      %v1267 = vpack.c.b16 %v1265, %v1265
      %v1268 = vpack.c.b16 %v1266, %v1266
      %v1270 = vsel %vm1206, %v1263, 0
      %v1273 = vsel %vm749, %v1267, 0
      %v1276 = vsel %vm749, %v1268, 0
      %1278 = vmatprep.subr.bf16.mxu0 %v1276
      %1279 = vmatpush1.bf16.msra.mxu0 %v1273
      %1280 = vmatprep.subr.bf16.mxu0 0
      %1281 = vmatpush1.bf16.msra.mxu0 0
      %1282 = vmatprep.subr.bf16.mxu0 0
      %1283 = vmatpush1.bf16.msra.mxu0 0
      %1284 = vmatprep.subr.bf16.mxu0 0
      %1285 = vmatpush1.bf16.msra.mxu0 0
      %1286 = vmatprep.subr.bf16.mxu0 0
      %1287 = vmatpush1.bf16.msra.mxu0 0
      %1288 = vmatprep.subr.bf16.mxu0 0
      %1289 = vmatpush1.bf16.msra.mxu0 0
      %1290 = vmatprep.subr.bf16.mxu0 0
      %1291 = vmatpush1.bf16.msra.mxu0 0
      %1292 = vmatprep.subr.bf16.mxu0 0
      %1293 = vmatpush1.bf16.msra.mxu0 0
      %1294 = vmatprep.subr.bf16.mxu0 0
      %1295 = vmatpush1.bf16.msra.mxu0 0
      %1296 = vmatprep.subr.bf16.mxu0 0
      %1297 = vmatpush1.bf16.msra.mxu0 0
      %1298 = vmatprep.subr.bf16.mxu0 0
      %1299 = vmatpush1.bf16.msra.mxu0 0
      %1300 = vmatprep.subr.bf16.mxu0 0
      %1301 = vmatpush1.bf16.msra.mxu0 0
      %1302 = vmatprep.subr.bf16.mxu0 0
      %1303 = vmatpush1.bf16.msra.mxu0 0
      %1304 = vmatprep.subr.bf16.mxu0 0
      %1305 = vmatpush1.bf16.msra.mxu0 0
      %1306 = vmatprep.subr.bf16.mxu0 0
      %1307 = vmatpush1.bf16.msra.mxu0 0
      %1308 = vmatprep.subr.bf16.mxu0 0
      %1309 = vmatpush1.bf16.msra.mxu0 0
      %1310 = vmatprep.mubr.bf16.mxu0 0
      %1311 = vmatmul.mubr.bf16.gmra.mrb[0].mxu0 %v1270
      %v1312 = vpop.f32.mrb[0].mxu0
      %v1313 = vadd.f32 %v1251, %v1312
      %v1314 = vpop.f32.mrb[0].mxu0
      %v1315 = vadd.f32 %v1253, %v1314
      %v1316 = vpop.f32.mrb[0].mxu0
      %v1317 = vadd.f32 %v1255, %v1316
      %v1318 = vpop.f32.mrb[0].mxu0
      %v1319 = vadd.f32 %v1257, %v1318
      %1320 = vdwg.mxu0
      %v1321 = vld [vmem:[%s9] sm:$0xf]
      %v1322 = vld [vmem:[%s9 + $0x4] sm:$0xf]
      %v1323 = vpack.c.bf16 %v1188, %v1188
      %v1324 = vpack.c.bf16 %v1189, %v1189
      %v1327 = vunpack.c.l.b16 %v1321
      %v1328 = vunpack.c.l.b16 %v1322
      %v1329 = vpack.c.b16 %v1328, %v1327
      %v1331 = vsel %vm1206, %v1329, 0
      %v1334 = vsel %vm749, %v1323, 0
      %v1337 = vsel %vm749, %v1324, 0
      %1339 = vmatprep.subr.bf16.mxu0 %v1337
      %1340 = vmatpush1.bf16.msra.mxu0 %v1334
      %1341 = vmatprep.subr.bf16.mxu0 0
      %1342 = vmatpush1.bf16.msra.mxu0 0
      %1343 = vmatprep.subr.bf16.mxu0 0
      %1344 = vmatpush1.bf16.msra.mxu0 0
      %1345 = vmatprep.subr.bf16.mxu0 0
      %1346 = vmatpush1.bf16.msra.mxu0 0
      %1347 = vmatprep.subr.bf16.mxu0 0
      %1348 = vmatpush1.bf16.msra.mxu0 0
      %1349 = vmatprep.subr.bf16.mxu0 0
      %1350 = vmatpush1.bf16.msra.mxu0 0
      %1351 = vmatprep.subr.bf16.mxu0 0
      %1352 = vmatpush1.bf16.msra.mxu0 0
      %1353 = vmatprep.subr.bf16.mxu0 0
      %1354 = vmatpush1.bf16.msra.mxu0 0
      %1355 = vmatprep.subr.bf16.mxu0 0
      %1356 = vmatpush1.bf16.msra.mxu0 0
      %1357 = vmatprep.subr.bf16.mxu0 0
      %1358 = vmatpush1.bf16.msra.mxu0 0
      %1359 = vmatprep.subr.bf16.mxu0 0
      %1360 = vmatpush1.bf16.msra.mxu0 0
      %1361 = vmatprep.subr.bf16.mxu0 0
      %1362 = vmatpush1.bf16.msra.mxu0 0
      %1363 = vmatprep.subr.bf16.mxu0 0
      %1364 = vmatpush1.bf16.msra.mxu0 0
      %1365 = vmatprep.subr.bf16.mxu0 0
      %1366 = vmatpush1.bf16.msra.mxu0 0
      %1367 = vmatprep.subr.bf16.mxu0 0
      %1368 = vmatpush1.bf16.msra.mxu0 0
      %1369 = vmatprep.subr.bf16.mxu0 0
      %1370 = vmatpush1.bf16.msra.mxu0 0
      %1371 = vmatprep.mubr.bf16.mxu0 0
      %1372 = vmatmul.mubr.bf16.gmra.mrb[0].mxu0 %v1331
      %v1373 = vpop.f32.mrb[0].mxu0
      %v1374 = vadd.f32 0.0, %v1373
      %v1375 = vpop.f32.mrb[0].mxu0
      %v1376 = vadd.f32 0.0, %v1375
      %v1377 = vpop.f32.mrb[0].mxu0
      %v1378 = vadd.f32 0.0, %v1377
      %v1379 = vpop.f32.mrb[0].mxu0
      %v1380 = vadd.f32 0.0, %v1379
      %1381 = vdwg.mxu0
      %v1382 = vadd.f32 %v1313, %v1374
      %v1383 = vadd.f32 %v1315, %v1376
      %v1384 = vadd.f32 %v1317, %v1378
      %v1385 = vadd.f32 %v1319, %v1380
      %v1386 = vld [vmem:[%s10] sm:$0xff]
      %v1387 = vld [vmem:[%s10 + $0x8] sm:$0xff]
      %1389 = vset.pattern.permute.xlu0 0
      %1390 = vperm.xlu0 %1389, %v1386
      %v1391 = vpop.permute.xlu0 %1390
      %1394 = vset.pattern.permute.xlu0 0
      %1395 = vperm.xlu0 %1394, %v1387
      %v1396 = vpop.permute.xlu0 %1395
      %v1398 = vadd.f32 %v1382, %v1391
      %v1399 = vadd.f32 %v1383, %v1391
      %v1400 = vadd.f32 %v1384, %v1396
      %v1401 = vadd.f32 %v1385, %v1396
      %v1402 = vxor.u32 %v1398, 2147483648
      %v1403 = vxor.u32 %v1399, 2147483648
      %v1404 = vxor.u32 %v1400, 2147483648
      %v1405 = vxor.u32 %v1401, 2147483648
      %v1406 = vmul.f32 %v1402, 1.442695
      %v1407 = vpow.pop %v1406
      %v1408 = vmul.f32 %v1403, 1.442695
      %v1409 = vpow.pop %v1408
      %v1410 = vmul.f32 %v1404, 1.442695
      %v1411 = vpow.pop %v1410
      %v1412 = vmul.f32 %v1405, 1.442695
      %v1413 = vpow.pop %v1412
      %v1414 = vadd.f32 %v1407, 1.0
      %v1415 = vadd.f32 %v1409, 1.0
      %v1416 = vadd.f32 %v1411, 1.0
      %v1417 = vadd.f32 %v1413, 1.0
      %v1418 = vrcp.pop %v1414
      %v1419 = vmul.f32 1.0, %v1418
      %v1420 = vrcp.pop %v1415
      %v1421 = vmul.f32 1.0, %v1420
      %v1422 = vrcp.pop %v1416
      %v1423 = vmul.f32 1.0, %v1422
      %v1424 = vrcp.pop %v1417
      %v1425 = vmul.f32 1.0, %v1424
      %v1426 = vmul.f32 %v1398, %v1419
      %v1427 = vmul.f32 %v1399, %v1421
      %v1428 = vmul.f32 %v1400, %v1423
      %v1429 = vmul.f32 %v1401, %v1425
      %1430 = vst [vmem:[%s406] sm:$0xff] %v1426
      %1431 = vst [vmem:[%s406 + $0x8] sm:$0xff] %v1427
      %1432 = vst [vmem:[%s406 + $0x10] sm:$0xff] %v1428
      %1433 = vst [vmem:[%s406 + $0x18] sm:$0xff] %v1429
      %p1434 = scmp.lt.s32.totalorder %s22, 1
      %s1435 = scalar_select %p1434, %s22, 1
      %s1436 = smul.addr %s1435, 4
      %s1437 = smul.addr %s1436, 8
      %s1438 = scalar_lea.vmem %s11, %s1437
      // Predicated region
      $region65: #{c2f_with_mca_forward.5} parent=63 // pred_check
        %p1439 = pneg %p281
      $region66: #{c2f_with_mca_forward.5} parent=63 // pred_check_branch
        %1441 = sbr.rel (%p1439) target = $region68
      $region67: #{c2f_with_mca_forward.5} parent=63 // pred_region
        _
      $region68: #{c2f_with_mca_forward.5} parent=63 // pred_fallthru
        _
    $region64: #{c2f_with_mca_forward.5} parent=5 // pred_fallthru
      _
    %p1442 = scmp.le.s32.totalorder 2, %s17
    // Predicated region
    $region69: #{c2f_with_mca_forward.5} parent=5 // pred_check
      %p1443 = pneg %p1442
    $region70: #{c2f_with_mca_forward.5} parent=5 // pred_check_branch
      %1445 = sbr.rel (%p1443) target = $region72
    $region71: #{c2f_with_mca_forward.5} parent=5 // pred_region
      %s1446 = ssub.s32 %s17, 2
      // Predicated region
      $region73: #{c2f_with_mca_forward.5} parent=71 // pred_check
        %p1447 = pneg %p287
      $region74: #{c2f_with_mca_forward.5} parent=71 // pred_check_branch
        %1449 = sbr.rel (%p1447) target = $region76
      $region75: #{c2f_with_mca_forward.5} parent=71 // pred_region
        %p1450 = scmp.lt.s32.totalorder %s23, 1
        %s1451 = scalar_select %p1450, %s23, 1
        %s1452 = smul.addr %s1451, 4
        %s1453 = smul.addr %s1452, 8
        %s1454 = scalar_lea.vmem %s11, %s1453
      $region76: #{c2f_with_mca_forward.5} parent=71 // pred_fallthru
        _
    $region72: #{c2f_with_mca_forward.5} parent=5 // pred_fallthru
      _
  $region6: #{c2f_with_mca_forward.5} parent=0 // loop_footer
    %s21 = sadd.s32 1, %s17
  $region7: #{c2f_with_mca_forward.5} parent=0 // loop_footer_branch
    %16 = sbr.rel target = $region3
  $region8: #{c2f_with_mca_forward.5} parent=0 // loop_exit
    _

</llo_original>
